<compile_context>
chip_gen: v6e
topology: v6e:2x2x1
jax: 0.10.0
libtpu: 0.0.40
codegen_flags: <defaults>
</compile_context>

<pallas_src>
import functools

import jax
import jax.numpy as jnp
from jax import lax
from jax.experimental import pallas as pl
from jax.experimental.pallas import tpu as pltpu


# ---------------------------------------------------------------------------
# Chip-aware budgets (v5e/v6e: 128 MiB VMEM -> big tiles; v7x: 64 MiB).
# ---------------------------------------------------------------------------
def _hw_budget():
    try:
        vmem = int(pltpu.get_tpu_info().vmem_capacity_bytes)
    except Exception:   # robust fallback: assume the smallest (v7x-like) VMEM
        vmem = 64 * 1024 * 1024
    big = vmem >= 96 * 1024 * 1024
    return {
        "vmem_limit": min(100 * 1024 * 1024, vmem * 3 // 4),
        "tm_cap": 512 if big else 256,
        "tn_cap": 512 if big else 256,
        "tk_cap": 1024 if big else 512,
        "tq_cap": 256 if big else 128,
        "tkv_cap": 512 if big else 256,
    }


_BUDGET = _hw_budget()


def _pick_tile(dim, cap, aligns):
    """Largest tile <= cap dividing dim, preferring MXU-friendly alignments."""
    if dim <= cap:
        return dim
    for align in aligns:
        t = (cap // align) * align
        while t >= align:
            if dim % t == 0:
                return t
            t -= align
    return dim          # fallback: full dim (always layout-legal)


# ---------------------------------------------------------------------------
# Kernel 1: tiled matmul with fused epilogues.
#   y = x @ w + b                      (bf16 MXU inputs, f32 accumulation)
#   optionally: exact-erf GELU
#   optionally: y = LayerNorm(y + residual) * gamma + beta   (tn == full N)
# Accumulates directly into o_ref when the output is f32 (no scratch copy).
# ---------------------------------------------------------------------------
def _matmul_kernel(*refs, n_k, activation, fuse_ln, use_scratch, eps):
    if fuse_ln:
        x_ref, w_ref, b_ref, res_ref, g_ref, beta_ref = refs[:6]
        refs = refs[6:]
    else:
        x_ref, w_ref, b_ref = refs[:3]
        refs = refs[3:]
    if use_scratch:
        o_ref, acc_ref = refs
    else:
        (o_ref,) = refs
        acc_ref = o_ref                       # accumulate straight into output

    @pl.when(pl.program_id(2) == 0)
    def _():
        acc_ref[...] = jnp.zeros_like(acc_ref)

    acc_ref[...] += jnp.dot(x_ref[...].astype(jnp.bfloat16), w_ref[...],
                            preferred_element_type=jnp.float32)

    @pl.when(pl.program_id(2) == n_k - 1)
    def _():
        y = acc_ref[...] + b_ref[...]
        if activation == "gelu":   # exact erf GELU (nn.GELU default), f32 math
            y = 0.5 * y * (1.0 + lax.erf(y * 0.7071067811865476))
        if fuse_ln:
            y = y + res_ref[...]
            mu = jnp.mean(y, axis=-1, keepdims=True)
            var = jnp.mean(jnp.square(y - mu), axis=-1, keepdims=True)
            y = (y - mu) * lax.rsqrt(var + eps) * g_ref[...] + beta_ref[...]
        o_ref[...] = y.astype(o_ref.dtype)


def pallas_matmul(x, w, b=None, *, activation=None, out_dtype=jnp.float32,
                  residual=None, ln_gamma=None, ln_beta=None, eps=1e-5):
    """y = act(x @ w + b); optionally LayerNorm(y + residual)*gamma + beta.

    x:(M,K) f32/bf16 (cast to bf16 inside the kernel at the MXU boundary),
    w:(K,N) bf16, b:(N,) f32 or None.  residual/gamma/beta are f32 and force
    tn == N (LayerNorm reduces over the full feature dim).
    """
    m, k = x.shape
    _, n = w.shape
    fuse_ln = residual is not None
    if b is None:
        b = jnp.zeros((n,), jnp.float32)

    tm = _pick_tile(m, _BUDGET["tm_cap"], (128, 8))
    tk = _pick_tile(k, _BUDGET["tk_cap"], (128,))
    tn = n if fuse_ln else _pick_tile(n, _BUDGET["tn_cap"], (128,))
    n_k = k // tk
    use_scratch = (out_dtype != jnp.float32)

    in_specs = [
        pl.BlockSpec((tm, tk), lambda i, j, kk: (i, kk)),
        pl.BlockSpec((tk, tn), lambda i, j, kk: (kk, j)),
        pl.BlockSpec((1, tn), lambda i, j, kk: (0, j)),
    ]
    args = [x, w.astype(jnp.bfloat16), b.reshape(1, n).astype(jnp.float32)]
    if fuse_ln:
        in_specs += [
            pl.BlockSpec((tm, tn), lambda i, j, kk: (i, j)),
            pl.BlockSpec((1, tn), lambda i, j, kk: (0, j)),
            pl.BlockSpec((1, tn), lambda i, j, kk: (0, j)),
        ]
        args += [residual.astype(jnp.float32),
                 ln_gamma.reshape(1, n).astype(jnp.float32),
                 ln_beta.reshape(1, n).astype(jnp.float32)]

    scratch = [pltpu.VMEM((tm, tn), jnp.float32)] if use_scratch else []

    return pl.pallas_call(
        functools.partial(_matmul_kernel, n_k=n_k, activation=activation,
                          fuse_ln=fuse_ln, use_scratch=use_scratch, eps=eps),
        out_shape=jax.ShapeDtypeStruct((m, n), out_dtype),
        grid_spec=pltpu.PrefetchScalarGridSpec(
            num_scalar_prefetch=0,
            grid=(m // tm, n // tn, n_k),
            in_specs=in_specs,
            out_specs=pl.BlockSpec((tm, tn), lambda i, j, kk: (i, j)),
            scratch_shapes=scratch,
        ),
        compiler_params=pltpu.CompilerParams(
            dimension_semantics=("parallel", "parallel", "arbitrary"),
            vmem_limit_bytes=_BUDGET["vmem_limit"]),
    )(*args)


# ---------------------------------------------------------------------------
# Kernel 2: flash-style multi-head attention core.
#   grid = (batch, q-tile, kv-tile); all heads batched per block; online
#   softmax in VMEM scratch -> the (H, Sq, Sk) score tensor never exists.
#   COUPLING: q arrives PRE-SCALED by 1/sqrt(d_k) (folded into Wq); the mask
#   is an additive bias with -1e10/sqrt(d_k) at masked positions, reproducing
#   PyTorch's "masked_fill(-1e10) then /sqrt(d_k)".
# ---------------------------------------------------------------------------
def _flash_mha_kernel(q_ref, k_ref, v_ref, bias_ref, o_ref,
                      m_scr, l_scr, acc_scr, *, n_kv):
    ki = pl.program_id(2)

    @pl.when(ki == 0)
    def _():
        m_scr[...] = jnp.full_like(m_scr, -jnp.inf)
        l_scr[...] = jnp.zeros_like(l_scr)
        acc_scr[...] = jnp.zeros_like(acc_scr)

    q = q_ref[0]                                   # (H, tq,  dk) bf16
    k = k_ref[0]                                   # (H, tkv, dk) bf16
    v = v_ref[0]                                   # (H, tkv, dk) bf16
    s = jnp.einsum("hqd,hkd->hqk", q, k,
                   preferred_element_type=jnp.float32)        # (H, tq, tkv)
    s = s + bias_ref[0].astype(jnp.float32)[None, :, :]       # additive mask

    m_prev = m_scr[...]
    m_new = jnp.maximum(m_prev, jnp.max(s, axis=-1, keepdims=True))
    alpha = jnp.exp(m_prev - m_new)
    p = jnp.exp(s - m_new)
    l_scr[...] = alpha * l_scr[...] + jnp.sum(p, axis=-1, keepdims=True)
    acc_scr[...] = alpha * acc_scr[...] + jnp.einsum(
        "hqk,hkd->hqd", p.astype(v.dtype), v,
        preferred_element_type=jnp.float32)
    m_scr[...] = m_new

    @pl.when(ki == n_kv - 1)
    def _():
        # approx reciprocal (EUP slot): rows sum to 1 within ~1e-3 relative.
        o_ref[0] = (acc_scr[...] *
                    pl.reciprocal(l_scr[...], approx=True)).astype(o_ref.dtype)


def pallas_mha(q, k, v, bias):
    """q:(N,H,Sq,dk) bf16 PRE-SCALED by 1/sqrt(d_k); k/v:(N,H,Sk,dk) bf16;
    bias:(N,Sq,Sk) bf16 additive mask (0 visible, -1e10/sqrt(d_k) masked).
    Returns (N,H,Sq,dk) bf16."""
    n, h, sq, dk = q.shape
    sk = k.shape[2]
    tq = _pick_tile(sq, _BUDGET["tq_cap"], (128, 8))
    tkv = _pick_tile(sk, _BUDGET["tkv_cap"], (128,))
    n_kv = sk // tkv
    return pl.pallas_call(
        functools.partial(_flash_mha_kernel, n_kv=n_kv),
        out_shape=jax.ShapeDtypeStruct((n, h, sq, dk), jnp.bfloat16),
        grid_spec=pltpu.PrefetchScalarGridSpec(
            num_scalar_prefetch=0,
            grid=(n, sq // tq, n_kv),
            in_specs=[
                pl.BlockSpec((1, h, tq, dk), lambda b, qi, ki: (b, 0, qi, 0)),
                pl.BlockSpec((1, h, tkv, dk), lambda b, qi, ki: (b, 0, ki, 0)),
                pl.BlockSpec((1, h, tkv, dk), lambda b, qi, ki: (b, 0, ki, 0)),
                pl.BlockSpec((1, tq, tkv), lambda b, qi, ki: (b, qi, ki)),
            ],
            out_specs=pl.BlockSpec((1, h, tq, dk),
                                   lambda b, qi, ki: (b, 0, qi, 0)),
            scratch_shapes=[
                pltpu.VMEM((h, tq, 1), jnp.float32),
                pltpu.VMEM((h, tq, 1), jnp.float32),
                pltpu.VMEM((h, tq, dk), jnp.float32),
            ],
        ),
        compiler_params=pltpu.CompilerParams(
            dimension_semantics=("parallel", "parallel", "arbitrary"),
            vmem_limit_bytes=_BUDGET["vmem_limit"]),
    )(q, k, v, bias)


# ---------------------------------------------------------------------------
# Host-side glue (plain XLA): bf16 head split/merge, mask->bias, weight prep.
# ---------------------------------------------------------------------------
def _split_heads(rows, n, s, heads, d_k):
    return rows.reshape(n, s, heads, d_k).transpose(0, 2, 1, 3)   # bf16 pass


def _merge_heads(x, n, s, heads, d_k):
    return x.transpose(0, 2, 1, 3).reshape(n * s, heads * d_k)    # bf16 pass


def _mask_to_bias(mask, n, sq, sk, d_k):
    """0/1 mask (broadcastable to (N,1,Sq,Sk)) -> additive bf16 bias, computed
    once per forward and reused by every layer."""
    neg = -1e10 / (float(d_k) ** 0.5)      # q is pre-scaled by 1/sqrt(d_k)
    m = jnp.broadcast_to(mask, (n, 1, sq, sk)).reshape(n, sq, sk)
    return jnp.where(m == 0, neg, 0.0).astype(jnp.bfloat16)


def prepare_layer_params(p, heads):
    """Transpose nn.Linear weights to (in,out), fuse QKV / KV, fold 1/sqrt(d_k)
    into Wq, cast matmul weights to bf16."""
    d = p["self_wq"].shape[0]
    inv = 1.0 / ((d // heads) ** 0.5)
    bf = jnp.bfloat16
    return {
        "w_qkv_self": jnp.concatenate(
            [p["self_wq"].T * inv, p["self_wk"].T, p["self_wv"].T], axis=1).astype(bf),
        "wo_self": p["self_wo"].T.astype(bf), "bo_self": p["self_bo"],
        "g_n": p["norm_g"], "b_n": p["norm_b"],
        "wq_cross": (p["cross_wq"].T * inv).astype(bf),
        "w_kv_cross": jnp.concatenate(
            [p["cross_wk"].T, p["cross_wv"].T], axis=1).astype(bf),
        "wo_cross": p["cross_wo"].T.astype(bf), "bo_cross": p["cross_bo"],
        "g1": p["norm1_g"], "beta1": p["norm1_b"],
        "w1": p["ff_w1"].T.astype(bf), "b1": p["ff_b1"],
        "w2": p["ff_w2"].T.astype(bf), "b2": p["ff_b2"],
        "g2": p["norm2_g"], "beta2": p["norm2_b"],
    }


def decoder_block_forward(dec_rows, enc_rows, src_bias, trg_bias, lp,
                          *, n, s_dec, s_enc, heads, d_k):
    d = heads * d_k
    # --- masked self-attention (value = key = query = dec_input) ---
    qkv = pallas_matmul(dec_rows, lp["w_qkv_self"],
                        out_dtype=jnp.bfloat16)                  # (N*Sd, 3D)
    q = _split_heads(qkv[:, :d], n, s_dec, heads, d_k)
    k = _split_heads(qkv[:, d:2 * d], n, s_dec, heads, d_k)
    v = _split_heads(qkv[:, 2 * d:], n, s_dec, heads, d_k)
    attn = pallas_mha(q, k, v, trg_bias)                         # (N,H,Sd,dk) bf16
    # Wo projection with fused (+dec_input residual, LayerNorm) epilogue.
    dec_query = pallas_matmul(
        _merge_heads(attn, n, s_dec, heads, d_k), lp["wo_self"], lp["bo_self"],
        residual=dec_rows, ln_gamma=lp["g_n"], ln_beta=lp["b_n"])  # (N*Sd,D) f32

    # --- cross-attention Encoder_Block (key = value = enc_out) ---
    q_c = pallas_matmul(dec_query, lp["wq_cross"], out_dtype=jnp.bfloat16)
    kv_c = pallas_matmul(enc_rows, lp["w_kv_cross"], out_dtype=jnp.bfloat16)
    qc = _split_heads(q_c, n, s_dec, heads, d_k)
    kc = _split_heads(kv_c[:, :d], n, s_enc, heads, d_k)
    vc = _split_heads(kv_c[:, d:], n, s_enc, heads, d_k)
    attn_c = pallas_mha(qc, kc, vc, src_bias)
    x1 = pallas_matmul(
        _merge_heads(attn_c, n, s_dec, heads, d_k), lp["wo_cross"], lp["bo_cross"],
        residual=dec_query, ln_gamma=lp["g1"], ln_beta=lp["beta1"])

    # --- feed-forward: Linear -> GELU -> Linear, fused (+x1 residual, LN) ---
    h1 = pallas_matmul(x1, lp["w1"], lp["b1"], activation="gelu",
                       out_dtype=jnp.bfloat16)
    return pallas_matmul(h1, lp["w2"], lp["b2"],
                         residual=x1, ln_gamma=lp["g2"], ln_beta=lp["beta2"])


def decoder_forward(dec_emb, enc_out, src_mask, trg_mask,
                    layer_params, final_w, final_b, *, heads):
    n, s_dec, d = dec_emb.shape
    s_enc = enc_out.shape[1]
    d_k = d // heads
    dec_rows = dec_emb.reshape(n * s_dec, d)    # dropout(emb) == identity (eval)
    enc_rows = enc_out.reshape(n * s_enc, d)
    # Masks -> additive bf16 biases, shared by every layer (computed once).
    trg_bias = _mask_to_bias(trg_mask, n, s_dec, s_dec, d_k)
    src_bias = _mask_to_bias(src_mask, n, s_dec, s_enc, d_k)
    out = dec_rows
    for lp in layer_params:
        # Faithful to the PyTorch module: every layer consumes the SAME
        # dec_input; only the last layer's output reaches the vocab head.
        out = decoder_block_forward(dec_rows, enc_rows, src_bias, trg_bias, lp,
                                    n=n, s_dec=s_dec, s_enc=s_enc,
                                    heads=heads, d_k=d_k)
    logits = pallas_matmul(out, final_w, final_b)                 # (N*Sd, V)
    return logits.reshape(n, s_dec, -1)


# ---------------------------------------------------------------------------
# Pure-JAX f32 reference that mirrors the PyTorch forward exactly.
# ---------------------------------------------------------------------------
def _ref_ln(x, g, b, eps=1e-5):
    mu = jnp.mean(x, axis=-1, keepdims=True)
    var = jnp.mean((x - mu) ** 2, axis=-1, keepdims=True)
    return (x - mu) / jnp.sqrt(var + eps) * g + b


def _ref_mha(value, key, query, mask, wq, wk, wv, wo, bo, heads):
    n, q_len, d = query.shape
    d_k = d // heads
    v = value @ wv.T
    k = key @ wk.T
    q = query @ wq.T
    q = q.reshape(n, q_len, heads, d_k)
    k = k.reshape(n, k.shape[1], heads, d_k)
    v = v.reshape(n, v.shape[1], heads, d_k)
    s = jnp.einsum("nqhd,nkhd->nhqk", q, k)
    s = jnp.where(mask == 0, -1e10, s)
    a = jax.nn.softmax(s / (d_k ** 0.5), axis=-1)
    o = jnp.einsum("nhql,nlhd->nqhd", a, v).reshape(n, q_len, d)
    return o @ wo.T + bo


def decoder_ref(dec_emb, enc_out, src_mask, trg_mask, raw_layers, out_w, out_b, heads):
    out = None
    for p in raw_layers:
        sa = _ref_mha(dec_emb, dec_emb, dec_emb, trg_mask,
                      p["self_wq"], p["self_wk"], p["self_wv"],
                      p["self_wo"], p["self_bo"], heads)
        dq = _ref_ln(sa + dec_emb, p["norm_g"], p["norm_b"])
        ca = _ref_mha(enc_out, enc_out, dq, src_mask,
                      p["cross_wq"], p["cross_wk"], p["cross_wv"],
                      p["cross_wo"], p["cross_bo"], heads)
        x1 = _ref_ln(dq + ca, p["norm1_g"], p["norm1_b"])
        h1 = x1 @ p["ff_w1"].T + p["ff_b1"]
        h1 = 0.5 * h1 * (1.0 + lax.erf(h1 * 0.7071067811865476))
        ff = h1 @ p["ff_w2"].T + p["ff_b2"]
        out = _ref_ln(x1 + ff, p["norm2_g"], p["norm2_b"])
    return out @ out_w.T + out_b


def _make_raw_layer_params(key, d, f, scale=0.1):
    ks = jax.random.split(key, 14)
    rnd = lambda kk, shp: scale * jax.random.normal(kk, shp, jnp.float32)
    ones = jnp.ones((d,), jnp.float32)
    zeros = jnp.zeros((d,), jnp.float32)
    return {
        "self_wq": rnd(ks[0], (d, d)), "self_wk": rnd(ks[1], (d, d)),
        "self_wv": rnd(ks[2], (d, d)), "self_wo": rnd(ks[3], (d, d)),
        "self_bo": rnd(ks[4], (d,)),
        "norm_g": ones, "norm_b": zeros,
        "cross_wq": rnd(ks[5], (d, d)), "cross_wk": rnd(ks[6], (d, d)),
        "cross_wv": rnd(ks[7], (d, d)), "cross_wo": rnd(ks[8], (d, d)),
        "cross_bo": rnd(ks[9], (d,)),
        "norm1_g": ones, "norm1_b": zeros,
        "ff_w1": rnd(ks[10], (f, d)), "ff_b1": rnd(ks[11], (f,)),
        "ff_w2": rnd(ks[12], (d, f)), "ff_b2": rnd(ks[13], (d,)),
        "norm2_g": ones, "norm2_b": zeros,
    }


if __name__ == "__main__":
    # Small shapes: batch=2, seq=8, d_model=32, heads=4, ff_expansion=2,
    # num_layer=2, trg_vocab_size=128 (lane-dense output head).
    N, S_DEC, S_ENC, D, HEADS, FF_EXP, NUM_LAYERS, VOCAB = 2, 8, 8, 32, 4, 2, 2, 128
    F = FF_EXP * D

    root = jax.random.PRNGKey(0)
    keys = jax.random.split(root, NUM_LAYERS + 4)

    raw_layers = [_make_raw_layer_params(keys[i], D, F) for i in range(NUM_LAYERS)]
    out_w = 0.1 * jax.random.normal(keys[NUM_LAYERS], (VOCAB, D), jnp.float32)
    out_b = 0.1 * jax.random.normal(keys[NUM_LAYERS + 1], (VOCAB,), jnp.float32)

    # Pre-computed decoder embedding and encoder output (see TODO on Embedding).
    dec_emb = jax.random.normal(keys[NUM_LAYERS + 2], (N, S_DEC, D), jnp.float32)
    enc_out = jax.random.normal(keys[NUM_LAYERS + 3], (N, S_ENC, D), jnp.float32)
    trg_mask = jnp.broadcast_to(
        jnp.tril(jnp.ones((S_DEC, S_DEC), jnp.float32))[None, None],
        (N, 1, S_DEC, S_DEC))
    src_mask = jnp.ones((N, 1, S_DEC, S_ENC), jnp.float32)

    prepared = [prepare_layer_params(p, HEADS) for p in raw_layers]
    final_w = out_w.T.astype(jnp.bfloat16)      # (D, VOCAB)
    final_b = out_b

    @jax.jit
    def run(de, eo, sm, tm_):
        return decoder_forward(de, eo, sm, tm_, prepared, final_w, final_b,
                               heads=HEADS)

    out = jax.block_until_ready(run(dec_emb, enc_out, src_mask, trg_mask))

    ref = decoder_ref(dec_emb, enc_out, src_mask, trg_mask,
                      raw_layers, out_w, out_b, HEADS)
    assert out.shape == (N, S_DEC, VOCAB)
    # bf16 MXU inputs (f32 accumulation / elementwise) -> compare at 2e-2.
    assert jnp.allclose(out, ref, atol=2e-2, rtol=2e-2), (
        "mismatch vs reference: max abs diff = "
        + str(float(jnp.max(jnp.abs(out - ref)))))
    print("KERNEL_OK")
</pallas_src>

<mosaic_0001>
module attributes {stable_mosaic.version = 11 : i64} {
  func.func @_matmul_kernel(%arg0: i32, %arg1: i32, %arg2: i32, %arg3: memref<16x32xf32, #tpu.memory_space<vmem>>, %arg4: memref<32x96xbf16, #tpu.memory_space<vmem>>, %arg5: memref<1x96xf32, #tpu.memory_space<vmem>>, %arg6: memref<16x96xbf16, #tpu.memory_space<vmem>>, %arg7: memref<16x96xf32, #tpu.memory_space<vmem>>) attributes {dimension_semantics = [#tpu.dimension_semantics<parallel>, #tpu.dimension_semantics<parallel>, #tpu.dimension_semantics<arbitrary>], iteration_bounds = array<i64: 1, 1, 1>, scalar_prefetch = 0 : i64, scratch_operands = 1 : i64, tpu.core_type = #tpu.core_type<tc>, window_params = [{transform_indices = @transform_0, window_bounds = array<i64: 16, 32>}, {transform_indices = @transform_1, window_bounds = array<i64: 32, 96>}, {transform_indices = @transform_2, window_bounds = array<i64: 1, 96>}, {transform_indices = @transform_3, window_bounds = array<i64: 16, 96>}]} {
    %c0_i32 = arith.constant 0 : i32
    %0 = arith.cmpi eq, %arg2, %c0_i32 : i32
    %1 = arith.extui %0 : i1 to i32
    %c0_i32_0 = arith.constant 0 : i32
    %2 = arith.cmpi ne, %1, %c0_i32_0 : i32
    scf.if %2 {
      %cst_10 = arith.constant 0.000000e+00 : f32
      %13 = vector.broadcast %cst_10 : f32 to vector<16x96xf32>
      %c0_11 = arith.constant 0 : index
      %c0_12 = arith.constant 0 : index
      %14 = vector.load %arg7[%c0_11, %c0_12] : memref<16x96xf32, #tpu.memory_space<vmem>>, vector<16x96xf32>
      tpu.vector_store %arg7[%c0_11, %c0_12], %13 {strides = array<i32>} : memref<16x96xf32, #tpu.memory_space<vmem>>, vector<16x96xf32>,
    } else {
    }
    %c0 = arith.constant 0 : index
    %c0_1 = arith.constant 0 : index
    %3 = vector.load %arg7[%c0, %c0_1] : memref<16x96xf32, #tpu.memory_space<vmem>>, vector<16x96xf32>
    %c0_2 = arith.constant 0 : index
    %c0_3 = arith.constant 0 : index
    %4 = vector.load %arg3[%c0_2, %c0_3] : memref<16x32xf32, #tpu.memory_space<vmem>>, vector<16x32xf32>
    %5 = arith.truncf %4 : vector<16x32xf32> to vector<16x32xbf16>
    %c0_4 = arith.constant 0 : index
    %c0_5 = arith.constant 0 : index
    %6 = vector.load %arg4[%c0_4, %c0_5] : memref<32x96xbf16, #tpu.memory_space<vmem>>, vector<32x96xbf16>
    %cst = arith.constant dense<0.000000e+00> : vector<16x96xf32>
    %7 = tpu.matmul %5, %6, %cst {dimension_numbers = #tpu.dot_dimension_numbers<[1], [0], [0], [1], [0, 0, 1, 1], [], []>} : vector<16x32xbf16>, vector<32x96xbf16>, vector<16x96xf32> -> vector<16x96xf32>
    %8 = arith.addf %3, %7 : vector<16x96xf32>
    %c0_6 = arith.constant 0 : index
    %c0_7 = arith.constant 0 : index
    %9 = vector.load %arg7[%c0_6, %c0_7] : memref<16x96xf32, #tpu.memory_space<vmem>>, vector<16x96xf32>
    tpu.vector_store %arg7[%c0_6, %c0_7], %8 {strides = array<i32>} : memref<16x96xf32, #tpu.memory_space<vmem>>, vector<16x96xf32>,
    %c0_i32_8 = arith.constant 0 : i32
    %10 = arith.cmpi eq, %arg2, %c0_i32_8 : i32
    %11 = arith.extui %10 : i1 to i32
    %c0_i32_9 = arith.constant 0 : i32
    %12 = arith.cmpi ne, %11, %c0_i32_9 : i32
    scf.if %12 {
      %c0_10 = arith.constant 0 : index
      %c0_11 = arith.constant 0 : index
      %13 = vector.load %arg7[%c0_10, %c0_11] : memref<16x96xf32, #tpu.memory_space<vmem>>, vector<16x96xf32>
      %c0_12 = arith.constant 0 : index
      %c0_13 = arith.constant 0 : index
      %14 = vector.load %arg5[%c0_12, %c0_13] : memref<1x96xf32, #tpu.memory_space<vmem>>, vector<1x96xf32>
      %15 = vector.broadcast %14 : vector<1x96xf32> to vector<16x96xf32>
      %16 = arith.addf %13, %15 : vector<16x96xf32>
      %17 = arith.truncf %16 : vector<16x96xf32> to vector<16x96xbf16>
      %c0_14 = arith.constant 0 : index
      %c0_15 = arith.constant 0 : index
      %18 = vector.load %arg6[%c0_14, %c0_15] : memref<16x96xbf16, #tpu.memory_space<vmem>>, vector<16x96xbf16>
      tpu.vector_store %arg6[%c0_14, %c0_15], %17 {strides = array<i32>} : memref<16x96xbf16, #tpu.memory_space<vmem>>, vector<16x96xbf16>,
    } else {
    }
    return
  }
  func.func @transform_0(%arg0: i32, %arg1: i32, %arg2: i32) -> (i32, i32) {
    %c0_i32 = arith.constant 0 : i32
    return %arg0, %arg2 : i32, i32
  }
  func.func @transform_1(%arg0: i32, %arg1: i32, %arg2: i32) -> (i32, i32) {
    %c0_i32 = arith.constant 0 : i32
    return %arg2, %arg1 : i32, i32
  }
  func.func @transform_2(%arg0: i32, %arg1: i32, %arg2: i32) -> (i32, i32) {
    %c0_i32 = arith.constant 0 : i32
    %c0_i32_0 = arith.constant 0 : i32
    return %c0_i32, %arg1 : i32, i32
  }
  func.func @transform_3(%arg0: i32, %arg1: i32, %arg2: i32) -> (i32, i32) {
    %c0_i32 = arith.constant 0 : i32
    return %arg0, %arg1 : i32, i32
  }
}

module attributes {stable_mosaic.version = 11 : i64} {
  func.func @_flash_mha_kernel(%arg0: i32, %arg1: i32, %arg2: i32, %arg3: memref<1x4x8x8xbf16, #tpu.memory_space<vmem>>, %arg4: memref<1x4x8x8xbf16, #tpu.memory_space<vmem>>, %arg5: memref<1x4x8x8xbf16, #tpu.memory_space<vmem>>, %arg6: memref<1x8x8xbf16, #tpu.memory_space<vmem>>, %arg7: memref<1x4x8x8xbf16, #tpu.memory_space<vmem>>, %arg8: memref<4x8x1xf32, #tpu.memory_space<vmem>>, %arg9: memref<4x8x1xf32, #tpu.memory_space<vmem>>, %arg10: memref<4x8x8xf32, #tpu.memory_space<vmem>>) attributes {dimension_semantics = [#tpu.dimension_semantics<parallel>, #tpu.dimension_semantics<parallel>, #tpu.dimension_semantics<arbitrary>], iteration_bounds = array<i64: 2, 1, 1>, scalar_prefetch = 0 : i64, scratch_operands = 3 : i64, tpu.core_type = #tpu.core_type<tc>, window_params = [{transform_indices = @transform_0, window_bounds = array<i64: 1, 4, 8, 8>}, {transform_indices = @transform_1, window_bounds = array<i64: 1, 4, 8, 8>}, {transform_indices = @transform_2, window_bounds = array<i64: 1, 4, 8, 8>}, {transform_indices = @transform_3, window_bounds = array<i64: 1, 8, 8>}, {transform_indices = @transform_4, window_bounds = array<i64: 1, 4, 8, 8>}]} {
    %c0_i32 = arith.constant 0 : i32
    %0 = arith.cmpi eq, %arg2, %c0_i32 : i32
    %1 = arith.extui %0 : i1 to i32
    %c0_i32_0 = arith.constant 0 : i32
    %2 = arith.cmpi ne, %1, %c0_i32_0 : i32
    scf.if %2 {
      %cst_38 = arith.constant 0xFF800000 : f32
      %42 = vector.broadcast %cst_38 : f32 to vector<4x8x1xf32>
      %c0_39 = arith.constant 0 : index
      %c0_40 = arith.constant 0 : index
      %c0_41 = arith.constant 0 : index
      %43 = vector.load %arg8[%c0_39, %c0_40, %c0_41] : memref<4x8x1xf32, #tpu.memory_space<vmem>>, vector<4x8x1xf32>
      tpu.vector_store %arg8[%c0_39, %c0_40, %c0_41], %42 {strides = array<i32>} : memref<4x8x1xf32, #tpu.memory_space<vmem>>, vector<4x8x1xf32>,
      %cst_42 = arith.constant 0.000000e+00 : f32
      %44 = vector.broadcast %cst_42 : f32 to vector<4x8x1xf32>
      %c0_43 = arith.constant 0 : index
      %c0_44 = arith.constant 0 : index
      %c0_45 = arith.constant 0 : index
      %45 = vector.load %arg9[%c0_43, %c0_44, %c0_45] : memref<4x8x1xf32, #tpu.memory_space<vmem>>, vector<4x8x1xf32>
      tpu.vector_store %arg9[%c0_43, %c0_44, %c0_45], %44 {strides = array<i32>} : memref<4x8x1xf32, #tpu.memory_space<vmem>>, vector<4x8x1xf32>,
      %cst_46 = arith.constant 0.000000e+00 : f32
      %46 = vector.broadcast %cst_46 : f32 to vector<4x8x8xf32>
      %c0_47 = arith.constant 0 : index
      %c0_48 = arith.constant 0 : index
      %c0_49 = arith.constant 0 : index
      %47 = vector.load %arg10[%c0_47, %c0_48, %c0_49] : memref<4x8x8xf32, #tpu.memory_space<vmem>>, vector<4x8x8xf32>
      tpu.vector_store %arg10[%c0_47, %c0_48, %c0_49], %46 {strides = array<i32>} : memref<4x8x8xf32, #tpu.memory_space<vmem>>, vector<4x8x8xf32>,
    } else {
    }
    %c0 = arith.constant 0 : index
    %c0_1 = arith.constant 0 : index
    %c0_2 = arith.constant 0 : index
    %c0_3 = arith.constant 0 : index
    %3 = vector.load %arg3[%c0, %c0_1, %c0_2, %c0_3] : memref<1x4x8x8xbf16, #tpu.memory_space<vmem>>, vector<1x4x8x8xbf16>
    %4 = vector.shape_cast %3 : vector<1x4x8x8xbf16> to vector<4x8x8xbf16>
    %c0_4 = arith.constant 0 : index
    %c0_5 = arith.constant 0 : index
    %c0_6 = arith.constant 0 : index
    %c0_7 = arith.constant 0 : index
    %5 = vector.load %arg4[%c0_4, %c0_5, %c0_6, %c0_7] : memref<1x4x8x8xbf16, #tpu.memory_space<vmem>>, vector<1x4x8x8xbf16>
    %6 = vector.shape_cast %5 : vector<1x4x8x8xbf16> to vector<4x8x8xbf16>
    %c0_8 = arith.constant 0 : index
    %c0_9 = arith.constant 0 : index
    %c0_10 = arith.constant 0 : index
    %c0_11 = arith.constant 0 : index
    %7 = vector.load %arg5[%c0_8, %c0_9, %c0_10, %c0_11] : memref<1x4x8x8xbf16, #tpu.memory_space<vmem>>, vector<1x4x8x8xbf16>
    %8 = vector.shape_cast %7 : vector<1x4x8x8xbf16> to vector<4x8x8xbf16>
    "tpu.trace_start"() <{level = 10 : i32, message = "hqd,hkd->hqk"}> : () -> ()
    %cst = arith.constant dense<0.000000e+00> : vector<4x8x8xf32>
    %9 = tpu.matmul %4, %6, %cst {dimension_numbers = #tpu.dot_dimension_numbers<[2], [2], [1], [1], [0, 0, 0, 1, 1, 1], [0], [0]>} : vector<4x8x8xbf16>, vector<4x8x8xbf16>, vector<4x8x8xf32> -> vector<4x8x8xf32>
    "tpu.trace_stop"() : () -> ()
    %c0_12 = arith.constant 0 : index
    %c0_13 = arith.constant 0 : index
    %c0_14 = arith.constant 0 : index
    %10 = vector.load %arg6[%c0_12, %c0_13, %c0_14] : memref<1x8x8xbf16, #tpu.memory_space<vmem>>, vector<1x8x8xbf16>
    %11 = vector.shape_cast %10 : vector<1x8x8xbf16> to vector<8x8xbf16>
    %12 = arith.extf %11 : vector<8x8xbf16> to vector<8x8xf32>
    %13 = vector.shape_cast %12 : vector<8x8xf32> to vector<1x8x8xf32>
    %14 = vector.broadcast %13 : vector<1x8x8xf32> to vector<4x8x8xf32>
    %15 = arith.addf %9, %14 : vector<4x8x8xf32>
    %c0_15 = arith.constant 0 : index
    %c0_16 = arith.constant 0 : index
    %c0_17 = arith.constant 0 : index
    %16 = vector.load %arg8[%c0_15, %c0_16, %c0_17] : memref<4x8x1xf32, #tpu.memory_space<vmem>>, vector<4x8x1xf32>
    %cst_18 = arith.constant dense<0xFF800000> : vector<4x8xf32>
    %17 = vector.multi_reduction <maximumf>, %15, %cst_18 [2] : vector<4x8x8xf32> to vector<4x8xf32>
    %18 = vector.shape_cast %17 : vector<4x8xf32> to vector<4x8x1xf32>
    %19 = arith.maximumf %16, %18 : vector<4x8x1xf32>
    %20 = arith.subf %16, %19 : vector<4x8x1xf32>
    %21 = math.exp %20 : vector<4x8x1xf32>
    %22 = vector.broadcast %19 : vector<4x8x1xf32> to vector<4x8x8xf32>
    %23 = arith.subf %15, %22 : vector<4x8x8xf32>
    %24 = math.exp %23 : vector<4x8x8xf32>
    %c0_19 = arith.constant 0 : index
    %c0_20 = arith.constant 0 : index
    %c0_21 = arith.constant 0 : index
    %25 = vector.load %arg9[%c0_19, %c0_20, %c0_21] : memref<4x8x1xf32, #tpu.memory_space<vmem>>, vector<4x8x1xf32>
    %26 = arith.mulf %21, %25 : vector<4x8x1xf32>
    %cst_22 = arith.constant dense<0.000000e+00> : vector<4x8xf32>
    %27 = vector.multi_reduction <add>, %24, %cst_22 [2] : vector<4x8x8xf32> to vector<4x8xf32>
    %28 = vector.shape_cast %27 : vector<4x8xf32> to vector<4x8x1xf32>
    %29 = arith.addf %26, %28 : vector<4x8x1xf32>
    %c0_23 = arith.constant 0 : index
    %c0_24 = arith.constant 0 : index
    %c0_25 = arith.constant 0 : index
    %30 = vector.load %arg9[%c0_23, %c0_24, %c0_25] : memref<4x8x1xf32, #tpu.memory_space<vmem>>, vector<4x8x1xf32>
    tpu.vector_store %arg9[%c0_23, %c0_24, %c0_25], %29 {strides = array<i32>} : memref<4x8x1xf32, #tpu.memory_space<vmem>>, vector<4x8x1xf32>,
    %c0_26 = arith.constant 0 : index
    %c0_27 = arith.constant 0 : index
    %c0_28 = arith.constant 0 : index
    %31 = vector.load %arg10[%c0_26, %c0_27, %c0_28] : memref<4x8x8xf32, #tpu.memory_space<vmem>>, vector<4x8x8xf32>
    %32 = vector.broadcast %21 : vector<4x8x1xf32> to vector<4x8x8xf32>
    %33 = arith.mulf %32, %31 : vector<4x8x8xf32>
    %34 = arith.truncf %24 : vector<4x8x8xf32> to vector<4x8x8xbf16>
    "tpu.trace_start"() <{level = 10 : i32, message = "hqk,hkd->hqd"}> : () -> ()
    %cst_29 = arith.constant dense<0.000000e+00> : vector<4x8x8xf32>
    %35 = tpu.matmul %34, %8, %cst_29 {dimension_numbers = #tpu.dot_dimension_numbers<[2], [1], [1], [2], [0, 0, 0, 1, 1, 2], [0], [0]>} : vector<4x8x8xbf16>, vector<4x8x8xbf16>, vector<4x8x8xf32> -> vector<4x8x8xf32>
    "tpu.trace_stop"() : () -> ()
    %36 = arith.addf %33, %35 : vector<4x8x8xf32>
    %c0_30 = arith.constant 0 : index
    %c0_31 = arith.constant 0 : index
    %c0_32 = arith.constant 0 : index
    %37 = vector.load %arg10[%c0_30, %c0_31, %c0_32] : memref<4x8x8xf32, #tpu.memory_space<vmem>>, vector<4x8x8xf32>
    tpu.vector_store %arg10[%c0_30, %c0_31, %c0_32], %36 {strides = array<i32>} : memref<4x8x8xf32, #tpu.memory_space<vmem>>, vector<4x8x8xf32>,
    %c0_33 = arith.constant 0 : index
    %c0_34 = arith.constant 0 : index
    %c0_35 = arith.constant 0 : index
    %38 = vector.load %arg8[%c0_33, %c0_34, %c0_35] : memref<4x8x1xf32, #tpu.memory_space<vmem>>, vector<4x8x1xf32>
    tpu.vector_store %arg8[%c0_33, %c0_34, %c0_35], %19 {strides = array<i32>} : memref<4x8x1xf32, #tpu.memory_space<vmem>>, vector<4x8x1xf32>,
    %c0_i32_36 = arith.constant 0 : i32
    %39 = arith.cmpi eq, %arg2, %c0_i32_36 : i32
    %40 = arith.extui %39 : i1 to i32
    %c0_i32_37 = arith.constant 0 : i32
    %41 = arith.cmpi ne, %40, %c0_i32_37 : i32
    scf.if %41 {
      %c0_38 = arith.constant 0 : index
      %c0_39 = arith.constant 0 : index
      %c0_40 = arith.constant 0 : index
      %42 = vector.load %arg10[%c0_38, %c0_39, %c0_40] : memref<4x8x8xf32, #tpu.memory_space<vmem>>, vector<4x8x8xf32>
      %c0_41 = arith.constant 0 : index
      %c0_42 = arith.constant 0 : index
      %c0_43 = arith.constant 0 : index
      %43 = vector.load %arg9[%c0_41, %c0_42, %c0_43] : memref<4x8x1xf32, #tpu.memory_space<vmem>>, vector<4x8x1xf32>
      %44 = tpu.reciprocal %43 {approx = true} : vector<4x8x1xf32> -> vector<4x8x1xf32>
      %45 = vector.broadcast %44 : vector<4x8x1xf32> to vector<4x8x8xf32>
      %46 = arith.mulf %42, %45 : vector<4x8x8xf32>
      %47 = arith.truncf %46 : vector<4x8x8xf32> to vector<4x8x8xbf16>
      %c0_44 = arith.constant 0 : index
      %c0_45 = arith.constant 0 : index
      %c0_46 = arith.constant 0 : index
      %c0_47 = arith.constant 0 : index
      %48 = vector.load %arg7[%c0_44, %c0_45, %c0_46, %c0_47] : memref<1x4x8x8xbf16, #tpu.memory_space<vmem>>, vector<1x4x8x8xbf16>
      %49 = vector.shape_cast %48 : vector<1x4x8x8xbf16> to vector<4x8x8xbf16>
      %50 = vector.shape_cast %47 : vector<4x8x8xbf16> to vector<1x4x8x8xbf16>
      tpu.vector_store %arg7[%c0_44, %c0_45, %c0_46, %c0_47], %50 {strides = array<i32>} : memref<1x4x8x8xbf16, #tpu.memory_space<vmem>>, vector<1x4x8x8xbf16>,
    } else {
    }
    return
  }
  func.func @transform_0(%arg0: i32, %arg1: i32, %arg2: i32) -> (i32, i32, i32, i32) {
    %c0_i32 = arith.constant 0 : i32
    %c0_i32_0 = arith.constant 0 : i32
    %c0_i32_1 = arith.constant 0 : i32
    return %arg0, %c0_i32, %arg1, %c0_i32_0 : i32, i32, i32, i32
  }
  func.func @transform_1(%arg0: i32, %arg1: i32, %arg2: i32) -> (i32, i32, i32, i32) {
    %c0_i32 = arith.constant 0 : i32
    %c0_i32_0 = arith.constant 0 : i32
    %c0_i32_1 = arith.constant 0 : i32
    return %arg0, %c0_i32, %arg2, %c0_i32_0 : i32, i32, i32, i32
  }
  func.func @transform_2(%arg0: i32, %arg1: i32, %arg2: i32) -> (i32, i32, i32, i32) {
    %c0_i32 = arith.constant 0 : i32
    %c0_i32_0 = arith.constant 0 : i32
    %c0_i32_1 = arith.constant 0 : i32
    return %arg0, %c0_i32, %arg2, %c0_i32_0 : i32, i32, i32, i32
  }
  func.func @transform_3(%arg0: i32, %arg1: i32, %arg2: i32) -> (i32, i32, i32) {
    %c0_i32 = arith.constant 0 : i32
    return %arg0, %arg1, %arg2 : i32, i32, i32
  }
  func.func @transform_4(%arg0: i32, %arg1: i32, %arg2: i32) -> (i32, i32, i32, i32) {
    %c0_i32 = arith.constant 0 : i32
    %c0_i32_0 = arith.constant 0 : i32
    %c0_i32_1 = arith.constant 0 : i32
    return %arg0, %c0_i32, %arg1, %c0_i32_0 : i32, i32, i32, i32
  }
}

module attributes {stable_mosaic.version = 11 : i64} {
  func.func @_matmul_kernel(%arg0: i32, %arg1: i32, %arg2: i32, %arg3: memref<16x32xbf16, #tpu.memory_space<vmem>>, %arg4: memref<32x32xbf16, #tpu.memory_space<vmem>>, %arg5: memref<1x32xf32, #tpu.memory_space<vmem>>, %arg6: memref<16x32xf32, #tpu.memory_space<vmem>>, %arg7: memref<1x32xf32, #tpu.memory_space<vmem>>, %arg8: memref<1x32xf32, #tpu.memory_space<vmem>>, %arg9: memref<16x32xf32, #tpu.memory_space<vmem>>) attributes {dimension_semantics = [#tpu.dimension_semantics<parallel>, #tpu.dimension_semantics<parallel>, #tpu.dimension_semantics<arbitrary>], iteration_bounds = array<i64: 1, 1, 1>, scalar_prefetch = 0 : i64, scratch_operands = 0 : i64, tpu.core_type = #tpu.core_type<tc>, window_params = [{transform_indices = @transform_0, window_bounds = array<i64: 16, 32>}, {transform_indices = @transform_1, window_bounds = array<i64: 32, 32>}, {transform_indices = @transform_2, window_bounds = array<i64: 1, 32>}, {transform_indices = @transform_3, window_bounds = array<i64: 16, 32>}, {transform_indices = @transform_4, window_bounds = array<i64: 1, 32>}, {transform_indices = @transform_5, window_bounds = array<i64: 1, 32>}, {transform_indices = @transform_6, window_bounds = array<i64: 16, 32>}]} {
    %c0_i32 = arith.constant 0 : i32
    %0 = arith.cmpi eq, %arg2, %c0_i32 : i32
    %1 = arith.extui %0 : i1 to i32
    %c0_i32_0 = arith.constant 0 : i32
    %2 = arith.cmpi ne, %1, %c0_i32_0 : i32
    scf.if %2 {
      %cst_10 = arith.constant 0.000000e+00 : f32
      %12 = vector.broadcast %cst_10 : f32 to vector<16x32xf32>
      %c0_11 = arith.constant 0 : index
      %c0_12 = arith.constant 0 : index
      %13 = vector.load %arg9[%c0_11, %c0_12] : memref<16x32xf32, #tpu.memory_space<vmem>>, vector<16x32xf32>
      tpu.vector_store %arg9[%c0_11, %c0_12], %12 {strides = array<i32>} : memref<16x32xf32, #tpu.memory_space<vmem>>, vector<16x32xf32>,
    } else {
    }
    %c0 = arith.constant 0 : index
    %c0_1 = arith.constant 0 : index
    %3 = vector.load %arg9[%c0, %c0_1] : memref<16x32xf32, #tpu.memory_space<vmem>>, vector<16x32xf32>
    %c0_2 = arith.constant 0 : index
    %c0_3 = arith.constant 0 : index
    %4 = vector.load %arg3[%c0_2, %c0_3] : memref<16x32xbf16, #tpu.memory_space<vmem>>, vector<16x32xbf16>
    %c0_4 = arith.constant 0 : index
    %c0_5 = arith.constant 0 : index
    %5 = vector.load %arg4[%c0_4, %c0_5] : memref<32x32xbf16, #tpu.memory_space<vmem>>, vector<32x32xbf16>
    %cst = arith.constant dense<0.000000e+00> : vector<16x32xf32>
    %6 = tpu.matmul %4, %5, %cst {dimension_numbers = #tpu.dot_dimension_numbers<[1], [0], [0], [1], [0, 0, 1, 1], [], []>} : vector<16x32xbf16>, vector<32x32xbf16>, vector<16x32xf32> -> vector<16x32xf32>
    %7 = arith.addf %3, %6 : vector<16x32xf32>
    %c0_6 = arith.constant 0 : index
    %c0_7 = arith.constant 0 : index
    %8 = vector.load %arg9[%c0_6, %c0_7] : memref<16x32xf32, #tpu.memory_space<vmem>>, vector<16x32xf32>
    tpu.vector_store %arg9[%c0_6, %c0_7], %7 {strides = array<i32>} : memref<16x32xf32, #tpu.memory_space<vmem>>, vector<16x32xf32>,
    %c0_i32_8 = arith.constant 0 : i32
    %9 = arith.cmpi eq, %arg2, %c0_i32_8 : i32
    %10 = arith.extui %9 : i1 to i32
    %c0_i32_9 = arith.constant 0 : i32
    %11 = arith.cmpi ne, %10, %c0_i32_9 : i32
    scf.if %11 {
      %c0_10 = arith.constant 0 : index
      %c0_11 = arith.constant 0 : index
      %12 = vector.load %arg9[%c0_10, %c0_11] : memref<16x32xf32, #tpu.memory_space<vmem>>, vector<16x32xf32>
      %c0_12 = arith.constant 0 : index
      %c0_13 = arith.constant 0 : index
      %13 = vector.load %arg5[%c0_12, %c0_13] : memref<1x32xf32, #tpu.memory_space<vmem>>, vector<1x32xf32>
      %14 = vector.broadcast %13 : vector<1x32xf32> to vector<16x32xf32>
      %15 = arith.addf %12, %14 : vector<16x32xf32>
      %c0_14 = arith.constant 0 : index
      %c0_15 = arith.constant 0 : index
      %16 = vector.load %arg6[%c0_14, %c0_15] : memref<16x32xf32, #tpu.memory_space<vmem>>, vector<16x32xf32>
      %17 = arith.addf %15, %16 : vector<16x32xf32>
      %cst_16 = arith.constant dense<0.000000e+00> : vector<16xf32>
      %18 = vector.multi_reduction <add>, %17, %cst_16 [1] : vector<16x32xf32> to vector<16xf32>
      %19 = vector.shape_cast %18 : vector<16xf32> to vector<16x1xf32>
      %cst_17 = arith.constant 3.200000e+01 : f32
      %20 = vector.broadcast %cst_17 : f32 to vector<16x1xf32>
      %21 = arith.divf %19, %20 : vector<16x1xf32>
      %22 = vector.broadcast %21 : vector<16x1xf32> to vector<16x32xf32>
      %23 = arith.subf %17, %22 : vector<16x32xf32>
      %24 = arith.mulf %23, %23 : vector<16x32xf32>
      %cst_18 = arith.constant dense<0.000000e+00> : vector<16xf32>
      %25 = vector.multi_reduction <add>, %24, %cst_18 [1] : vector<16x32xf32> to vector<16xf32>
      %26 = vector.shape_cast %25 : vector<16xf32> to vector<16x1xf32>
      %cst_19 = arith.constant 3.200000e+01 : f32
      %27 = vector.broadcast %cst_19 : f32 to vector<16x1xf32>
      %28 = arith.divf %26, %27 : vector<16x1xf32>
      %29 = vector.broadcast %21 : vector<16x1xf32> to vector<16x32xf32>
      %30 = arith.subf %17, %29 : vector<16x32xf32>
      %cst_20 = arith.constant 9.99999974E-6 : f32
      %31 = vector.broadcast %cst_20 : f32 to vector<16x1xf32>
      %32 = arith.addf %28, %31 : vector<16x1xf32>
      %33 = math.rsqrt %32 : vector<16x1xf32>
      %34 = vector.broadcast %33 : vector<16x1xf32> to vector<16x32xf32>
      %35 = arith.mulf %30, %34 : vector<16x32xf32>
      %c0_21 = arith.constant 0 : index
      %c0_22 = arith.constant 0 : index
      %36 = vector.load %arg7[%c0_21, %c0_22] : memref<1x32xf32, #tpu.memory_space<vmem>>, vector<1x32xf32>
      %37 = vector.broadcast %36 : vector<1x32xf32> to vector<16x32xf32>
      %38 = arith.mulf %35, %37 : vector<16x32xf32>
      %c0_23 = arith.constant 0 : index
      %c0_24 = arith.constant 0 : index
      %39 = vector.load %arg8[%c0_23, %c0_24] : memref<1x32xf32, #tpu.memory_space<vmem>>, vector<1x32xf32>
      %40 = vector.broadcast %39 : vector<1x32xf32> to vector<16x32xf32>
      %41 = arith.addf %38, %40 : vector<16x32xf32>
      %c0_25 = arith.constant 0 : index
      %c0_26 = arith.constant 0 : index
      %42 = vector.load %arg9[%c0_25, %c0_26] : memref<16x32xf32, #tpu.memory_space<vmem>>, vector<16x32xf32>
      tpu.vector_store %arg9[%c0_25, %c0_26], %41 {strides = array<i32>} : memref<16x32xf32, #tpu.memory_space<vmem>>, vector<16x32xf32>,
    } else {
    }
    return
  }
  func.func @transform_0(%arg0: i32, %arg1: i32, %arg2: i32) -> (i32, i32) {
    %c0_i32 = arith.constant 0 : i32
    return %arg0, %arg2 : i32, i32
  }
  func.func @transform_1(%arg0: i32, %arg1: i32, %arg2: i32) -> (i32, i32) {
    %c0_i32 = arith.constant 0 : i32
    return %arg2, %arg1 : i32, i32
  }
  func.func @transform_2(%arg0: i32, %arg1: i32, %arg2: i32) -> (i32, i32) {
    %c0_i32 = arith.constant 0 : i32
    %c0_i32_0 = arith.constant 0 : i32
    return %c0_i32, %arg1 : i32, i32
  }
  func.func @transform_3(%arg0: i32, %arg1: i32, %arg2: i32) -> (i32, i32) {
    %c0_i32 = arith.constant 0 : i32
    return %arg0, %arg1 : i32, i32
  }
  func.func @transform_4(%arg0: i32, %arg1: i32, %arg2: i32) -> (i32, i32) {
    %c0_i32 = arith.constant 0 : i32
    %c0_i32_0 = arith.constant 0 : i32
    return %c0_i32, %arg1 : i32, i32
  }
  func.func @transform_5(%arg0: i32, %arg1: i32, %arg2: i32) -> (i32, i32) {
    %c0_i32 = arith.constant 0 : i32
    %c0_i32_0 = arith.constant 0 : i32
    return %c0_i32, %arg1 : i32, i32
  }
  func.func @transform_6(%arg0: i32, %arg1: i32, %arg2: i32) -> (i32, i32) {
    %c0_i32 = arith.constant 0 : i32
    return %arg0, %arg1 : i32, i32
  }
}

module attributes {stable_mosaic.version = 11 : i64} {
  func.func @_matmul_kernel(%arg0: i32, %arg1: i32, %arg2: i32, %arg3: memref<16x32xf32, #tpu.memory_space<vmem>>, %arg4: memref<32x32xbf16, #tpu.memory_space<vmem>>, %arg5: memref<1x32xf32, #tpu.memory_space<vmem>>, %arg6: memref<16x32xbf16, #tpu.memory_space<vmem>>, %arg7: memref<16x32xf32, #tpu.memory_space<vmem>>) attributes {dimension_semantics = [#tpu.dimension_semantics<parallel>, #tpu.dimension_semantics<parallel>, #tpu.dimension_semantics<arbitrary>], iteration_bounds = array<i64: 1, 1, 1>, scalar_prefetch = 0 : i64, scratch_operands = 1 : i64, tpu.core_type = #tpu.core_type<tc>, window_params = [{transform_indices = @transform_0, window_bounds = array<i64: 16, 32>}, {transform_indices = @transform_1, window_bounds = array<i64: 32, 32>}, {transform_indices = @transform_2, window_bounds = array<i64: 1, 32>}, {transform_indices = @transform_3, window_bounds = array<i64: 16, 32>}]} {
    %c0_i32 = arith.constant 0 : i32
    %0 = arith.cmpi eq, %arg2, %c0_i32 : i32
    %1 = arith.extui %0 : i1 to i32
    %c0_i32_0 = arith.constant 0 : i32
    %2 = arith.cmpi ne, %1, %c0_i32_0 : i32
    scf.if %2 {
      %cst_10 = arith.constant 0.000000e+00 : f32
      %13 = vector.broadcast %cst_10 : f32 to vector<16x32xf32>
      %c0_11 = arith.constant 0 : index
      %c0_12 = arith.constant 0 : index
      %14 = vector.load %arg7[%c0_11, %c0_12] : memref<16x32xf32, #tpu.memory_space<vmem>>, vector<16x32xf32>
      tpu.vector_store %arg7[%c0_11, %c0_12], %13 {strides = array<i32>} : memref<16x32xf32, #tpu.memory_space<vmem>>, vector<16x32xf32>,
    } else {
    }
    %c0 = arith.constant 0 : index
    %c0_1 = arith.constant 0 : index
    %3 = vector.load %arg7[%c0, %c0_1] : memref<16x32xf32, #tpu.memory_space<vmem>>, vector<16x32xf32>
    %c0_2 = arith.constant 0 : index
    %c0_3 = arith.constant 0 : index
    %4 = vector.load %arg3[%c0_2, %c0_3] : memref<16x32xf32, #tpu.memory_space<vmem>>, vector<16x32xf32>
    %5 = arith.truncf %4 : vector<16x32xf32> to vector<16x32xbf16>
    %c0_4 = arith.constant 0 : index
    %c0_5 = arith.constant 0 : index
    %6 = vector.load %arg4[%c0_4, %c0_5] : memref<32x32xbf16, #tpu.memory_space<vmem>>, vector<32x32xbf16>
    %cst = arith.constant dense<0.000000e+00> : vector<16x32xf32>
    %7 = tpu.matmul %5, %6, %cst {dimension_numbers = #tpu.dot_dimension_numbers<[1], [0], [0], [1], [0, 0, 1, 1], [], []>} : vector<16x32xbf16>, vector<32x32xbf16>, vector<16x32xf32> -> vector<16x32xf32>
    %8 = arith.addf %3, %7 : vector<16x32xf32>
    %c0_6 = arith.constant 0 : index
    %c0_7 = arith.constant 0 : index
    %9 = vector.load %arg7[%c0_6, %c0_7] : memref<16x32xf32, #tpu.memory_space<vmem>>, vector<16x32xf32>
    tpu.vector_store %arg7[%c0_6, %c0_7], %8 {strides = array<i32>} : memref<16x32xf32, #tpu.memory_space<vmem>>, vector<16x32xf32>,
    %c0_i32_8 = arith.constant 0 : i32
    %10 = arith.cmpi eq, %arg2, %c0_i32_8 : i32
    %11 = arith.extui %10 : i1 to i32
    %c0_i32_9 = arith.constant 0 : i32
    %12 = arith.cmpi ne, %11, %c0_i32_9 : i32
    scf.if %12 {
      %c0_10 = arith.constant 0 : index
      %c0_11 = arith.constant 0 : index
      %13 = vector.load %arg7[%c0_10, %c0_11] : memref<16x32xf32, #tpu.memory_space<vmem>>, vector<16x32xf32>
      %c0_12 = arith.constant 0 : index
      %c0_13 = arith.constant 0 : index
      %14 = vector.load %arg5[%c0_12, %c0_13] : memref<1x32xf32, #tpu.memory_space<vmem>>, vector<1x32xf32>
      %15 = vector.broadcast %14 : vector<1x32xf32> to vector<16x32xf32>
      %16 = arith.addf %13, %15 : vector<16x32xf32>
      %17 = arith.truncf %16 : vector<16x32xf32> to vector<16x32xbf16>
      %c0_14 = arith.constant 0 : index
      %c0_15 = arith.constant 0 : index
      %18 = vector.load %arg6[%c0_14, %c0_15] : memref<16x32xbf16, #tpu.memory_space<vmem>>, vector<16x32xbf16>
      tpu.vector_store %arg6[%c0_14, %c0_15], %17 {strides = array<i32>} : memref<16x32xbf16, #tpu.memory_space<vmem>>, vector<16x32xbf16>,
    } else {
    }
    return
  }
  func.func @transform_0(%arg0: i32, %arg1: i32, %arg2: i32) -> (i32, i32) {
    %c0_i32 = arith.constant 0 : i32
    return %arg0, %arg2 : i32, i32
  }
  func.func @transform_1(%arg0: i32, %arg1: i32, %arg2: i32) -> (i32, i32) {
    %c0_i32 = arith.constant 0 : i32
    return %arg2, %arg1 : i32, i32
  }
  func.func @transform_2(%arg0: i32, %arg1: i32, %arg2: i32) -> (i32, i32) {
    %c0_i32 = arith.constant 0 : i32
    %c0_i32_0 = arith.constant 0 : i32
    return %c0_i32, %arg1 : i32, i32
  }
  func.func @transform_3(%arg0: i32, %arg1: i32, %arg2: i32) -> (i32, i32) {
    %c0_i32 = arith.constant 0 : i32
    return %arg0, %arg1 : i32, i32
  }
}

module attributes {stable_mosaic.version = 11 : i64} {
  func.func @_matmul_kernel(%arg0: i32, %arg1: i32, %arg2: i32, %arg3: memref<16x32xf32, #tpu.memory_space<vmem>>, %arg4: memref<32x64xbf16, #tpu.memory_space<vmem>>, %arg5: memref<1x64xf32, #tpu.memory_space<vmem>>, %arg6: memref<16x64xbf16, #tpu.memory_space<vmem>>, %arg7: memref<16x64xf32, #tpu.memory_space<vmem>>) attributes {dimension_semantics = [#tpu.dimension_semantics<parallel>, #tpu.dimension_semantics<parallel>, #tpu.dimension_semantics<arbitrary>], iteration_bounds = array<i64: 1, 1, 1>, scalar_prefetch = 0 : i64, scratch_operands = 1 : i64, tpu.core_type = #tpu.core_type<tc>, window_params = [{transform_indices = @transform_0, window_bounds = array<i64: 16, 32>}, {transform_indices = @transform_1, window_bounds = array<i64: 32, 64>}, {transform_indices = @transform_2, window_bounds = array<i64: 1, 64>}, {transform_indices = @transform_3, window_bounds = array<i64: 16, 64>}]} {
    %c0_i32 = arith.constant 0 : i32
    %0 = arith.cmpi eq, %arg2, %c0_i32 : i32
    %1 = arith.extui %0 : i1 to i32
    %c0_i32_0 = arith.constant 0 : i32
    %2 = arith.cmpi ne, %1, %c0_i32_0 : i32
    scf.if %2 {
      %cst_10 = arith.constant 0.000000e+00 : f32
      %13 = vector.broadcast %cst_10 : f32 to vector<16x64xf32>
      %c0_11 = arith.constant 0 : index
      %c0_12 = arith.constant 0 : index
      %14 = vector.load %arg7[%c0_11, %c0_12] : memref<16x64xf32, #tpu.memory_space<vmem>>, vector<16x64xf32>
      tpu.vector_store %arg7[%c0_11, %c0_12], %13 {strides = array<i32>} : memref<16x64xf32, #tpu.memory_space<vmem>>, vector<16x64xf32>,
    } else {
    }
    %c0 = arith.constant 0 : index
    %c0_1 = arith.constant 0 : index
    %3 = vector.load %arg7[%c0, %c0_1] : memref<16x64xf32, #tpu.memory_space<vmem>>, vector<16x64xf32>
    %c0_2 = arith.constant 0 : index
    %c0_3 = arith.constant 0 : index
    %4 = vector.load %arg3[%c0_2, %c0_3] : memref<16x32xf32, #tpu.memory_space<vmem>>, vector<16x32xf32>
    %5 = arith.truncf %4 : vector<16x32xf32> to vector<16x32xbf16>
    %c0_4 = arith.constant 0 : index
    %c0_5 = arith.constant 0 : index
    %6 = vector.load %arg4[%c0_4, %c0_5] : memref<32x64xbf16, #tpu.memory_space<vmem>>, vector<32x64xbf16>
    %cst = arith.constant dense<0.000000e+00> : vector<16x64xf32>
    %7 = tpu.matmul %5, %6, %cst {dimension_numbers = #tpu.dot_dimension_numbers<[1], [0], [0], [1], [0, 0, 1, 1], [], []>} : vector<16x32xbf16>, vector<32x64xbf16>, vector<16x64xf32> -> vector<16x64xf32>
    %8 = arith.addf %3, %7 : vector<16x64xf32>
    %c0_6 = arith.constant 0 : index
    %c0_7 = arith.constant 0 : index
    %9 = vector.load %arg7[%c0_6, %c0_7] : memref<16x64xf32, #tpu.memory_space<vmem>>, vector<16x64xf32>
    tpu.vector_store %arg7[%c0_6, %c0_7], %8 {strides = array<i32>} : memref<16x64xf32, #tpu.memory_space<vmem>>, vector<16x64xf32>,
    %c0_i32_8 = arith.constant 0 : i32
    %10 = arith.cmpi eq, %arg2, %c0_i32_8 : i32
    %11 = arith.extui %10 : i1 to i32
    %c0_i32_9 = arith.constant 0 : i32
    %12 = arith.cmpi ne, %11, %c0_i32_9 : i32
    scf.if %12 {
      %c0_10 = arith.constant 0 : index
      %c0_11 = arith.constant 0 : index
      %13 = vector.load %arg7[%c0_10, %c0_11] : memref<16x64xf32, #tpu.memory_space<vmem>>, vector<16x64xf32>
      %c0_12 = arith.constant 0 : index
      %c0_13 = arith.constant 0 : index
      %14 = vector.load %arg5[%c0_12, %c0_13] : memref<1x64xf32, #tpu.memory_space<vmem>>, vector<1x64xf32>
      %15 = vector.broadcast %14 : vector<1x64xf32> to vector<16x64xf32>
      %16 = arith.addf %13, %15 : vector<16x64xf32>
      %17 = arith.truncf %16 : vector<16x64xf32> to vector<16x64xbf16>
      %c0_14 = arith.constant 0 : index
      %c0_15 = arith.constant 0 : index
      %18 = vector.load %arg6[%c0_14, %c0_15] : memref<16x64xbf16, #tpu.memory_space<vmem>>, vector<16x64xbf16>
      tpu.vector_store %arg6[%c0_14, %c0_15], %17 {strides = array<i32>} : memref<16x64xbf16, #tpu.memory_space<vmem>>, vector<16x64xbf16>,
    } else {
    }
    return
  }
  func.func @transform_0(%arg0: i32, %arg1: i32, %arg2: i32) -> (i32, i32) {
    %c0_i32 = arith.constant 0 : i32
    return %arg0, %arg2 : i32, i32
  }
  func.func @transform_1(%arg0: i32, %arg1: i32, %arg2: i32) -> (i32, i32) {
    %c0_i32 = arith.constant 0 : i32
    return %arg2, %arg1 : i32, i32
  }
  func.func @transform_2(%arg0: i32, %arg1: i32, %arg2: i32) -> (i32, i32) {
    %c0_i32 = arith.constant 0 : i32
    %c0_i32_0 = arith.constant 0 : i32
    return %c0_i32, %arg1 : i32, i32
  }
  func.func @transform_3(%arg0: i32, %arg1: i32, %arg2: i32) -> (i32, i32) {
    %c0_i32 = arith.constant 0 : i32
    return %arg0, %arg1 : i32, i32
  }
}

module attributes {stable_mosaic.version = 11 : i64} {
  func.func @_matmul_kernel(%arg0: i32, %arg1: i32, %arg2: i32, %arg3: memref<16x64xbf16, #tpu.memory_space<vmem>>, %arg4: memref<64x32xbf16, #tpu.memory_space<vmem>>, %arg5: memref<1x32xf32, #tpu.memory_space<vmem>>, %arg6: memref<16x32xf32, #tpu.memory_space<vmem>>, %arg7: memref<1x32xf32, #tpu.memory_space<vmem>>, %arg8: memref<1x32xf32, #tpu.memory_space<vmem>>, %arg9: memref<16x32xf32, #tpu.memory_space<vmem>>) attributes {dimension_semantics = [#tpu.dimension_semantics<parallel>, #tpu.dimension_semantics<parallel>, #tpu.dimension_semantics<arbitrary>], iteration_bounds = array<i64: 1, 1, 1>, scalar_prefetch = 0 : i64, scratch_operands = 0 : i64, tpu.core_type = #tpu.core_type<tc>, window_params = [{transform_indices = @transform_0, window_bounds = array<i64: 16, 64>}, {transform_indices = @transform_1, window_bounds = array<i64: 64, 32>}, {transform_indices = @transform_2, window_bounds = array<i64: 1, 32>}, {transform_indices = @transform_3, window_bounds = array<i64: 16, 32>}, {transform_indices = @transform_4, window_bounds = array<i64: 1, 32>}, {transform_indices = @transform_5, window_bounds = array<i64: 1, 32>}, {transform_indices = @transform_6, window_bounds = array<i64: 16, 32>}]} {
    %c0_i32 = arith.constant 0 : i32
    %0 = arith.cmpi eq, %arg2, %c0_i32 : i32
    %1 = arith.extui %0 : i1 to i32
    %c0_i32_0 = arith.constant 0 : i32
    %2 = arith.cmpi ne, %1, %c0_i32_0 : i32
    scf.if %2 {
      %cst_10 = arith.constant 0.000000e+00 : f32
      %12 = vector.broadcast %cst_10 : f32 to vector<16x32xf32>
      %c0_11 = arith.constant 0 : index
      %c0_12 = arith.constant 0 : index
      %13 = vector.load %arg9[%c0_11, %c0_12] : memref<16x32xf32, #tpu.memory_space<vmem>>, vector<16x32xf32>
      tpu.vector_store %arg9[%c0_11, %c0_12], %12 {strides = array<i32>} : memref<16x32xf32, #tpu.memory_space<vmem>>, vector<16x32xf32>,
    } else {
    }
    %c0 = arith.constant 0 : index
    %c0_1 = arith.constant 0 : index
    %3 = vector.load %arg9[%c0, %c0_1] : memref<16x32xf32, #tpu.memory_space<vmem>>, vector<16x32xf32>
    %c0_2 = arith.constant 0 : index
    %c0_3 = arith.constant 0 : index
    %4 = vector.load %arg3[%c0_2, %c0_3] : memref<16x64xbf16, #tpu.memory_space<vmem>>, vector<16x64xbf16>
    %c0_4 = arith.constant 0 : index
    %c0_5 = arith.constant 0 : index
    %5 = vector.load %arg4[%c0_4, %c0_5] : memref<64x32xbf16, #tpu.memory_space<vmem>>, vector<64x32xbf16>
    %cst = arith.constant dense<0.000000e+00> : vector<16x32xf32>
    %6 = tpu.matmul %4, %5, %cst {dimension_numbers = #tpu.dot_dimension_numbers<[1], [0], [0], [1], [0, 0, 1, 1], [], []>} : vector<16x64xbf16>, vector<64x32xbf16>, vector<16x32xf32> -> vector<16x32xf32>
    %7 = arith.addf %3, %6 : vector<16x32xf32>
    %c0_6 = arith.constant 0 : index
    %c0_7 = arith.constant 0 : index
    %8 = vector.load %arg9[%c0_6, %c0_7] : memref<16x32xf32, #tpu.memory_space<vmem>>, vector<16x32xf32>
    tpu.vector_store %arg9[%c0_6, %c0_7], %7 {strides = array<i32>} : memref<16x32xf32, #tpu.memory_space<vmem>>, vector<16x32xf32>,
    %c0_i32_8 = arith.constant 0 : i32
    %9 = arith.cmpi eq, %arg2, %c0_i32_8 : i32
    %10 = arith.extui %9 : i1 to i32
    %c0_i32_9 = arith.constant 0 : i32
    %11 = arith.cmpi ne, %10, %c0_i32_9 : i32
    scf.if %11 {
      %c0_10 = arith.constant 0 : index
      %c0_11 = arith.constant 0 : index
      %12 = vector.load %arg9[%c0_10, %c0_11] : memref<16x32xf32, #tpu.memory_space<vmem>>, vector<16x32xf32>
      %c0_12 = arith.constant 0 : index
      %c0_13 = arith.constant 0 : index
      %13 = vector.load %arg5[%c0_12, %c0_13] : memref<1x32xf32, #tpu.memory_space<vmem>>, vector<1x32xf32>
      %14 = vector.broadcast %13 : vector<1x32xf32> to vector<16x32xf32>
      %15 = arith.addf %12, %14 : vector<16x32xf32>
      %c0_14 = arith.constant 0 : index
      %c0_15 = arith.constant 0 : index
      %16 = vector.load %arg6[%c0_14, %c0_15] : memref<16x32xf32, #tpu.memory_space<vmem>>, vector<16x32xf32>
      %17 = arith.addf %15, %16 : vector<16x32xf32>
      %cst_16 = arith.constant dense<0.000000e+00> : vector<16xf32>
      %18 = vector.multi_reduction <add>, %17, %cst_16 [1] : vector<16x32xf32> to vector<16xf32>
      %19 = vector.shape_cast %18 : vector<16xf32> to vector<16x1xf32>
      %cst_17 = arith.constant 3.200000e+01 : f32
      %20 = vector.broadcast %cst_17 : f32 to vector<16x1xf32>
      %21 = arith.divf %19, %20 : vector<16x1xf32>
      %22 = vector.broadcast %21 : vector<16x1xf32> to vector<16x32xf32>
      %23 = arith.subf %17, %22 : vector<16x32xf32>
      %24 = arith.mulf %23, %23 : vector<16x32xf32>
      %cst_18 = arith.constant dense<0.000000e+00> : vector<16xf32>
      %25 = vector.multi_reduction <add>, %24, %cst_18 [1] : vector<16x32xf32> to vector<16xf32>
      %26 = vector.shape_cast %25 : vector<16xf32> to vector<16x1xf32>
      %cst_19 = arith.constant 3.200000e+01 : f32
      %27 = vector.broadcast %cst_19 : f32 to vector<16x1xf32>
      %28 = arith.divf %26, %27 : vector<16x1xf32>
      %29 = vector.broadcast %21 : vector<16x1xf32> to vector<16x32xf32>
      %30 = arith.subf %17, %29 : vector<16x32xf32>
      %cst_20 = arith.constant 9.99999974E-6 : f32
      %31 = vector.broadcast %cst_20 : f32 to vector<16x1xf32>
      %32 = arith.addf %28, %31 : vector<16x1xf32>
      %33 = math.rsqrt %32 : vector<16x1xf32>
      %34 = vector.broadcast %33 : vector<16x1xf32> to vector<16x32xf32>
      %35 = arith.mulf %30, %34 : vector<16x32xf32>
      %c0_21 = arith.constant 0 : index
      %c0_22 = arith.constant 0 : index
      %36 = vector.load %arg7[%c0_21, %c0_22] : memref<1x32xf32, #tpu.memory_space<vmem>>, vector<1x32xf32>
      %37 = vector.broadcast %36 : vector<1x32xf32> to vector<16x32xf32>
      %38 = arith.mulf %35, %37 : vector<16x32xf32>
      %c0_23 = arith.constant 0 : index
      %c0_24 = arith.constant 0 : index
      %39 = vector.load %arg8[%c0_23, %c0_24] : memref<1x32xf32, #tpu.memory_space<vmem>>, vector<1x32xf32>
      %40 = vector.broadcast %39 : vector<1x32xf32> to vector<16x32xf32>
      %41 = arith.addf %38, %40 : vector<16x32xf32>
      %c0_25 = arith.constant 0 : index
      %c0_26 = arith.constant 0 : index
      %42 = vector.load %arg9[%c0_25, %c0_26] : memref<16x32xf32, #tpu.memory_space<vmem>>, vector<16x32xf32>
      tpu.vector_store %arg9[%c0_25, %c0_26], %41 {strides = array<i32>} : memref<16x32xf32, #tpu.memory_space<vmem>>, vector<16x32xf32>,
    } else {
    }
    return
  }
  func.func @transform_0(%arg0: i32, %arg1: i32, %arg2: i32) -> (i32, i32) {
    %c0_i32 = arith.constant 0 : i32
    return %arg0, %arg2 : i32, i32
  }
  func.func @transform_1(%arg0: i32, %arg1: i32, %arg2: i32) -> (i32, i32) {
    %c0_i32 = arith.constant 0 : i32
    return %arg2, %arg1 : i32, i32
  }
  func.func @transform_2(%arg0: i32, %arg1: i32, %arg2: i32) -> (i32, i32) {
    %c0_i32 = arith.constant 0 : i32
    %c0_i32_0 = arith.constant 0 : i32
    return %c0_i32, %arg1 : i32, i32
  }
  func.func @transform_3(%arg0: i32, %arg1: i32, %arg2: i32) -> (i32, i32) {
    %c0_i32 = arith.constant 0 : i32
    return %arg0, %arg1 : i32, i32
  }
  func.func @transform_4(%arg0: i32, %arg1: i32, %arg2: i32) -> (i32, i32) {
    %c0_i32 = arith.constant 0 : i32
    %c0_i32_0 = arith.constant 0 : i32
    return %c0_i32, %arg1 : i32, i32
  }
  func.func @transform_5(%arg0: i32, %arg1: i32, %arg2: i32) -> (i32, i32) {
    %c0_i32 = arith.constant 0 : i32
    %c0_i32_0 = arith.constant 0 : i32
    return %c0_i32, %arg1 : i32, i32
  }
  func.func @transform_6(%arg0: i32, %arg1: i32, %arg2: i32) -> (i32, i32) {
    %c0_i32 = arith.constant 0 : i32
    return %arg0, %arg1 : i32, i32
  }
}

module attributes {stable_mosaic.version = 11 : i64} {
  func.func @_matmul_kernel(%arg0: i32, %arg1: i32, %arg2: i32, %arg3: memref<16x32xf32, #tpu.memory_space<vmem>>, %arg4: memref<32x128xbf16, #tpu.memory_space<vmem>>, %arg5: memref<1x128xf32, #tpu.memory_space<vmem>>, %arg6: memref<16x128xf32, #tpu.memory_space<vmem>>) attributes {dimension_semantics = [#tpu.dimension_semantics<parallel>, #tpu.dimension_semantics<parallel>, #tpu.dimension_semantics<arbitrary>], iteration_bounds = array<i64: 1, 1, 1>, scalar_prefetch = 0 : i64, scratch_operands = 0 : i64, tpu.core_type = #tpu.core_type<tc>, window_params = [{transform_indices = @transform_0, window_bounds = array<i64: 16, 32>}, {transform_indices = @transform_1, window_bounds = array<i64: 32, 128>}, {transform_indices = @transform_2, window_bounds = array<i64: 1, 128>}, {transform_indices = @transform_3, window_bounds = array<i64: 16, 128>}]} {
    %c0_i32 = arith.constant 0 : i32
    %0 = arith.cmpi eq, %arg2, %c0_i32 : i32
    %1 = arith.extui %0 : i1 to i32
    %c0_i32_0 = arith.constant 0 : i32
    %2 = arith.cmpi ne, %1, %c0_i32_0 : i32
    scf.if %2 {
      %cst_10 = arith.constant 0.000000e+00 : f32
      %13 = vector.broadcast %cst_10 : f32 to vector<16x128xf32>
      %c0_11 = arith.constant 0 : index
      %c0_12 = arith.constant 0 : index
      %14 = vector.load %arg6[%c0_11, %c0_12] : memref<16x128xf32, #tpu.memory_space<vmem>>, vector<16x128xf32>
      tpu.vector_store %arg6[%c0_11, %c0_12], %13 {strides = array<i32>} : memref<16x128xf32, #tpu.memory_space<vmem>>, vector<16x128xf32>,
    } else {
    }
    %c0 = arith.constant 0 : index
    %c0_1 = arith.constant 0 : index
    %3 = vector.load %arg6[%c0, %c0_1] : memref<16x128xf32, #tpu.memory_space<vmem>>, vector<16x128xf32>
    %c0_2 = arith.constant 0 : index
    %c0_3 = arith.constant 0 : index
    %4 = vector.load %arg3[%c0_2, %c0_3] : memref<16x32xf32, #tpu.memory_space<vmem>>, vector<16x32xf32>
    %5 = arith.truncf %4 : vector<16x32xf32> to vector<16x32xbf16>
    %c0_4 = arith.constant 0 : index
    %c0_5 = arith.constant 0 : index
    %6 = vector.load %arg4[%c0_4, %c0_5] : memref<32x128xbf16, #tpu.memory_space<vmem>>, vector<32x128xbf16>
    %cst = arith.constant dense<0.000000e+00> : vector<16x128xf32>
    %7 = tpu.matmul %5, %6, %cst {dimension_numbers = #tpu.dot_dimension_numbers<[1], [0], [0], [1], [0, 0, 1, 1], [], []>} : vector<16x32xbf16>, vector<32x128xbf16>, vector<16x128xf32> -> vector<16x128xf32>
    %8 = arith.addf %3, %7 : vector<16x128xf32>
    %c0_6 = arith.constant 0 : index
    %c0_7 = arith.constant 0 : index
    %9 = vector.load %arg6[%c0_6, %c0_7] : memref<16x128xf32, #tpu.memory_space<vmem>>, vector<16x128xf32>
    tpu.vector_store %arg6[%c0_6, %c0_7], %8 {strides = array<i32>} : memref<16x128xf32, #tpu.memory_space<vmem>>, vector<16x128xf32>,
    %c0_i32_8 = arith.constant 0 : i32
    %10 = arith.cmpi eq, %arg2, %c0_i32_8 : i32
    %11 = arith.extui %10 : i1 to i32
    %c0_i32_9 = arith.constant 0 : i32
    %12 = arith.cmpi ne, %11, %c0_i32_9 : i32
    scf.if %12 {
      %c0_10 = arith.constant 0 : index
      %c0_11 = arith.constant 0 : index
      %13 = vector.load %arg6[%c0_10, %c0_11] : memref<16x128xf32, #tpu.memory_space<vmem>>, vector<16x128xf32>
      %c0_12 = arith.constant 0 : index
      %c0_13 = arith.constant 0 : index
      %14 = vector.load %arg5[%c0_12, %c0_13] : memref<1x128xf32, #tpu.memory_space<vmem>>, vector<1x128xf32>
      %15 = vector.broadcast %14 : vector<1x128xf32> to vector<16x128xf32>
      %16 = arith.addf %13, %15 : vector<16x128xf32>
      %c0_14 = arith.constant 0 : index
      %c0_15 = arith.constant 0 : index
      %17 = vector.load %arg6[%c0_14, %c0_15] : memref<16x128xf32, #tpu.memory_space<vmem>>, vector<16x128xf32>
      tpu.vector_store %arg6[%c0_14, %c0_15], %16 {strides = array<i32>} : memref<16x128xf32, #tpu.memory_space<vmem>>, vector<16x128xf32>,
    } else {
    }
    return
  }
  func.func @transform_0(%arg0: i32, %arg1: i32, %arg2: i32) -> (i32, i32) {
    %c0_i32 = arith.constant 0 : i32
    return %arg0, %arg2 : i32, i32
  }
  func.func @transform_1(%arg0: i32, %arg1: i32, %arg2: i32) -> (i32, i32) {
    %c0_i32 = arith.constant 0 : i32
    return %arg2, %arg1 : i32, i32
  }
  func.func @transform_2(%arg0: i32, %arg1: i32, %arg2: i32) -> (i32, i32) {
    %c0_i32 = arith.constant 0 : i32
    %c0_i32_0 = arith.constant 0 : i32
    return %c0_i32, %arg1 : i32, i32
  }
  func.func @transform_3(%arg0: i32, %arg1: i32, %arg2: i32) -> (i32, i32) {
    %c0_i32 = arith.constant 0 : i32
    return %arg0, %arg1 : i32, i32
  }
}

module attributes {stable_mosaic.version = 11 : i64} {
  func.func @_matmul_kernel(%arg0: i32, %arg1: i32, %arg2: i32, %arg3: memref<16x32xf32, #tpu.memory_space<vmem>>, %arg4: memref<32x64xbf16, #tpu.memory_space<vmem>>, %arg5: memref<1x64xf32, #tpu.memory_space<vmem>>, %arg6: memref<16x64xbf16, #tpu.memory_space<vmem>>, %arg7: memref<16x64xf32, #tpu.memory_space<vmem>>) attributes {dimension_semantics = [#tpu.dimension_semantics<parallel>, #tpu.dimension_semantics<parallel>, #tpu.dimension_semantics<arbitrary>], iteration_bounds = array<i64: 1, 1, 1>, scalar_prefetch = 0 : i64, scratch_operands = 1 : i64, tpu.core_type = #tpu.core_type<tc>, window_params = [{transform_indices = @transform_0, window_bounds = array<i64: 16, 32>}, {transform_indices = @transform_1, window_bounds = array<i64: 32, 64>}, {transform_indices = @transform_2, window_bounds = array<i64: 1, 64>}, {transform_indices = @transform_3, window_bounds = array<i64: 16, 64>}]} {
    %c0_i32 = arith.constant 0 : i32
    %0 = arith.cmpi eq, %arg2, %c0_i32 : i32
    %1 = arith.extui %0 : i1 to i32
    %c0_i32_0 = arith.constant 0 : i32
    %2 = arith.cmpi ne, %1, %c0_i32_0 : i32
    scf.if %2 {
      %cst_10 = arith.constant 0.000000e+00 : f32
      %13 = vector.broadcast %cst_10 : f32 to vector<16x64xf32>
      %c0_11 = arith.constant 0 : index
      %c0_12 = arith.constant 0 : index
      %14 = vector.load %arg7[%c0_11, %c0_12] : memref<16x64xf32, #tpu.memory_space<vmem>>, vector<16x64xf32>
      tpu.vector_store %arg7[%c0_11, %c0_12], %13 {strides = array<i32>} : memref<16x64xf32, #tpu.memory_space<vmem>>, vector<16x64xf32>,
    } else {
    }
    %c0 = arith.constant 0 : index
    %c0_1 = arith.constant 0 : index
    %3 = vector.load %arg7[%c0, %c0_1] : memref<16x64xf32, #tpu.memory_space<vmem>>, vector<16x64xf32>
    %c0_2 = arith.constant 0 : index
    %c0_3 = arith.constant 0 : index
    %4 = vector.load %arg3[%c0_2, %c0_3] : memref<16x32xf32, #tpu.memory_space<vmem>>, vector<16x32xf32>
    %5 = arith.truncf %4 : vector<16x32xf32> to vector<16x32xbf16>
    %c0_4 = arith.constant 0 : index
    %c0_5 = arith.constant 0 : index
    %6 = vector.load %arg4[%c0_4, %c0_5] : memref<32x64xbf16, #tpu.memory_space<vmem>>, vector<32x64xbf16>
    %cst = arith.constant dense<0.000000e+00> : vector<16x64xf32>
    %7 = tpu.matmul %5, %6, %cst {dimension_numbers = #tpu.dot_dimension_numbers<[1], [0], [0], [1], [0, 0, 1, 1], [], []>} : vector<16x32xbf16>, vector<32x64xbf16>, vector<16x64xf32> -> vector<16x64xf32>
    %8 = arith.addf %3, %7 : vector<16x64xf32>
    %c0_6 = arith.constant 0 : index
    %c0_7 = arith.constant 0 : index
    %9 = vector.load %arg7[%c0_6, %c0_7] : memref<16x64xf32, #tpu.memory_space<vmem>>, vector<16x64xf32>
    tpu.vector_store %arg7[%c0_6, %c0_7], %8 {strides = array<i32>} : memref<16x64xf32, #tpu.memory_space<vmem>>, vector<16x64xf32>,
    %c0_i32_8 = arith.constant 0 : i32
    %10 = arith.cmpi eq, %arg2, %c0_i32_8 : i32
    %11 = arith.extui %10 : i1 to i32
    %c0_i32_9 = arith.constant 0 : i32
    %12 = arith.cmpi ne, %11, %c0_i32_9 : i32
    scf.if %12 {
      %c0_10 = arith.constant 0 : index
      %c0_11 = arith.constant 0 : index
      %13 = vector.load %arg7[%c0_10, %c0_11] : memref<16x64xf32, #tpu.memory_space<vmem>>, vector<16x64xf32>
      %c0_12 = arith.constant 0 : index
      %c0_13 = arith.constant 0 : index
      %14 = vector.load %arg5[%c0_12, %c0_13] : memref<1x64xf32, #tpu.memory_space<vmem>>, vector<1x64xf32>
      %15 = vector.broadcast %14 : vector<1x64xf32> to vector<16x64xf32>
      %16 = arith.addf %13, %15 : vector<16x64xf32>
      %cst_14 = arith.constant 5.000000e-01 : f32
      %17 = vector.broadcast %cst_14 : f32 to vector<16x64xf32>
      %18 = arith.mulf %17, %16 : vector<16x64xf32>
      %cst_15 = arith.constant 0.707106769 : f32
      %19 = vector.broadcast %cst_15 : f32 to vector<16x64xf32>
      %20 = arith.mulf %16, %19 : vector<16x64xf32>
      %21 = math.erf %20 : vector<16x64xf32>
      %cst_16 = arith.constant 1.000000e+00 : f32
      %22 = vector.broadcast %cst_16 : f32 to vector<16x64xf32>
      %23 = arith.addf %22, %21 : vector<16x64xf32>
      %24 = arith.mulf %18, %23 : vector<16x64xf32>
      %25 = arith.truncf %24 : vector<16x64xf32> to vector<16x64xbf16>
      %c0_17 = arith.constant 0 : index
      %c0_18 = arith.constant 0 : index
      %26 = vector.load %arg6[%c0_17, %c0_18] : memref<16x64xbf16, #tpu.memory_space<vmem>>, vector<16x64xbf16>
      tpu.vector_store %arg6[%c0_17, %c0_18], %25 {strides = array<i32>} : memref<16x64xbf16, #tpu.memory_space<vmem>>, vector<16x64xbf16>,
    } else {
    }
    return
  }
  func.func @transform_0(%arg0: i32, %arg1: i32, %arg2: i32) -> (i32, i32) {
    %c0_i32 = arith.constant 0 : i32
    return %arg0, %arg2 : i32, i32
  }
  func.func @transform_1(%arg0: i32, %arg1: i32, %arg2: i32) -> (i32, i32) {
    %c0_i32 = arith.constant 0 : i32
    return %arg2, %arg1 : i32, i32
  }
  func.func @transform_2(%arg0: i32, %arg1: i32, %arg2: i32) -> (i32, i32) {
    %c0_i32 = arith.constant 0 : i32
    %c0_i32_0 = arith.constant 0 : i32
    return %c0_i32, %arg1 : i32, i32
  }
  func.func @transform_3(%arg0: i32, %arg1: i32, %arg2: i32) -> (i32, i32) {
    %c0_i32 = arith.constant 0 : i32
    return %arg0, %arg1 : i32, i32
  }
}

</mosaic_0001>

<llo_original>
// kernel: run.10
$region0: #{run.10}
  #allocation0 [shape = 'u32[]', space=smem, size = 0x4, offset = 0x4, fixed_abs, tag = 'smem constant byte address 0x4 - core index']
  #allocation1 [shape = 'u32[144,128]{1,0:T(1,128)}', space=vmem, size = 0x12000, scoped, tag = 'internal scratch']
  #allocation2 [shape = 'f32[16,96]{1,0:T(8,128)}', space=vmem, size = 0x2000, scoped, tag = 'scratch operand']
  %s0 = inlined_call_operand.hbm [shape: f32[16,32], index: 0, kind: input, shape index: {}]
  %s1 = inlined_call_operand.vmem [shape: bf16[32,96], index: 1, kind: input, shape index: {}]
  %s2 = inlined_call_operand.vmem [shape: f32[1,96], index: 2, kind: input, shape index: {}]
  %s3 = inlined_call_operand.vmem [shape: bf16[16,96], index: 3, kind: output, shape index: {}]
  %s4 = sld [smem:[#allocation0]]
  $region34: #{run.10} parent=0
    _
  %s6 = ssub.s32 1, %s4
  %s7 = scalar_select 0, %s6, %s4
  $region1: #{run.10} parent=0
    #allocation3 [shape = 'u8[8192]{0}', space=vmem, size = 0x2000, scoped, tag = 'input window, operand 0, single buffered']
    #allocation4 [shape = 's32[1]{0}', space=sflag, size = 0x4, scoped, tag = 'scoped memory for run.10']
    %8 = vsyncpa [#allocation4], 0
    // Predicated region
    $region2: #{run.10} parent=1 // pred_check
      _
    $region3: #{run.10} parent=1 // pred_check_branch
      %10 = sbr.rel (0) target = $region5
    $region4: #{run.10} parent=1 // pred_region
      %s12 = ssub.s32 256, 256
      %13 = vsyncadd [#allocation4], %s12
      %s14 = sshll.u32 [#allocation3], 4
      %s15 = int_to_ptr.vmem [resolvable:$true] %s14
      %20 = dma.hbm_to_vmem [thread:$0]  %s0, 256, %s15, [#allocation4], 128, 128, 8
    $region5: #{run.10} parent=1 // pred_fallthru
      _
    // Predicated region
    $region6: #{run.10} parent=1 // pred_check
      _
    $region7: #{run.10} parent=1 // pred_check_branch
      %22 = sbr.rel (0) target = $region9
    $region8: #{run.10} parent=1 // pred_region
      _
    $region9: #{run.10} parent=1 // pred_fallthru
      _
    // Predicated region
    $region10: #{run.10} parent=1 // pred_check
      _
    $region11: #{run.10} parent=1 // pred_check_branch
      %24 = sbr.rel (0) target = $region13
    $region12: #{run.10} parent=1 // pred_region
      _
    $region13: #{run.10} parent=1 // pred_fallthru
      _
    // Predicated region
    $region14: #{run.10} parent=1 // pred_check
      _
    $region15: #{run.10} parent=1 // pred_check_branch
      %26 = sbr.rel (0) target = $region17
    $region16: #{run.10} parent=1 // pred_region
      %27 = dma.done [#allocation4], 256
    $region17: #{run.10} parent=1 // pred_fallthru
      _
    %p29 = scmp.eq.s32.totalorder 0, 0
    // Predicated region
    $region18: #{run.10} parent=1 // pred_check
      %p30 = pneg %p29
    $region19: #{run.10} parent=1 // pred_check_branch
      %32 = sbr.rel (%p30) target = $region21
    $region20: #{run.10} parent=1 // pred_region
      %vm33 = vcmask 785408
      %34 = vst.msk [vmem:[#allocation2] sm:$0xff] %vm33, 0.0
      %35 = vst.msk [vmem:[#allocation2 + $0x8] sm:$0xff] %vm33, 0.0
    $region21: #{run.10} parent=1 // pred_fallthru
      _
    %v36 = vld [vmem:[#allocation2] sm:$0xff]
    %v37 = vld [vmem:[#allocation2 + $0x8] sm:$0xff]
    %v38 = vld [vmem:[#allocation3] sm:$0xff]
    %v39 = vld [vmem:[#allocation3 + $0x8] sm:$0xff]
    %v40 = vpack.c.bf16 %v39, %v38
    %v41 = vld [vmem:[%s1] sm:$0xf]
    %v42 = vld [vmem:[%s1 + $0x4] sm:$0xf]
    %v43 = vld [vmem:[%s1 + $0x8] sm:$0xf]
    %v44 = vld [vmem:[%s1 + $0xc] sm:$0xf]
    %v49 = vunpack.c.l.b16 %v41
    %v50 = vunpack.c.l.b16 %v42
    %v51 = vunpack.c.l.b16 %v43
    %v52 = vunpack.c.l.b16 %v44
    %v53 = vpack.c.b16 %v50, %v49
    %v54 = vpack.c.b16 %v52, %v51
    %vm57 = vcmask 261120
    %v59 = vsel %vm57, %v40, 0
    %61 = vmatprep.subr.bf16.mxu0 0
    %62 = vmatpush1.bf16.msra.mxu0 0
    %63 = vmatprep.subr.bf16.mxu0 0
    %64 = vmatpush1.bf16.msra.mxu0 0
    %65 = vmatprep.subr.bf16.mxu0 0
    %66 = vmatpush1.bf16.msra.mxu0 0
    %67 = vmatprep.subr.bf16.mxu0 0
    %68 = vmatpush1.bf16.msra.mxu0 0
    %69 = vmatprep.subr.bf16.mxu0 0
    %70 = vmatpush1.bf16.msra.mxu0 0
    %71 = vmatprep.subr.bf16.mxu0 0
    %72 = vmatpush1.bf16.msra.mxu0 0
    %73 = vmatprep.subr.bf16.mxu0 0
    %74 = vmatpush1.bf16.msra.mxu0 %v54
    %75 = vmatprep.subr.bf16.mxu0 0
    %76 = vmatpush1.bf16.msra.mxu0 %v53
    %77 = vmatprep.subr.bf16.mxu0 0
    %78 = vmatpush2.bf16.msra.mxu0 0
    %79 = vmatprep.subr.bf16.mxu0 0
    %80 = vmatpush2.bf16.msra.mxu0 0
    %81 = vmatprep.subr.bf16.mxu0 0
    %82 = vmatpush2.bf16.msra.mxu0 0
    %83 = vmatprep.subr.bf16.mxu0 0
    %84 = vmatpush2.bf16.msra.mxu0 0
    %85 = vmatprep.subr.bf16.mxu0 0
    %86 = vmatpush2.bf16.msra.mxu0 0
    %87 = vmatprep.subr.bf16.mxu0 0
    %88 = vmatpush2.bf16.msra.mxu0 0
    %89 = vmatprep.subr.bf16.mxu0 0
    %90 = vmatpush2.bf16.msra.mxu0 0
    %91 = vmatprep.subr.bf16.mxu0 0
    %92 = vmatpush2.bf16.msra.mxu0 0
    %93 = vmatprep.mubr.bf16.mxu0 0
    %94 = vmatmul.mubr.bf16.gmra.mxu0 %v59
    %v95 = vpop.f32.mrf.mxu0
    %v96 = vadd.f32 0.0, %v95
    %v97 = vpop.f32.mrf.mxu0
    %v98 = vpop.f32.mrf.mxu0
    %v99 = vadd.f32 0.0, %v98
    %v100 = vpop.f32.mrf.mxu0
    %101 = vdwg.mxu0
    %v102 = vadd.f32 %v36, %v96
    %v103 = vadd.f32 %v37, %v99
    %vm104 = vcmask 785408
    %105 = vst.msk [vmem:[#allocation2] sm:$0xff] %vm104, %v102
    %106 = vst.msk [vmem:[#allocation2 + $0x8] sm:$0xff] %vm104, %v103
    // Predicated region
    $region22: #{run.10} parent=1 // pred_check
      %p107 = pneg %p29
    $region23: #{run.10} parent=1 // pred_check_branch
      %109 = sbr.rel (%p107) target = $region25
    $region24: #{run.10} parent=1 // pred_region
      %v110 = vld [vmem:[#allocation2] sm:$0xff]
      %v111 = vld [vmem:[#allocation2 + $0x8] sm:$0xff]
      %v112 = vld [vmem:[%s2] sm:$0x1]
      %v114 = vlaneseq
      %v115 = vshrl.u32 %v114, 7
      %v116 = vsub.s32 0, %v115
      %v117 = vrot.slane %v112, %v116
      %v119 = vadd.f32 %v110, %v117
      %v120 = vadd.f32 %v111, %v117
      %v121 = vpack.c.bf16 %v120, %v119
      %v123 = vunpack.c.l.b16 %v121
      %v124 = vunpack.c.h.b16 %v121
      %v125 = vpack.c.b16 %v123, %v123
      %v126 = vpack.c.b16 %v124, %v124
      %vm129 = vcmask 781312
      %130 = vst.msk [vmem:[%s3] sm:$0xf] %vm129, %v125
      %131 = vst.msk [vmem:[%s3 + $0x4] sm:$0xf] %vm129, %v126
    $region25: #{run.10} parent=1 // pred_fallthru
      _
    // Predicated region
    $region26: #{run.10} parent=1 // pred_check
      _
    $region27: #{run.10} parent=1 // pred_check_branch
      %133 = sbr.rel (0) target = $region29
    $region28: #{run.10} parent=1 // pred_region
      _
    $region29: #{run.10} parent=1 // pred_fallthru
      _
    // Predicated region
    $region30: #{run.10} parent=1 // pred_check
      _
    $region31: #{run.10} parent=1 // pred_check_branch
      %135 = sbr.rel (0) target = $region33
    $region32: #{run.10} parent=1 // pred_region
      _
    $region33: #{run.10} parent=1 // pred_fallthru
      _
    %136 = vsyncpa [#allocation4], 1

// kernel: run.13
$region0: #{run.13}
  #allocation0 [shape = 'u32[]', space=smem, size = 0x4, offset = 0x4, fixed_abs, tag = 'smem constant byte address 0x4 - core index']
  #allocation1 [shape = 'u32[144,128]{1,0:T(1,128)}', space=vmem, size = 0x12000, scoped, tag = 'internal scratch']
  #allocation2 [shape = 'f32[16,32]{1,0:T(8,128)}', space=vmem, size = 0x2000, scoped, tag = 'scratch operand']
  %s0 = inlined_call_operand.vmem [shape: f32[16,32], index: 0, kind: input, shape index: {}]
  %s1 = inlined_call_operand.vmem [shape: bf16[32,32], index: 1, kind: input, shape index: {}]
  %s2 = inlined_call_operand.vmem [shape: f32[1,32], index: 2, kind: input, shape index: {}]
  %s3 = inlined_call_operand.vmem [shape: bf16[16,32], index: 3, kind: output, shape index: {}]
  %s4 = sld [smem:[#allocation0]]
  $region30: #{run.13} parent=0
    _
  %s6 = ssub.s32 1, %s4
  %s7 = scalar_select 0, %s6, %s4
  // Predicated region
  $region2: #{run.13} parent=0 // pred_check
    _
  $region3: #{run.13} parent=0 // pred_check_branch
    %9 = sbr.rel (0) target = $region5
  $region4: #{run.13} parent=0 // pred_region
    _
  $region5: #{run.13} parent=0 // pred_fallthru
    _
  // Predicated region
  $region6: #{run.13} parent=0 // pred_check
    _
  $region7: #{run.13} parent=0 // pred_check_branch
    %11 = sbr.rel (0) target = $region9
  $region8: #{run.13} parent=0 // pred_region
    _
  $region9: #{run.13} parent=0 // pred_fallthru
    _
  // Predicated region
  $region10: #{run.13} parent=0 // pred_check
    _
  $region11: #{run.13} parent=0 // pred_check_branch
    %13 = sbr.rel (0) target = $region13
  $region12: #{run.13} parent=0 // pred_region
    _
  $region13: #{run.13} parent=0 // pred_fallthru
    _
  %p15 = scmp.eq.s32.totalorder 0, 0
  // Predicated region
  $region14: #{run.13} parent=0 // pred_check
    %p16 = pneg %p15
  $region15: #{run.13} parent=0 // pred_check_branch
    %18 = sbr.rel (%p16) target = $region17
  $region16: #{run.13} parent=0 // pred_region
    %vm19 = vcmask 261120
    %20 = vst.msk [vmem:[#allocation2] sm:$0xff] %vm19, 0.0
    %21 = vst.msk [vmem:[#allocation2 + $0x8] sm:$0xff] %vm19, 0.0
  $region17: #{run.13} parent=0 // pred_fallthru
    _
  %v22 = vld [vmem:[#allocation2] sm:$0xff]
  %v23 = vld [vmem:[#allocation2 + $0x8] sm:$0xff]
  %v24 = vld [vmem:[%s0] sm:$0xff]
  %v25 = vld [vmem:[%s0 + $0x8] sm:$0xff]
  %v26 = vpack.c.bf16 %v25, %v24
  %v27 = vld [vmem:[%s1] sm:$0xf]
  %v28 = vld [vmem:[%s1 + $0x4] sm:$0xf]
  %v29 = vld [vmem:[%s1 + $0x8] sm:$0xf]
  %v30 = vld [vmem:[%s1 + $0xc] sm:$0xf]
  %v35 = vunpack.c.l.b16 %v27
  %v36 = vunpack.c.l.b16 %v28
  %v37 = vunpack.c.l.b16 %v29
  %v38 = vunpack.c.l.b16 %v30
  %v39 = vpack.c.b16 %v36, %v35
  %v40 = vpack.c.b16 %v38, %v37
  %vm43 = vcmask 261120
  %v45 = vsel %vm43, %v26, 0
  %47 = vmatprep.subr.bf16.mxu0 0
  %48 = vmatpush1.bf16.msra.mxu0 0
  %49 = vmatprep.subr.bf16.mxu0 0
  %50 = vmatpush1.bf16.msra.mxu0 0
  %51 = vmatprep.subr.bf16.mxu0 0
  %52 = vmatpush1.bf16.msra.mxu0 0
  %53 = vmatprep.subr.bf16.mxu0 0
  %54 = vmatpush1.bf16.msra.mxu0 0
  %55 = vmatprep.subr.bf16.mxu0 0
  %56 = vmatpush1.bf16.msra.mxu0 0
  %57 = vmatprep.subr.bf16.mxu0 0
  %58 = vmatpush1.bf16.msra.mxu0 0
  %59 = vmatprep.subr.bf16.mxu0 0
  %60 = vmatpush1.bf16.msra.mxu0 %v40
  %61 = vmatprep.subr.bf16.mxu0 0
  %62 = vmatpush1.bf16.msra.mxu0 %v39
  %63 = vmatprep.subr.bf16.mxu0 0
  %64 = vmatpush2.bf16.msra.mxu0 0
  %65 = vmatprep.subr.bf16.mxu0 0
  %66 = vmatpush2.bf16.msra.mxu0 0
  %67 = vmatprep.subr.bf16.mxu0 0
  %68 = vmatpush2.bf16.msra.mxu0 0
  %69 = vmatprep.subr.bf16.mxu0 0
  %70 = vmatpush2.bf16.msra.mxu0 0
  %71 = vmatprep.subr.bf16.mxu0 0
  %72 = vmatpush2.bf16.msra.mxu0 0
  %73 = vmatprep.subr.bf16.mxu0 0
  %74 = vmatpush2.bf16.msra.mxu0 0
  %75 = vmatprep.subr.bf16.mxu0 0
  %76 = vmatpush2.bf16.msra.mxu0 0
  %77 = vmatprep.subr.bf16.mxu0 0
  %78 = vmatpush2.bf16.msra.mxu0 0
  %79 = vmatprep.mubr.bf16.mxu0 0
  %80 = vmatmul.mubr.bf16.gmra.mxu0 %v45
  %v81 = vpop.f32.mrf.mxu0
  %v82 = vadd.f32 0.0, %v81
  %v83 = vpop.f32.mrf.mxu0
  %v84 = vpop.f32.mrf.mxu0
  %v85 = vadd.f32 0.0, %v84
  %v86 = vpop.f32.mrf.mxu0
  %87 = vdwg.mxu0
  %v88 = vadd.f32 %v22, %v82
  %v89 = vadd.f32 %v23, %v85
  %90 = vst.msk [vmem:[#allocation2] sm:$0xff] %vm43, %v88
  %91 = vst.msk [vmem:[#allocation2 + $0x8] sm:$0xff] %vm43, %v89
  // Predicated region
  $region18: #{run.13} parent=0 // pred_check
    %p92 = pneg %p15
  $region19: #{run.13} parent=0 // pred_check_branch
    %94 = sbr.rel (%p92) target = $region21
  $region20: #{run.13} parent=0 // pred_region
    %v95 = vld [vmem:[#allocation2] sm:$0xff]
    %v96 = vld [vmem:[#allocation2 + $0x8] sm:$0xff]
    %v97 = vld [vmem:[%s2] sm:$0x1]
    %v99 = vlaneseq
    %v100 = vshrl.u32 %v99, 7
    %v101 = vsub.s32 0, %v100
    %v102 = vrot.slane %v97, %v101
    %v104 = vadd.f32 %v95, %v102
    %v105 = vadd.f32 %v96, %v102
    %v106 = vpack.c.bf16 %v105, %v104
    %v108 = vunpack.c.l.b16 %v106
    %v109 = vunpack.c.h.b16 %v106
    %v110 = vpack.c.b16 %v108, %v108
    %v111 = vpack.c.b16 %v109, %v109
    %vm114 = vcmask 257024
    %115 = vst.msk [vmem:[%s3] sm:$0xf] %vm114, %v110
    %116 = vst.msk [vmem:[%s3 + $0x4] sm:$0xf] %vm114, %v111
  $region21: #{run.13} parent=0 // pred_fallthru
    _
  // Predicated region
  $region22: #{run.13} parent=0 // pred_check
    _
  $region23: #{run.13} parent=0 // pred_check_branch
    %118 = sbr.rel (0) target = $region25
  $region24: #{run.13} parent=0 // pred_region
    _
  $region25: #{run.13} parent=0 // pred_fallthru
    _
  // Predicated region
  $region26: #{run.13} parent=0 // pred_check
    _
  $region27: #{run.13} parent=0 // pred_check_branch
    %120 = sbr.rel (0) target = $region29
  $region28: #{run.13} parent=0 // pred_region
    _
  $region29: #{run.13} parent=0 // pred_fallthru
    _

// kernel: run.12
$region0: #{run.12}
  #allocation0 [shape = 'u32[]', space=smem, size = 0x4, offset = 0x4, fixed_abs, tag = 'smem constant byte address 0x4 - core index']
  #allocation1 [shape = 'u32[144,128]{1,0:T(1,128)}', space=vmem, size = 0x12000, scoped, tag = 'internal scratch']
  %s0 = inlined_call_operand.vmem [shape: bf16[16,32], index: 0, kind: input, shape index: {}]
  %s1 = inlined_call_operand.vmem [shape: bf16[32,32], index: 1, kind: input, shape index: {}]
  %s2 = inlined_call_operand.vmem [shape: f32[1,32], index: 2, kind: input, shape index: {}]
  %s3 = inlined_call_operand.vmem [shape: f32[16,32], index: 3, kind: input, shape index: {}]
  %s4 = inlined_call_operand.vmem [shape: f32[1,32], index: 4, kind: input, shape index: {}]
  %s5 = inlined_call_operand.vmem [shape: f32[1,32], index: 5, kind: input, shape index: {}]
  %s6 = inlined_call_operand.vmem [shape: f32[16,32], index: 6, kind: output, shape index: {}]
  %s7 = sld [smem:[#allocation0]]
  $region42: #{run.12} parent=0
    _
  %s9 = ssub.s32 1, %s7
  %s10 = scalar_select 0, %s9, %s7
  // Predicated region
  $region2: #{run.12} parent=0 // pred_check
    _
  $region3: #{run.12} parent=0 // pred_check_branch
    %12 = sbr.rel (0) target = $region5
  $region4: #{run.12} parent=0 // pred_region
    _
  $region5: #{run.12} parent=0 // pred_fallthru
    _
  // Predicated region
  $region6: #{run.12} parent=0 // pred_check
    _
  $region7: #{run.12} parent=0 // pred_check_branch
    %14 = sbr.rel (0) target = $region9
  $region8: #{run.12} parent=0 // pred_region
    _
  $region9: #{run.12} parent=0 // pred_fallthru
    _
  // Predicated region
  $region10: #{run.12} parent=0 // pred_check
    _
  $region11: #{run.12} parent=0 // pred_check_branch
    %16 = sbr.rel (0) target = $region13
  $region12: #{run.12} parent=0 // pred_region
    _
  $region13: #{run.12} parent=0 // pred_fallthru
    _
  // Predicated region
  $region14: #{run.12} parent=0 // pred_check
    _
  $region15: #{run.12} parent=0 // pred_check_branch
    %18 = sbr.rel (0) target = $region17
  $region16: #{run.12} parent=0 // pred_region
    _
  $region17: #{run.12} parent=0 // pred_fallthru
    _
  // Predicated region
  $region18: #{run.12} parent=0 // pred_check
    _
  $region19: #{run.12} parent=0 // pred_check_branch
    %20 = sbr.rel (0) target = $region21
  $region20: #{run.12} parent=0 // pred_region
    _
  $region21: #{run.12} parent=0 // pred_fallthru
    _
  // Predicated region
  $region22: #{run.12} parent=0 // pred_check
    _
  $region23: #{run.12} parent=0 // pred_check_branch
    %22 = sbr.rel (0) target = $region25
  $region24: #{run.12} parent=0 // pred_region
    _
  $region25: #{run.12} parent=0 // pred_fallthru
    _
  %p24 = scmp.eq.s32.totalorder 0, 0
  // Predicated region
  $region26: #{run.12} parent=0 // pred_check
    %p25 = pneg %p24
  $region27: #{run.12} parent=0 // pred_check_branch
    %27 = sbr.rel (%p25) target = $region29
  $region28: #{run.12} parent=0 // pred_region
    %vm28 = vcmask 261120
    %29 = vst.msk [vmem:[%s6] sm:$0xff] %vm28, 0.0
    %30 = vst.msk [vmem:[%s6 + $0x8] sm:$0xff] %vm28, 0.0
  $region29: #{run.12} parent=0 // pred_fallthru
    _
  %v31 = vld [vmem:[%s6] sm:$0xff]
  %v32 = vld [vmem:[%s6 + $0x8] sm:$0xff]
  %v33 = vld [vmem:[%s0] sm:$0xf]
  %v34 = vld [vmem:[%s0 + $0x4] sm:$0xf]
  %v35 = vld [vmem:[%s1] sm:$0xf]
  %v36 = vld [vmem:[%s1 + $0x4] sm:$0xf]
  %v37 = vld [vmem:[%s1 + $0x8] sm:$0xf]
  %v38 = vld [vmem:[%s1 + $0xc] sm:$0xf]
  %v41 = vunpack.c.l.b16 %v33
  %v42 = vunpack.c.l.b16 %v34
  %v43 = vpack.c.b16 %v42, %v41
  %v48 = vunpack.c.l.b16 %v35
  %v49 = vunpack.c.l.b16 %v36
  %v50 = vunpack.c.l.b16 %v37
  %v51 = vunpack.c.l.b16 %v38
  %v52 = vpack.c.b16 %v49, %v48
  %v53 = vpack.c.b16 %v51, %v50
  %vm56 = vcmask 261120
  %v58 = vsel %vm56, %v43, 0
  %60 = vmatprep.subr.bf16.mxu0 0
  %61 = vmatpush1.bf16.msra.mxu0 0
  %62 = vmatprep.subr.bf16.mxu0 0
  %63 = vmatpush1.bf16.msra.mxu0 0
  %64 = vmatprep.subr.bf16.mxu0 0
  %65 = vmatpush1.bf16.msra.mxu0 0
  %66 = vmatprep.subr.bf16.mxu0 0
  %67 = vmatpush1.bf16.msra.mxu0 0
  %68 = vmatprep.subr.bf16.mxu0 0
  %69 = vmatpush1.bf16.msra.mxu0 0
  %70 = vmatprep.subr.bf16.mxu0 0
  %71 = vmatpush1.bf16.msra.mxu0 0
  %72 = vmatprep.subr.bf16.mxu0 0
  %73 = vmatpush1.bf16.msra.mxu0 %v53
  %74 = vmatprep.subr.bf16.mxu0 0
  %75 = vmatpush1.bf16.msra.mxu0 %v52
  %76 = vmatprep.subr.bf16.mxu0 0
  %77 = vmatpush2.bf16.msra.mxu0 0
  %78 = vmatprep.subr.bf16.mxu0 0
  %79 = vmatpush2.bf16.msra.mxu0 0
  %80 = vmatprep.subr.bf16.mxu0 0
  %81 = vmatpush2.bf16.msra.mxu0 0
  %82 = vmatprep.subr.bf16.mxu0 0
  %83 = vmatpush2.bf16.msra.mxu0 0
  %84 = vmatprep.subr.bf16.mxu0 0
  %85 = vmatpush2.bf16.msra.mxu0 0
  %86 = vmatprep.subr.bf16.mxu0 0
  %87 = vmatpush2.bf16.msra.mxu0 0
  %88 = vmatprep.subr.bf16.mxu0 0
  %89 = vmatpush2.bf16.msra.mxu0 0
  %90 = vmatprep.subr.bf16.mxu0 0
  %91 = vmatpush2.bf16.msra.mxu0 0
  %92 = vmatprep.mubr.bf16.mxu0 0
  %93 = vmatmul.mubr.bf16.gmra.mxu0 %v58
  %v94 = vpop.f32.mrf.mxu0
  %v95 = vadd.f32 0.0, %v94
  %v96 = vpop.f32.mrf.mxu0
  %v97 = vpop.f32.mrf.mxu0
  %v98 = vadd.f32 0.0, %v97
  %v99 = vpop.f32.mrf.mxu0
  %100 = vdwg.mxu0
  %v101 = vadd.f32 %v31, %v95
  %v102 = vadd.f32 %v32, %v98
  %103 = vst.msk [vmem:[%s6] sm:$0xff] %vm56, %v101
  %104 = vst.msk [vmem:[%s6 + $0x8] sm:$0xff] %vm56, %v102
  // Predicated region
  $region30: #{run.12} parent=0 // pred_check
    %p105 = pneg %p24
  $region31: #{run.12} parent=0 // pred_check_branch
    %107 = sbr.rel (%p105) target = $region33
  $region32: #{run.12} parent=0 // pred_region
    %v108 = vld [vmem:[%s6] sm:$0xff]
    %v109 = vld [vmem:[%s6 + $0x8] sm:$0xff]
    %v110 = vld [vmem:[%s2] sm:$0x1]
    %v112 = vlaneseq
    %v113 = vshrl.u32 %v112, 7
    %v114 = vsub.s32 0, %v113
    %v115 = vrot.slane %v110, %v114
    %v117 = vadd.f32 %v108, %v115
    %v118 = vadd.f32 %v109, %v115
    %v119 = vld [vmem:[%s3] sm:$0xff]
    %v120 = vld [vmem:[%s3 + $0x8] sm:$0xff]
    %v121 = vadd.f32 %v117, %v119
    %v122 = vadd.f32 %v118, %v120
    %v123 = vsel %vm56, %v121, 0.0
    %124 = vadd.xlane.f32.xlu0 %v123
    %v125 = vpop.xlane.xlu0 %124
    %v126 = vsel %vm56, %v122, 0.0
    %127 = vadd.xlane.f32.xlu0 %v126
    %v128 = vpop.xlane.xlu0 %127
    %v129 = vrcp.pop 32.0
    %v130 = vmul.f32 %v125, %v129
    %v131 = vmul.f32 %v128, %v129
    %v132 = vsub.f32 %v121, %v130
    %v133 = vsub.f32 %v122, %v131
    %v134 = vmul.f32 %v132, %v132
    %v135 = vmul.f32 %v133, %v133
    %v136 = vsel %vm56, %v134, 0.0
    %137 = vadd.xlane.f32.xlu0 %v136
    %v138 = vpop.xlane.xlu0 %137
    %v139 = vsel %vm56, %v135, 0.0
    %140 = vadd.xlane.f32.xlu0 %v139
    %v141 = vpop.xlane.xlu0 %140
    %v142 = vmul.f32 %v138, %v129
    %v143 = vmul.f32 %v141, %v129
    %v144 = vadd.f32 %v142, 1e-05
    %v145 = vadd.f32 %v143, 1e-05
    %v146 = vrsqrt.pop %v144
    %v147 = vrsqrt.pop %v145
    %v148 = vmul.f32 %v132, %v146
    %v149 = vmul.f32 %v133, %v147
    %v150 = vld [vmem:[%s4] sm:$0x1]
    %v152 = vlaneseq
    %v153 = vshrl.u32 %v152, 7
    %v154 = vsub.s32 0, %v153
    %v155 = vrot.slane %v150, %v154
    %v157 = vmul.f32 %v148, %v155
    %v158 = vmul.f32 %v149, %v155
    %v159 = vld [vmem:[%s5] sm:$0x1]
    %v161 = vlaneseq
    %v162 = vshrl.u32 %v161, 7
    %v163 = vsub.s32 0, %v162
    %v164 = vrot.slane %v159, %v163
    %v166 = vadd.f32 %v157, %v164
    %v167 = vadd.f32 %v158, %v164
    %168 = vst.msk [vmem:[%s6] sm:$0xff] %vm56, %v166
    %169 = vst.msk [vmem:[%s6 + $0x8] sm:$0xff] %vm56, %v167
  $region33: #{run.12} parent=0 // pred_fallthru
    _
  // Predicated region
  $region34: #{run.12} parent=0 // pred_check
    _
  $region35: #{run.12} parent=0 // pred_check_branch
    %171 = sbr.rel (0) target = $region37
  $region36: #{run.12} parent=0 // pred_region
    _
  $region37: #{run.12} parent=0 // pred_fallthru
    _
  // Predicated region
  $region38: #{run.12} parent=0 // pred_check
    _
  $region39: #{run.12} parent=0 // pred_check_branch
    %173 = sbr.rel (0) target = $region41
  $region40: #{run.12} parent=0 // pred_region
    _
  $region41: #{run.12} parent=0 // pred_fallthru
    _

// kernel: run.11
$region0: #{run.11}
  #allocation0 [shape = 'u32[]', space=smem, size = 0x4, offset = 0x4, fixed_abs, tag = 'smem constant byte address 0x4 - core index']
  #allocation1 [shape = 'u32[144,128]{1,0:T(1,128)}', space=vmem, size = 0x12000, scoped, tag = 'internal scratch']
  #allocation2 [shape = 'f32[4,8,1]{2,1,0:T(8,128)}', space=vmem, size = 0x4000, scoped, tag = 'scratch operand']
  #allocation3 [shape = 'f32[4,8,1]{2,1,0:T(8,128)}', space=vmem, size = 0x4000, scoped, tag = 'scratch operand']
  #allocation4 [shape = 'f32[4,8,8]{2,1,0:T(8,128)}', space=vmem, size = 0x4000, scoped, tag = 'scratch operand']
  %s0 = inlined_call_operand.vmem [shape: bf16[2,4,8,8], index: 0, kind: input, shape index: {}]
  %s1 = inlined_call_operand.vmem [shape: bf16[2,4,8,8], index: 1, kind: input, shape index: {}]
  %s2 = inlined_call_operand.vmem [shape: bf16[2,4,8,8], index: 2, kind: input, shape index: {}]
  %s3 = inlined_call_operand.vmem [shape: bf16[2,8,8], index: 3, kind: input, shape index: {}]
  %s4 = inlined_call_operand.vmem [shape: bf16[2,4,8,8], index: 4, kind: output, shape index: {}]
  %s5 = sld [smem:[#allocation0]]
  $region57: #{run.11} parent=0
    _
  %s7 = ssub.s32 1, %s5
  %s8 = scalar_select 0, %s7, %s5
  loop: start=0, step=1, limit=4
  $region2: #{run.11} parent=0 // loop_pre_header
    _
  $region3: #{run.11} parent=0 // loop_header
    %s10 = sphi 0, %s14
    %p11 = scmp.ge.s32.totalorder %s10, 4
    %s17 = sphi 0, %s36
    %s18 = sphi 0, %s32
    %s19 = sphi 0, %s28
    %s20 = sphi 0, %s17
    %s21 = sphi 0, %s18
    %s22 = sphi 0, %s19
    %s23 = sphi 0, %s20
    %s24 = sphi 0, %s21
    %s25 = sphi 0, %s22
    %s41 = sphi 0, %s43
    %s44 = sphi 0, %s41
    %s45 = sphi 0, %s44
    %s61 = sphi 0, %s45
    %s69 = sphi 0, %s71
    %s72 = sphi 0, %s69
    %s73 = sphi 0, %s72
    %s89 = sphi 0, %s73
    %s97 = sphi 0, %s99
    %s100 = sphi 0, %s97
    %s101 = sphi 0, %s100
    %s117 = sphi 0, %s101
    %s127 = sphi 0, %s129
    %s130 = sphi 0, %s127
    %s131 = sphi 0, %s130
    %s147 = sphi 0, %s131
    %s155 = sphi 0, %s157
    %s158 = sphi 0, %s155
    %s159 = sphi 0, %s158
    %s175 = sphi 0, %s159
  $region4: #{run.11} parent=0 // loop_header_branch
    %13 = sbr.rel (%p11) target = $region8
  $region5: #{run.11} parent=0 // loop_body
    %s15 = ssub.s32 %s10, 1
    %s16 = ssub.s32 %s10, 2
    %s26 = sadd.s32 1, %s19
    %p27 = scmp.ge.s32.totalorder %s26, 1
    %s28 = scalar_select %p27, 0, %s26
    %s29 = sadd.s32 1, %s18
    %s30 = scalar_select %p27, %s29, %s18
    %p31 = scmp.ge.s32.totalorder %s30, 1
    %s32 = scalar_select %p31, 0, %s30
    %s33 = sadd.s32 1, %s17
    %s34 = scalar_select %p31, %s33, %s17
    %p35 = scmp.ge.s32.totalorder %s34, 2
    %s36 = scalar_select %p35, 0, %s34
    %s37 = ssub.s32 %s17, %s36
    %s38 = ssub.s32 %s18, %s32
    %s39 = sor.u32 %s37, %s38
    %p40 = scmp.eq.s32.totalorder %s39, 0
    %s42 = sadd.s32 %s41, 1
    %s43 = scalar_select %p40, %s41, %s42
    %p46 = pneg %p40
    %p47 = scmp.eq.s32.totalorder %s10, 1
    %p48 = por %p46, %p47
    %p49 = scmp.ne.s32.totalorder %s41, %s44
    %p50 = scmp.eq.s32.totalorder %s10, 0
    %p51 = por %p49, %p50
    %p52 = scmp.ne.s32.totalorder %s41, %s44
    %p53 = scmp.eq.s32.totalorder %s15, 1
    %p54 = por %p52, %p53
    %p55 = scmp.ne.s32.totalorder %s44, %s45
    %p56 = scmp.eq.s32.totalorder %s15, 0
    %p57 = por %p55, %p56
    %p58 = scmp.ne.s32.totalorder %s44, %s45
    %p59 = scmp.eq.s32.totalorder %s16, 1
    %p60 = por %p58, %p59
    %p62 = scmp.ne.s32.totalorder %s45, %s61
    %p63 = scmp.eq.s32.totalorder %s16, 0
    %p64 = por %p62, %p63
    %s65 = ssub.s32 %s17, %s36
    %s66 = ssub.s32 %s19, %s28
    %s67 = sor.u32 %s65, %s66
    %p68 = scmp.eq.s32.totalorder %s67, 0
    %s70 = sadd.s32 %s69, 1
    %s71 = scalar_select %p68, %s69, %s70
    %p74 = pneg %p68
    %p75 = scmp.eq.s32.totalorder %s10, 1
    %p76 = por %p74, %p75
    %p77 = scmp.ne.s32.totalorder %s69, %s72
    %p78 = scmp.eq.s32.totalorder %s10, 0
    %p79 = por %p77, %p78
    %p80 = scmp.ne.s32.totalorder %s69, %s72
    %p81 = scmp.eq.s32.totalorder %s15, 1
    %p82 = por %p80, %p81
    %p83 = scmp.ne.s32.totalorder %s72, %s73
    %p84 = scmp.eq.s32.totalorder %s15, 0
    %p85 = por %p83, %p84
    %p86 = scmp.ne.s32.totalorder %s72, %s73
    %p87 = scmp.eq.s32.totalorder %s16, 1
    %p88 = por %p86, %p87
    %p90 = scmp.ne.s32.totalorder %s73, %s89
    %p91 = scmp.eq.s32.totalorder %s16, 0
    %p92 = por %p90, %p91
    %s93 = ssub.s32 %s17, %s36
    %s94 = ssub.s32 %s19, %s28
    %s95 = sor.u32 %s93, %s94
    %p96 = scmp.eq.s32.totalorder %s95, 0
    %s98 = sadd.s32 %s97, 1
    %s99 = scalar_select %p96, %s97, %s98
    %p102 = pneg %p96
    %p103 = scmp.eq.s32.totalorder %s10, 1
    %p104 = por %p102, %p103
    %p105 = scmp.ne.s32.totalorder %s97, %s100
    %p106 = scmp.eq.s32.totalorder %s10, 0
    %p107 = por %p105, %p106
    %p108 = scmp.ne.s32.totalorder %s97, %s100
    %p109 = scmp.eq.s32.totalorder %s15, 1
    %p110 = por %p108, %p109
    %p111 = scmp.ne.s32.totalorder %s100, %s101
    %p112 = scmp.eq.s32.totalorder %s15, 0
    %p113 = por %p111, %p112
    %p114 = scmp.ne.s32.totalorder %s100, %s101
    %p115 = scmp.eq.s32.totalorder %s16, 1
    %p116 = por %p114, %p115
    %p118 = scmp.ne.s32.totalorder %s101, %s117
    %p119 = scmp.eq.s32.totalorder %s16, 0
    %p120 = por %p118, %p119
    %s121 = ssub.s32 %s17, %s36
    %s122 = ssub.s32 %s18, %s32
    %s123 = sor.u32 %s121, %s122
    %s124 = ssub.s32 %s19, %s28
    %s125 = sor.u32 %s123, %s124
    %p126 = scmp.eq.s32.totalorder %s125, 0
    %s128 = sadd.s32 %s127, 1
    %s129 = scalar_select %p126, %s127, %s128
    %p132 = pneg %p126
    %p133 = scmp.eq.s32.totalorder %s10, 1
    %p134 = por %p132, %p133
    %p135 = scmp.ne.s32.totalorder %s127, %s130
    %p136 = scmp.eq.s32.totalorder %s10, 0
    %p137 = por %p135, %p136
    %p138 = scmp.ne.s32.totalorder %s127, %s130
    %p139 = scmp.eq.s32.totalorder %s15, 1
    %p140 = por %p138, %p139
    %p141 = scmp.ne.s32.totalorder %s130, %s131
    %p142 = scmp.eq.s32.totalorder %s15, 0
    %p143 = por %p141, %p142
    %p144 = scmp.ne.s32.totalorder %s130, %s131
    %p145 = scmp.eq.s32.totalorder %s16, 1
    %p146 = por %p144, %p145
    %p148 = scmp.ne.s32.totalorder %s131, %s147
    %p149 = scmp.eq.s32.totalorder %s16, 0
    %p150 = por %p148, %p149
    %s151 = ssub.s32 %s17, %s36
    %s152 = ssub.s32 %s18, %s32
    %s153 = sor.u32 %s151, %s152
    %p154 = scmp.eq.s32.totalorder %s153, 0
    %s156 = sadd.s32 %s155, 1
    %s157 = scalar_select %p154, %s155, %s156
    %p160 = pneg %p154
    %p161 = scmp.eq.s32.totalorder %s10, 1
    %p162 = por %p160, %p161
    %p163 = scmp.ne.s32.totalorder %s155, %s158
    %p164 = scmp.eq.s32.totalorder %s10, 0
    %p165 = por %p163, %p164
    %p166 = scmp.ne.s32.totalorder %s155, %s158
    %p167 = scmp.eq.s32.totalorder %s15, 1
    %p168 = por %p166, %p167
    %p169 = scmp.ne.s32.totalorder %s158, %s159
    %p170 = scmp.eq.s32.totalorder %s15, 0
    %p171 = por %p169, %p170
    %p172 = scmp.ne.s32.totalorder %s158, %s159
    %p173 = scmp.eq.s32.totalorder %s16, 1
    %p174 = por %p172, %p173
    %p176 = scmp.ne.s32.totalorder %s159, %s175
    %p177 = scmp.eq.s32.totalorder %s16, 0
    %p178 = por %p176, %p177
    %p179 = scmp.le.s32.totalorder 1, %s10
    %p180 = scmp.lt.s32.totalorder %s10, 3
    %p181 = pnand %p179, %p180
    %p182 = pneg %p181
    // Predicated region
    $region9: #{run.11} parent=5 // pred_check
      _
    $region10: #{run.11} parent=5 // pred_check_branch
      %184 = sbr.rel (%p181) target = $region12
    $region11: #{run.11} parent=5 // pred_region
      %s185 = ssub.s32 %s10, 1
    $region12: #{run.11} parent=5 // pred_fallthru
      _
    %p186 = scmp.lt.s32.totalorder %s10, 2
    // Predicated region
    $region13: #{run.11} parent=5 // pred_check
      %p187 = pneg %p186
    $region14: #{run.11} parent=5 // pred_check_branch
      %189 = sbr.rel (%p187) target = $region16
    $region15: #{run.11} parent=5 // pred_region
      // Predicated region
      $region17: #{run.11} parent=15 // pred_check
        %p190 = pneg %p51
      $region18: #{run.11} parent=15 // pred_check_branch
        %192 = sbr.rel (%p190) target = $region20
      $region19: #{run.11} parent=15 // pred_region
        %p193 = scmp.lt.s32.totalorder %s17, 1
        %s194 = scalar_select %p193, %s17, 1
        %p195 = scmp.lt.s32.totalorder %s18, 0
        %s196 = scalar_select %p195, %s18, 0
        %s197 = smul.addr %s194, 4
        %s198 = sadd.s32 %s196, %s197
        %s199 = smul.addr %s198, 4
        %s200 = scalar_lea.vmem %s0, %s199
      $region20: #{run.11} parent=15 // pred_fallthru
        _
      // Predicated region
      $region21: #{run.11} parent=15 // pred_check
        %p201 = pneg %p79
      $region22: #{run.11} parent=15 // pred_check_branch
        %203 = sbr.rel (%p201) target = $region24
      $region23: #{run.11} parent=15 // pred_region
        %p204 = scmp.lt.s32.totalorder %s17, 1
        %s205 = scalar_select %p204, %s17, 1
        %p206 = scmp.lt.s32.totalorder %s19, 0
        %s207 = scalar_select %p206, %s19, 0
        %s208 = smul.addr %s205, 4
        %s209 = sadd.s32 %s207, %s208
        %s210 = smul.addr %s209, 4
        %s211 = scalar_lea.vmem %s1, %s210
      $region24: #{run.11} parent=15 // pred_fallthru
        _
      // Predicated region
      $region25: #{run.11} parent=15 // pred_check
        %p212 = pneg %p107
      $region26: #{run.11} parent=15 // pred_check_branch
        %214 = sbr.rel (%p212) target = $region28
      $region27: #{run.11} parent=15 // pred_region
        %p215 = scmp.lt.s32.totalorder %s17, 1
        %s216 = scalar_select %p215, %s17, 1
        %p217 = scmp.lt.s32.totalorder %s19, 0
        %s218 = scalar_select %p217, %s19, 0
        %s219 = smul.addr %s216, 4
        %s220 = sadd.s32 %s218, %s219
        %s221 = smul.addr %s220, 4
        %s222 = scalar_lea.vmem %s2, %s221
      $region28: #{run.11} parent=15 // pred_fallthru
        _
      // Predicated region
      $region29: #{run.11} parent=15 // pred_check
        %p223 = pneg %p137
      $region30: #{run.11} parent=15 // pred_check_branch
        %225 = sbr.rel (%p223) target = $region32
      $region31: #{run.11} parent=15 // pred_region
        %p226 = scmp.lt.s32.totalorder %s17, 1
        %s227 = scalar_select %p226, %s17, 1
        %p228 = scmp.lt.s32.totalorder %s18, 0
        %s229 = scalar_select %p228, %s18, 0
        %p230 = scmp.lt.s32.totalorder %s19, 0
        %s231 = scalar_select %p230, %s19, 0
        %s232 = sadd.s32 %s231, %s229
        %s233 = sadd.s32 %s232, %s227
        %s234 = smul.addr %s233, 4
        %s235 = scalar_lea.vmem %s3, %s234
      $region32: #{run.11} parent=15 // pred_fallthru
        _
    $region16: #{run.11} parent=5 // pred_fallthru
      _
    %p236 = scmp.le.s32.totalorder 1, %s10
    %p237 = scmp.lt.s32.totalorder %s10, 3
    %p238 = pnand %p236, %p237
    %p239 = pneg %p238
    // Predicated region
    $region33: #{run.11} parent=5 // pred_check
      _
    $region34: #{run.11} parent=5 // pred_check_branch
      %241 = sbr.rel (%p238) target = $region36
    $region35: #{run.11} parent=5 // pred_region
      %s242 = ssub.s32 %s10, 1
      %p243 = scmp.lt.s32.totalorder %s20, 1
      %s244 = scalar_select %p243, %s20, 1
      %p245 = scmp.lt.s32.totalorder %s21, 0
      %s246 = scalar_select %p245, %s21, 0
      %s247 = smul.addr %s244, 4
      %s248 = sadd.s32 %s246, %s247
      %s249 = smul.addr %s248, 4
      %s250 = scalar_lea.vmem %s0, %s249
      %p251 = pneg %p57
      %p252 = pneg %p54
      %p253 = scmp.lt.s32.totalorder %s20, 1
      %s254 = scalar_select %p253, %s20, 1
      %p255 = scmp.lt.s32.totalorder %s22, 0
      %s256 = scalar_select %p255, %s22, 0
      %s257 = smul.addr %s254, 4
      %s258 = sadd.s32 %s256, %s257
      %s259 = smul.addr %s258, 4
      %s260 = scalar_lea.vmem %s1, %s259
      %p261 = pneg %p85
      %p262 = pneg %p82
      %p263 = scmp.lt.s32.totalorder %s20, 1
      %s264 = scalar_select %p263, %s20, 1
      %p265 = scmp.lt.s32.totalorder %s22, 0
      %s266 = scalar_select %p265, %s22, 0
      %s267 = smul.addr %s264, 4
      %s268 = sadd.s32 %s266, %s267
      %s269 = smul.addr %s268, 4
      %s270 = scalar_lea.vmem %s2, %s269
      %p271 = pneg %p113
      %p272 = pneg %p110
      %p273 = scmp.lt.s32.totalorder %s20, 1
      %s274 = scalar_select %p273, %s20, 1
      %p275 = scmp.lt.s32.totalorder %s21, 0
      %s276 = scalar_select %p275, %s21, 0
      %p277 = scmp.lt.s32.totalorder %s22, 0
      %s278 = scalar_select %p277, %s22, 0
      %s279 = sadd.s32 %s278, %s276
      %s280 = sadd.s32 %s279, %s274
      %s281 = smul.addr %s280, 4
      %s282 = scalar_lea.vmem %s3, %s281
      %p283 = pneg %p143
      %p284 = pneg %p140
      %p285 = pneg %p171
      %p286 = pneg %p168
      %p287 = scmp.lt.s32.totalorder %s20, 1
      %s288 = scalar_select %p287, %s20, 1
      %p289 = scmp.lt.s32.totalorder %s21, 0
      %s290 = scalar_select %p289, %s21, 0
      %s291 = smul.addr %s288, 4
      %s292 = sadd.s32 %s290, %s291
      %s293 = smul.addr %s292, 4
      %s294 = scalar_lea.vmem %s4, %s293
      %p295 = scmp.lt.s32.totalorder %s20, 1
      %s296 = scalar_select %p295, %s20, 1
      %p297 = scmp.lt.s32.totalorder %s21, 0
      %s298 = scalar_select %p297, %s21, 0
      %s299 = smul.addr %s296, 4
      %s300 = sadd.s32 %s298, %s299
      %s301 = smul.addr %s300, 4
      %s302 = scalar_lea.vmem %s0, %s301
      %p303 = scmp.lt.s32.totalorder %s20, 1
      %s304 = scalar_select %p303, %s20, 1
      %p305 = scmp.lt.s32.totalorder %s22, 0
      %s306 = scalar_select %p305, %s22, 0
      %s307 = smul.addr %s304, 4
      %s308 = sadd.s32 %s306, %s307
      %s309 = smul.addr %s308, 4
      %s310 = scalar_lea.vmem %s1, %s309
      %p311 = scmp.lt.s32.totalorder %s20, 1
      %s312 = scalar_select %p311, %s20, 1
      %p313 = scmp.lt.s32.totalorder %s22, 0
      %s314 = scalar_select %p313, %s22, 0
      %s315 = smul.addr %s312, 4
      %s316 = sadd.s32 %s314, %s315
      %s317 = smul.addr %s316, 4
      %s318 = scalar_lea.vmem %s2, %s317
      %p319 = scmp.lt.s32.totalorder %s20, 1
      %s320 = scalar_select %p319, %s20, 1
      %p321 = scmp.lt.s32.totalorder %s21, 0
      %s322 = scalar_select %p321, %s21, 0
      %p323 = scmp.lt.s32.totalorder %s22, 0
      %s324 = scalar_select %p323, %s22, 0
      %s325 = sadd.s32 %s324, %s322
      %s326 = sadd.s32 %s325, %s320
      %s327 = smul.addr %s326, 4
      %s328 = scalar_lea.vmem %s3, %s327
      %p329 = scmp.lt.s32.totalorder %s20, 1
      %s330 = scalar_select %p329, %s20, 1
      %p331 = scmp.lt.s32.totalorder %s21, 0
      %s332 = scalar_select %p331, %s21, 0
      %s333 = smul.addr %s330, 4
      %s334 = sadd.s32 %s332, %s333
      %s335 = smul.addr %s334, 4
      %s336 = scalar_lea.vmem %s4, %s335
      %p338 = scmp.eq.s32.totalorder %s22, 0
      // Predicated region
      $region37: #{run.11} parent=35 // pred_check
        %p339 = pneg %p338
      $region38: #{run.11} parent=35 // pred_check_branch
        %341 = sbr.rel (%p339) target = $region40
      $region39: #{run.11} parent=35 // pred_region
        %vm342 = vcmask 7168
        %343 = vst.msk [vmem:[#allocation2] sm:$0xff] %vm342, -inf
        %344 = vst.msk [vmem:[#allocation2 + $0x8] sm:$0xff] %vm342, -inf
        %345 = vst.msk [vmem:[#allocation2 + $0x10] sm:$0xff] %vm342, -inf
        %346 = vst.msk [vmem:[#allocation2 + $0x18] sm:$0xff] %vm342, -inf
        %347 = vst.msk [vmem:[#allocation3] sm:$0xff] %vm342, 0.0
        %348 = vst.msk [vmem:[#allocation3 + $0x8] sm:$0xff] %vm342, 0.0
        %349 = vst.msk [vmem:[#allocation3 + $0x10] sm:$0xff] %vm342, 0.0
        %350 = vst.msk [vmem:[#allocation3 + $0x18] sm:$0xff] %vm342, 0.0
        %vm351 = vcmask 64512
        %352 = vst.msk [vmem:[#allocation4] sm:$0xff] %vm351, 0.0
        %353 = vst.msk [vmem:[#allocation4 + $0x8] sm:$0xff] %vm351, 0.0
        %354 = vst.msk [vmem:[#allocation4 + $0x10] sm:$0xff] %vm351, 0.0
        %355 = vst.msk [vmem:[#allocation4 + $0x18] sm:$0xff] %vm351, 0.0
      $region40: #{run.11} parent=35 // pred_fallthru
        _
      %v356 = vld [vmem:[%s302] sm:$0xf]
      %v357 = vld [vmem:[%s302 + $0x4] sm:$0xf]
      %v358 = vld [vmem:[%s302 + $0x8] sm:$0xf]
      %v359 = vld [vmem:[%s302 + $0xc] sm:$0xf]
      %v360 = vld [vmem:[%s310] sm:$0xf]
      %v361 = vld [vmem:[%s310 + $0x4] sm:$0xf]
      %v362 = vld [vmem:[%s310 + $0x8] sm:$0xf]
      %v363 = vld [vmem:[%s310 + $0xc] sm:$0xf]
      %v364 = vld [vmem:[%s318] sm:$0xf]
      %v365 = vld [vmem:[%s318 + $0x4] sm:$0xf]
      %v366 = vld [vmem:[%s318 + $0x8] sm:$0xf]
      %v367 = vld [vmem:[%s318 + $0xc] sm:$0xf]
      %v368 = vld [vmem:[%s328] sm:$0xf]
      %v369 = vunpack.c.l.bf16 %v368
      %vm370 = vcmask 64512
      %v372 = vsel %vm370, %v356, 0
      %v375 = vsel %vm370, %v360, 0
      %377 = vmatprep.subr.bf16.mxu0 0
      %378 = vmatpush1.bf16.xpose.msra.mxu0 0
      %379 = vmatprep.subr.bf16.mxu0 0
      %380 = vmatpush1.bf16.xpose.msra.mxu0 0
      %381 = vmatprep.subr.bf16.mxu0 0
      %382 = vmatpush1.bf16.xpose.msra.mxu0 0
      %383 = vmatprep.subr.bf16.mxu0 0
      %384 = vmatpush1.bf16.xpose.msra.mxu0 0
      %385 = vmatprep.subr.bf16.mxu0 0
      %386 = vmatpush1.bf16.xpose.msra.mxu0 0
      %387 = vmatprep.subr.bf16.mxu0 0
      %388 = vmatpush1.bf16.xpose.msra.mxu0 0
      %389 = vmatprep.subr.bf16.mxu0 0
      %390 = vmatpush1.bf16.xpose.msra.mxu0 0
      %391 = vmatprep.subr.bf16.mxu0 0
      %392 = vmatpush1.bf16.xpose.msra.mxu0 %v375
      %393 = vmatprep.subr.bf16.mxu0 0
      %394 = vmatpush2.bf16.xpose.msra.mxu0 0
      %395 = vmatprep.subr.bf16.mxu0 0
      %396 = vmatpush2.bf16.xpose.msra.mxu0 0
      %397 = vmatprep.subr.bf16.mxu0 0
      %398 = vmatpush2.bf16.xpose.msra.mxu0 0
      %399 = vmatprep.subr.bf16.mxu0 0
      %400 = vmatpush2.bf16.xpose.msra.mxu0 0
      %401 = vmatprep.subr.bf16.mxu0 0
      %402 = vmatpush2.bf16.xpose.msra.mxu0 0
      %403 = vmatprep.subr.bf16.mxu0 0
      %404 = vmatpush2.bf16.xpose.msra.mxu0 0
      %405 = vmatprep.subr.bf16.mxu0 0
      %406 = vmatpush2.bf16.xpose.msra.mxu0 0
      %407 = vmatprep.subr.bf16.mxu0 0
      %408 = vmatpush2.bf16.xpose.msra.mxu0 0
      %409 = vmatprep.mubr.bf16.mxu0 0
      %410 = vmatmul.mubr.bf16.gmra.mxu0 %v372
      %v411 = vpop.f32.mrf.mxu0
      %v412 = vadd.f32 %v369, %v411
      %v413 = vpop.f32.mrf.mxu0
      %v414 = vpop.f32.mrf.mxu0
      %v415 = vpop.f32.mrf.mxu0
      %416 = vdwg.mxu0
      %v418 = vsel %vm370, %v357, 0
      %v421 = vsel %vm370, %v361, 0
      %423 = vmatprep.subr.bf16.mxu0 0
      %424 = vmatpush1.bf16.xpose.msra.mxu0 0
      %425 = vmatprep.subr.bf16.mxu0 0
      %426 = vmatpush1.bf16.xpose.msra.mxu0 0
      %427 = vmatprep.subr.bf16.mxu0 0
      %428 = vmatpush1.bf16.xpose.msra.mxu0 0
      %429 = vmatprep.subr.bf16.mxu0 0
      %430 = vmatpush1.bf16.xpose.msra.mxu0 0
      %431 = vmatprep.subr.bf16.mxu0 0
      %432 = vmatpush1.bf16.xpose.msra.mxu0 0
      %433 = vmatprep.subr.bf16.mxu0 0
      %434 = vmatpush1.bf16.xpose.msra.mxu0 0
      %435 = vmatprep.subr.bf16.mxu0 0
      %436 = vmatpush1.bf16.xpose.msra.mxu0 0
      %437 = vmatprep.subr.bf16.mxu0 0
      %438 = vmatpush1.bf16.xpose.msra.mxu0 %v421
      %439 = vmatprep.subr.bf16.mxu0 0
      %440 = vmatpush2.bf16.xpose.msra.mxu0 0
      %441 = vmatprep.subr.bf16.mxu0 0
      %442 = vmatpush2.bf16.xpose.msra.mxu0 0
      %443 = vmatprep.subr.bf16.mxu0 0
      %444 = vmatpush2.bf16.xpose.msra.mxu0 0
      %445 = vmatprep.subr.bf16.mxu0 0
      %446 = vmatpush2.bf16.xpose.msra.mxu0 0
      %447 = vmatprep.subr.bf16.mxu0 0
      %448 = vmatpush2.bf16.xpose.msra.mxu0 0
      %449 = vmatprep.subr.bf16.mxu0 0
      %450 = vmatpush2.bf16.xpose.msra.mxu0 0
      %451 = vmatprep.subr.bf16.mxu0 0
      %452 = vmatpush2.bf16.xpose.msra.mxu0 0
      %453 = vmatprep.subr.bf16.mxu0 0
      %454 = vmatpush2.bf16.xpose.msra.mxu0 0
      %455 = vmatprep.mubr.bf16.mxu0 0
      %456 = vmatmul.mubr.bf16.gmra.mxu0 %v418
      %v457 = vpop.f32.mrf.mxu0
      %v458 = vadd.f32 %v369, %v457
      %v459 = vpop.f32.mrf.mxu0
      %v460 = vpop.f32.mrf.mxu0
      %v461 = vpop.f32.mrf.mxu0
      %462 = vdwg.mxu0
      %v464 = vsel %vm370, %v358, 0
      %v467 = vsel %vm370, %v362, 0
      %469 = vmatprep.subr.bf16.mxu0 0
      %470 = vmatpush1.bf16.xpose.msra.mxu0 0
      %471 = vmatprep.subr.bf16.mxu0 0
      %472 = vmatpush1.bf16.xpose.msra.mxu0 0
      %473 = vmatprep.subr.bf16.mxu0 0
      %474 = vmatpush1.bf16.xpose.msra.mxu0 0
      %475 = vmatprep.subr.bf16.mxu0 0
      %476 = vmatpush1.bf16.xpose.msra.mxu0 0
      %477 = vmatprep.subr.bf16.mxu0 0
      %478 = vmatpush1.bf16.xpose.msra.mxu0 0
      %479 = vmatprep.subr.bf16.mxu0 0
      %480 = vmatpush1.bf16.xpose.msra.mxu0 0
      %481 = vmatprep.subr.bf16.mxu0 0
      %482 = vmatpush1.bf16.xpose.msra.mxu0 0
      %483 = vmatprep.subr.bf16.mxu0 0
      %484 = vmatpush1.bf16.xpose.msra.mxu0 %v467
      %485 = vmatprep.subr.bf16.mxu0 0
      %486 = vmatpush2.bf16.xpose.msra.mxu0 0
      %487 = vmatprep.subr.bf16.mxu0 0
      %488 = vmatpush2.bf16.xpose.msra.mxu0 0
      %489 = vmatprep.subr.bf16.mxu0 0
      %490 = vmatpush2.bf16.xpose.msra.mxu0 0
      %491 = vmatprep.subr.bf16.mxu0 0
      %492 = vmatpush2.bf16.xpose.msra.mxu0 0
      %493 = vmatprep.subr.bf16.mxu0 0
      %494 = vmatpush2.bf16.xpose.msra.mxu0 0
      %495 = vmatprep.subr.bf16.mxu0 0
      %496 = vmatpush2.bf16.xpose.msra.mxu0 0
      %497 = vmatprep.subr.bf16.mxu0 0
      %498 = vmatpush2.bf16.xpose.msra.mxu0 0
      %499 = vmatprep.subr.bf16.mxu0 0
      %500 = vmatpush2.bf16.xpose.msra.mxu0 0
      %501 = vmatprep.mubr.bf16.mxu0 0
      %502 = vmatmul.mubr.bf16.gmra.mxu0 %v464
      %v503 = vpop.f32.mrf.mxu0
      %v504 = vadd.f32 %v369, %v503
      %v505 = vpop.f32.mrf.mxu0
      %v506 = vpop.f32.mrf.mxu0
      %v507 = vpop.f32.mrf.mxu0
      %508 = vdwg.mxu0
      %v510 = vsel %vm370, %v359, 0
      %v513 = vsel %vm370, %v363, 0
      %515 = vmatprep.subr.bf16.mxu0 0
      %516 = vmatpush1.bf16.xpose.msra.mxu0 0
      %517 = vmatprep.subr.bf16.mxu0 0
      %518 = vmatpush1.bf16.xpose.msra.mxu0 0
      %519 = vmatprep.subr.bf16.mxu0 0
      %520 = vmatpush1.bf16.xpose.msra.mxu0 0
      %521 = vmatprep.subr.bf16.mxu0 0
      %522 = vmatpush1.bf16.xpose.msra.mxu0 0
      %523 = vmatprep.subr.bf16.mxu0 0
      %524 = vmatpush1.bf16.xpose.msra.mxu0 0
      %525 = vmatprep.subr.bf16.mxu0 0
      %526 = vmatpush1.bf16.xpose.msra.mxu0 0
      %527 = vmatprep.subr.bf16.mxu0 0
      %528 = vmatpush1.bf16.xpose.msra.mxu0 0
      %529 = vmatprep.subr.bf16.mxu0 0
      %530 = vmatpush1.bf16.xpose.msra.mxu0 %v513
      %531 = vmatprep.subr.bf16.mxu0 0
      %532 = vmatpush2.bf16.xpose.msra.mxu0 0
      %533 = vmatprep.subr.bf16.mxu0 0
      %534 = vmatpush2.bf16.xpose.msra.mxu0 0
      %535 = vmatprep.subr.bf16.mxu0 0
      %536 = vmatpush2.bf16.xpose.msra.mxu0 0
      %537 = vmatprep.subr.bf16.mxu0 0
      %538 = vmatpush2.bf16.xpose.msra.mxu0 0
      %539 = vmatprep.subr.bf16.mxu0 0
      %540 = vmatpush2.bf16.xpose.msra.mxu0 0
      %541 = vmatprep.subr.bf16.mxu0 0
      %542 = vmatpush2.bf16.xpose.msra.mxu0 0
      %543 = vmatprep.subr.bf16.mxu0 0
      %544 = vmatpush2.bf16.xpose.msra.mxu0 0
      %545 = vmatprep.subr.bf16.mxu0 0
      %546 = vmatpush2.bf16.xpose.msra.mxu0 0
      %547 = vmatprep.mubr.bf16.mxu0 0
      %548 = vmatmul.mubr.bf16.gmra.mxu0 %v510
      %v549 = vpop.f32.mrf.mxu0
      %v550 = vadd.f32 %v369, %v549
      %v551 = vpop.f32.mrf.mxu0
      %v552 = vpop.f32.mrf.mxu0
      %v553 = vpop.f32.mrf.mxu0
      %554 = vdwg.mxu0
      %v555 = vld [vmem:[#allocation2] sm:$0xff]
      %v556 = vld [vmem:[#allocation2 + $0x8] sm:$0xff]
      %v557 = vld [vmem:[#allocation2 + $0x10] sm:$0xff]
      %v558 = vld [vmem:[#allocation2 + $0x18] sm:$0xff]
      %v559 = vsel %vm370, %v412, -inf
      %560 = vmax.xlane.f32.xlu0 %v559
      %v561 = vpop.xlane.xlu0 %560
      %v562 = vsel %vm370, %v458, -inf
      %563 = vmax.xlane.f32.xlu0 %v562
      %v564 = vpop.xlane.xlu0 %563
      %v565 = vsel %vm370, %v504, -inf
      %566 = vmax.xlane.f32.xlu0 %v565
      %v567 = vpop.xlane.xlu0 %566
      %v568 = vsel %vm370, %v550, -inf
      %569 = vmax.xlane.f32.xlu0 %v568
      %v570 = vpop.xlane.xlu0 %569
      %v571 = vmax.f32 %v555, %v561
      %v572 = vmax.f32 %v556, %v564
      %v573 = vmax.f32 %v557, %v567
      %v574 = vmax.f32 %v558, %v570
      %v575 = vsub.f32 %v555, %v571
      %v576 = vsub.f32 %v556, %v572
      %v577 = vsub.f32 %v557, %v573
      %v578 = vsub.f32 %v558, %v574
      %v579 = vmul.f32 %v575, 1.442695
      %v580 = vpow.pop %v579
      %v581 = vmul.f32 %v576, 1.442695
      %v582 = vpow.pop %v581
      %v583 = vmul.f32 %v577, 1.442695
      %v584 = vpow.pop %v583
      %v585 = vmul.f32 %v578, 1.442695
      %v586 = vpow.pop %v585
      %588 = vset.pattern.permute.xlu0 0
      %589 = vperm.xlu0 %588, %v571
      %v590 = vpop.permute.xlu0 %589
      %593 = vset.pattern.permute.xlu0 0
      %594 = vperm.xlu0 %593, %v572
      %v595 = vpop.permute.xlu0 %594
      %598 = vset.pattern.permute.xlu0 0
      %599 = vperm.xlu0 %598, %v573
      %v600 = vpop.permute.xlu0 %599
      %603 = vset.pattern.permute.xlu0 0
      %604 = vperm.xlu0 %603, %v574
      %v605 = vpop.permute.xlu0 %604
      %v607 = vsub.f32 %v412, %v590
      %v608 = vsub.f32 %v458, %v595
      %v609 = vsub.f32 %v504, %v600
      %v610 = vsub.f32 %v550, %v605
      %v611 = vmul.f32 %v607, 1.442695
      %v612 = vpow.pop %v611
      %v613 = vmul.f32 %v608, 1.442695
      %v614 = vpow.pop %v613
      %v615 = vmul.f32 %v609, 1.442695
      %v616 = vpow.pop %v615
      %v617 = vmul.f32 %v610, 1.442695
      %v618 = vpow.pop %v617
      %v619 = vld [vmem:[#allocation3] sm:$0xff]
      %v620 = vld [vmem:[#allocation3 + $0x8] sm:$0xff]
      %v621 = vld [vmem:[#allocation3 + $0x10] sm:$0xff]
      %v622 = vld [vmem:[#allocation3 + $0x18] sm:$0xff]
      %v623 = vmul.f32 %v580, %v619
      %v624 = vmul.f32 %v582, %v620
      %v625 = vmul.f32 %v584, %v621
      %v626 = vmul.f32 %v586, %v622
      %v627 = vsel %vm370, %v612, 0.0
      %628 = vadd.xlane.f32.xlu0 %v627
      %v629 = vpop.xlane.xlu0 %628
      %v630 = vsel %vm370, %v614, 0.0
      %631 = vadd.xlane.f32.xlu0 %v630
      %v632 = vpop.xlane.xlu0 %631
      %v633 = vsel %vm370, %v616, 0.0
      %634 = vadd.xlane.f32.xlu0 %v633
      %v635 = vpop.xlane.xlu0 %634
      %v636 = vsel %vm370, %v618, 0.0
      %637 = vadd.xlane.f32.xlu0 %v636
      %v638 = vpop.xlane.xlu0 %637
      %v639 = vadd.f32 %v623, %v629
      %v640 = vadd.f32 %v624, %v632
      %v641 = vadd.f32 %v625, %v635
      %v642 = vadd.f32 %v626, %v638
      %vm643 = vcmask 7168
      %644 = vst.msk [vmem:[#allocation3] sm:$0xff] %vm643, %v639
      %645 = vst.msk [vmem:[#allocation3 + $0x8] sm:$0xff] %vm643, %v640
      %646 = vst.msk [vmem:[#allocation3 + $0x10] sm:$0xff] %vm643, %v641
      %647 = vst.msk [vmem:[#allocation3 + $0x18] sm:$0xff] %vm643, %v642
      %v648 = vld [vmem:[#allocation4] sm:$0xff]
      %v649 = vld [vmem:[#allocation4 + $0x8] sm:$0xff]
      %v650 = vld [vmem:[#allocation4 + $0x10] sm:$0xff]
      %v651 = vld [vmem:[#allocation4 + $0x18] sm:$0xff]
      %653 = vset.pattern.permute.xlu0 0
      %654 = vperm.xlu0 %653, %v580
      %v655 = vpop.permute.xlu0 %654
      %658 = vset.pattern.permute.xlu0 0
      %659 = vperm.xlu0 %658, %v582
      %v660 = vpop.permute.xlu0 %659
      %663 = vset.pattern.permute.xlu0 0
      %664 = vperm.xlu0 %663, %v584
      %v665 = vpop.permute.xlu0 %664
      %668 = vset.pattern.permute.xlu0 0
      %669 = vperm.xlu0 %668, %v586
      %v670 = vpop.permute.xlu0 %669
      %v672 = vmul.f32 %v655, %v648
      %v673 = vmul.f32 %v660, %v649
      %v674 = vmul.f32 %v665, %v650
      %v675 = vmul.f32 %v670, %v651
      %v676 = vpack.c.bf16 %v612, %v612
      %v677 = vpack.c.bf16 %v614, %v614
      %v678 = vpack.c.bf16 %v616, %v616
      %v679 = vpack.c.bf16 %v618, %v618
      %v681 = vsel %vm370, %v676, 0
      %vm683 = vcmask 1043456
      %v685 = vsel %vm683, %v364, 0
      %687 = vmatprep.subr.bf16.mxu0 0
      %688 = vmatpush1.bf16.msra.mxu0 0
      %689 = vmatprep.subr.bf16.mxu0 0
      %690 = vmatpush1.bf16.msra.mxu0 0
      %691 = vmatprep.subr.bf16.mxu0 0
      %692 = vmatpush1.bf16.msra.mxu0 0
      %693 = vmatprep.subr.bf16.mxu0 0
      %694 = vmatpush1.bf16.msra.mxu0 0
      %695 = vmatprep.subr.bf16.mxu0 0
      %696 = vmatpush1.bf16.msra.mxu0 0
      %697 = vmatprep.subr.bf16.mxu0 0
      %698 = vmatpush1.bf16.msra.mxu0 0
      %699 = vmatprep.subr.bf16.mxu0 0
      %700 = vmatpush1.bf16.msra.mxu0 0
      %701 = vmatprep.subr.bf16.mxu0 0
      %702 = vmatpush1.bf16.msra.mxu0 %v685
      %703 = vmatprep.subr.bf16.mxu0 0
      %704 = vmatpush2.bf16.msra.mxu0 0
      %705 = vmatprep.subr.bf16.mxu0 0
      %706 = vmatpush2.bf16.msra.mxu0 0
      %707 = vmatprep.subr.bf16.mxu0 0
      %708 = vmatpush2.bf16.msra.mxu0 0
      %709 = vmatprep.subr.bf16.mxu0 0
      %710 = vmatpush2.bf16.msra.mxu0 0
      %711 = vmatprep.subr.bf16.mxu0 0
      %712 = vmatpush2.bf16.msra.mxu0 0
      %713 = vmatprep.subr.bf16.mxu0 0
      %714 = vmatpush2.bf16.msra.mxu0 0
      %715 = vmatprep.subr.bf16.mxu0 0
      %716 = vmatpush2.bf16.msra.mxu0 0
      %717 = vmatprep.subr.bf16.mxu0 0
      %718 = vmatpush2.bf16.msra.mxu0 0
      %719 = vmatprep.mubr.bf16.mxu0 0
      %720 = vmatmul.mubr.bf16.gmra.mxu0 %v681
      %v721 = vpop.f32.mrf.mxu0
      %v722 = vadd.f32 0.0, %v721
      %v723 = vpop.f32.mrf.mxu0
      %v724 = vpop.f32.mrf.mxu0
      %v725 = vpop.f32.mrf.mxu0
      %726 = vdwg.mxu0
      %v728 = vsel %vm370, %v677, 0
      %v731 = vsel %vm683, %v365, 0
      %733 = vmatprep.subr.bf16.mxu0 0
      %734 = vmatpush1.bf16.msra.mxu0 0
      %735 = vmatprep.subr.bf16.mxu0 0
      %736 = vmatpush1.bf16.msra.mxu0 0
      %737 = vmatprep.subr.bf16.mxu0 0
      %738 = vmatpush1.bf16.msra.mxu0 0
      %739 = vmatprep.subr.bf16.mxu0 0
      %740 = vmatpush1.bf16.msra.mxu0 0
      %741 = vmatprep.subr.bf16.mxu0 0
      %742 = vmatpush1.bf16.msra.mxu0 0
      %743 = vmatprep.subr.bf16.mxu0 0
      %744 = vmatpush1.bf16.msra.mxu0 0
      %745 = vmatprep.subr.bf16.mxu0 0
      %746 = vmatpush1.bf16.msra.mxu0 0
      %747 = vmatprep.subr.bf16.mxu0 0
      %748 = vmatpush1.bf16.msra.mxu0 %v731
      %749 = vmatprep.subr.bf16.mxu0 0
      %750 = vmatpush2.bf16.msra.mxu0 0
      %751 = vmatprep.subr.bf16.mxu0 0
      %752 = vmatpush2.bf16.msra.mxu0 0
      %753 = vmatprep.subr.bf16.mxu0 0
      %754 = vmatpush2.bf16.msra.mxu0 0
      %755 = vmatprep.subr.bf16.mxu0 0
      %756 = vmatpush2.bf16.msra.mxu0 0
      %757 = vmatprep.subr.bf16.mxu0 0
      %758 = vmatpush2.bf16.msra.mxu0 0
      %759 = vmatprep.subr.bf16.mxu0 0
      %760 = vmatpush2.bf16.msra.mxu0 0
      %761 = vmatprep.subr.bf16.mxu0 0
      %762 = vmatpush2.bf16.msra.mxu0 0
      %763 = vmatprep.subr.bf16.mxu0 0
      %764 = vmatpush2.bf16.msra.mxu0 0
      %765 = vmatprep.mubr.bf16.mxu0 0
      %766 = vmatmul.mubr.bf16.gmra.mxu0 %v728
      %v767 = vpop.f32.mrf.mxu0
      %v768 = vadd.f32 0.0, %v767
      %v769 = vpop.f32.mrf.mxu0
      %v770 = vpop.f32.mrf.mxu0
      %v771 = vpop.f32.mrf.mxu0
      %772 = vdwg.mxu0
      %v774 = vsel %vm370, %v678, 0
      %v777 = vsel %vm683, %v366, 0
      %779 = vmatprep.subr.bf16.mxu0 0
      %780 = vmatpush1.bf16.msra.mxu0 0
      %781 = vmatprep.subr.bf16.mxu0 0
      %782 = vmatpush1.bf16.msra.mxu0 0
      %783 = vmatprep.subr.bf16.mxu0 0
      %784 = vmatpush1.bf16.msra.mxu0 0
      %785 = vmatprep.subr.bf16.mxu0 0
      %786 = vmatpush1.bf16.msra.mxu0 0
      %787 = vmatprep.subr.bf16.mxu0 0
      %788 = vmatpush1.bf16.msra.mxu0 0
      %789 = vmatprep.subr.bf16.mxu0 0
      %790 = vmatpush1.bf16.msra.mxu0 0
      %791 = vmatprep.subr.bf16.mxu0 0
      %792 = vmatpush1.bf16.msra.mxu0 0
      %793 = vmatprep.subr.bf16.mxu0 0
      %794 = vmatpush1.bf16.msra.mxu0 %v777
      %795 = vmatprep.subr.bf16.mxu0 0
      %796 = vmatpush2.bf16.msra.mxu0 0
      %797 = vmatprep.subr.bf16.mxu0 0
      %798 = vmatpush2.bf16.msra.mxu0 0
      %799 = vmatprep.subr.bf16.mxu0 0
      %800 = vmatpush2.bf16.msra.mxu0 0
      %801 = vmatprep.subr.bf16.mxu0 0
      %802 = vmatpush2.bf16.msra.mxu0 0
      %803 = vmatprep.subr.bf16.mxu0 0
      %804 = vmatpush2.bf16.msra.mxu0 0
      %805 = vmatprep.subr.bf16.mxu0 0
      %806 = vmatpush2.bf16.msra.mxu0 0
      %807 = vmatprep.subr.bf16.mxu0 0
      %808 = vmatpush2.bf16.msra.mxu0 0
      %809 = vmatprep.subr.bf16.mxu0 0
      %810 = vmatpush2.bf16.msra.mxu0 0
      %811 = vmatprep.mubr.bf16.mxu0 0
      %812 = vmatmul.mubr.bf16.gmra.mxu0 %v774
      %v813 = vpop.f32.mrf.mxu0
      %v814 = vadd.f32 0.0, %v813
      %v815 = vpop.f32.mrf.mxu0
      %v816 = vpop.f32.mrf.mxu0
      %v817 = vpop.f32.mrf.mxu0
      %818 = vdwg.mxu0
      %v820 = vsel %vm370, %v679, 0
      %v823 = vsel %vm683, %v367, 0
      %825 = vmatprep.subr.bf16.mxu0 0
      %826 = vmatpush1.bf16.msra.mxu0 0
      %827 = vmatprep.subr.bf16.mxu0 0
      %828 = vmatpush1.bf16.msra.mxu0 0
      %829 = vmatprep.subr.bf16.mxu0 0
      %830 = vmatpush1.bf16.msra.mxu0 0
      %831 = vmatprep.subr.bf16.mxu0 0
      %832 = vmatpush1.bf16.msra.mxu0 0
      %833 = vmatprep.subr.bf16.mxu0 0
      %834 = vmatpush1.bf16.msra.mxu0 0
      %835 = vmatprep.subr.bf16.mxu0 0
      %836 = vmatpush1.bf16.msra.mxu0 0
      %837 = vmatprep.subr.bf16.mxu0 0
      %838 = vmatpush1.bf16.msra.mxu0 0
      %839 = vmatprep.subr.bf16.mxu0 0
      %840 = vmatpush1.bf16.msra.mxu0 %v823
      %841 = vmatprep.subr.bf16.mxu0 0
      %842 = vmatpush2.bf16.msra.mxu0 0
      %843 = vmatprep.subr.bf16.mxu0 0
      %844 = vmatpush2.bf16.msra.mxu0 0
      %845 = vmatprep.subr.bf16.mxu0 0
      %846 = vmatpush2.bf16.msra.mxu0 0
      %847 = vmatprep.subr.bf16.mxu0 0
      %848 = vmatpush2.bf16.msra.mxu0 0
      %849 = vmatprep.subr.bf16.mxu0 0
      %850 = vmatpush2.bf16.msra.mxu0 0
      %851 = vmatprep.subr.bf16.mxu0 0
      %852 = vmatpush2.bf16.msra.mxu0 0
      %853 = vmatprep.subr.bf16.mxu0 0
      %854 = vmatpush2.bf16.msra.mxu0 0
      %855 = vmatprep.subr.bf16.mxu0 0
      %856 = vmatpush2.bf16.msra.mxu0 0
      %857 = vmatprep.mubr.bf16.mxu0 0
      %858 = vmatmul.mubr.bf16.gmra.mxu0 %v820
      %v859 = vpop.f32.mrf.mxu0
      %v860 = vadd.f32 0.0, %v859
      %v861 = vpop.f32.mrf.mxu0
      %v862 = vpop.f32.mrf.mxu0
      %v863 = vpop.f32.mrf.mxu0
      %864 = vdwg.mxu0
      %v865 = vadd.f32 %v672, %v722
      %v866 = vadd.f32 %v673, %v768
      %v867 = vadd.f32 %v674, %v814
      %v868 = vadd.f32 %v675, %v860
      %869 = vst.msk [vmem:[#allocation4] sm:$0xff] %vm370, %v865
      %870 = vst.msk [vmem:[#allocation4 + $0x8] sm:$0xff] %vm370, %v866
      %871 = vst.msk [vmem:[#allocation4 + $0x10] sm:$0xff] %vm370, %v867
      %872 = vst.msk [vmem:[#allocation4 + $0x18] sm:$0xff] %vm370, %v868
      %873 = vst.msk [vmem:[#allocation2] sm:$0xff] %vm643, %v571
      %874 = vst.msk [vmem:[#allocation2 + $0x8] sm:$0xff] %vm643, %v572
      %875 = vst.msk [vmem:[#allocation2 + $0x10] sm:$0xff] %vm643, %v573
      %876 = vst.msk [vmem:[#allocation2 + $0x18] sm:$0xff] %vm643, %v574
      // Predicated region
      $region41: #{run.11} parent=35 // pred_check
        %p877 = pneg %p338
      $region42: #{run.11} parent=35 // pred_check_branch
        %879 = sbr.rel (%p877) target = $region44
      $region43: #{run.11} parent=35 // pred_region
        %v880 = vld [vmem:[#allocation4] sm:$0xff]
        %v881 = vld [vmem:[#allocation4 + $0x8] sm:$0xff]
        %v882 = vld [vmem:[#allocation4 + $0x10] sm:$0xff]
        %v883 = vld [vmem:[#allocation4 + $0x18] sm:$0xff]
        %v884 = vld [vmem:[#allocation3] sm:$0xff]
        %v885 = vld [vmem:[#allocation3 + $0x8] sm:$0xff]
        %v886 = vld [vmem:[#allocation3 + $0x10] sm:$0xff]
        %v887 = vld [vmem:[#allocation3 + $0x18] sm:$0xff]
        %v888 = vrcp.pop %v884
        %v889 = vrcp.pop %v885
        %v890 = vrcp.pop %v886
        %v891 = vrcp.pop %v887
        %893 = vset.pattern.permute.xlu0 0
        %894 = vperm.xlu0 %893, %v888
        %v895 = vpop.permute.xlu0 %894
        %898 = vset.pattern.permute.xlu0 0
        %899 = vperm.xlu0 %898, %v889
        %v900 = vpop.permute.xlu0 %899
        %903 = vset.pattern.permute.xlu0 0
        %904 = vperm.xlu0 %903, %v890
        %v905 = vpop.permute.xlu0 %904
        %908 = vset.pattern.permute.xlu0 0
        %909 = vperm.xlu0 %908, %v891
        %v910 = vpop.permute.xlu0 %909
        %v912 = vmul.f32 %v880, %v895
        %v913 = vmul.f32 %v881, %v900
        %v914 = vmul.f32 %v882, %v905
        %v915 = vmul.f32 %v883, %v910
        %v916 = vpack.c.bf16 %v912, %v912
        %v917 = vpack.c.bf16 %v913, %v913
        %v918 = vpack.c.bf16 %v914, %v914
        %v919 = vpack.c.bf16 %v915, %v915
        %vm920 = vcmask 60416
        %921 = vst.msk [vmem:[%s336] sm:$0xf] %vm920, %v916
        %922 = vst.msk [vmem:[%s336 + $0x4] sm:$0xf] %vm920, %v917
        %923 = vst.msk [vmem:[%s336 + $0x8] sm:$0xf] %vm920, %v918
        %924 = vst.msk [vmem:[%s336 + $0xc] sm:$0xf] %vm920, %v919
      $region44: #{run.11} parent=35 // pred_fallthru
        _
      %p925 = scmp.lt.s32.totalorder %s20, 1
      %s926 = scalar_select %p925, %s20, 1
      %p927 = scmp.lt.s32.totalorder %s21, 0
      %s928 = scalar_select %p927, %s21, 0
      %s929 = smul.addr %s926, 4
      %s930 = sadd.s32 %s928, %s929
      %s931 = smul.addr %s930, 4
      %s932 = scalar_lea.vmem %s4, %s931
      // Predicated region
      $region45: #{run.11} parent=35 // pred_check
        %p933 = pneg %p168
      $region46: #{run.11} parent=35 // pred_check_branch
        %935 = sbr.rel (%p933) target = $region48
      $region47: #{run.11} parent=35 // pred_region
        _
      $region48: #{run.11} parent=35 // pred_fallthru
        _
    $region36: #{run.11} parent=5 // pred_fallthru
      _
    %p936 = scmp.le.s32.totalorder 2, %s10
    // Predicated region
    $region49: #{run.11} parent=5 // pred_check
      %p937 = pneg %p936
    $region50: #{run.11} parent=5 // pred_check_branch
      %939 = sbr.rel (%p937) target = $region52
    $region51: #{run.11} parent=5 // pred_region
      %s940 = ssub.s32 %s10, 2
      // Predicated region
      $region53: #{run.11} parent=51 // pred_check
        %p941 = pneg %p174
      $region54: #{run.11} parent=51 // pred_check_branch
        %943 = sbr.rel (%p941) target = $region56
      $region55: #{run.11} parent=51 // pred_region
        %p944 = scmp.lt.s32.totalorder %s23, 1
        %s945 = scalar_select %p944, %s23, 1
        %p946 = scmp.lt.s32.totalorder %s24, 0
        %s947 = scalar_select %p946, %s24, 0
        %s948 = smul.addr %s945, 4
        %s949 = sadd.s32 %s947, %s948
        %s950 = smul.addr %s949, 4
        %s951 = scalar_lea.vmem %s4, %s950
      $region56: #{run.11} parent=51 // pred_fallthru
        _
    $region52: #{run.11} parent=5 // pred_fallthru
      _
  $region6: #{run.11} parent=0 // loop_footer
    %s14 = sadd.s32 1, %s10
  $region7: #{run.11} parent=0 // loop_footer_branch
    %9 = sbr.rel target = $region3
  $region8: #{run.11} parent=0 // loop_exit
    _

// kernel: run.14
$region0: #{run.14}
  #allocation0 [shape = 'u32[]', space=smem, size = 0x4, offset = 0x4, fixed_abs, tag = 'smem constant byte address 0x4 - core index']
  #allocation1 [shape = 'u32[144,128]{1,0:T(1,128)}', space=vmem, size = 0x12000, scoped, tag = 'internal scratch']
  #allocation2 [shape = 'f32[16,64]{1,0:T(8,128)}', space=vmem, size = 0x2000, scoped, tag = 'scratch operand']
  %s0 = inlined_call_operand.vmem [shape: f32[16,32], index: 0, kind: input, shape index: {}]
  %s1 = inlined_call_operand.vmem [shape: bf16[32,64], index: 1, kind: input, shape index: {}]
  %s2 = inlined_call_operand.vmem [shape: f32[1,64], index: 2, kind: input, shape index: {}]
  %s3 = inlined_call_operand.vmem [shape: bf16[16,64], index: 3, kind: output, shape index: {}]
  %s4 = sld [smem:[#allocation0]]
  $region30: #{run.14} parent=0
    _
  %s6 = ssub.s32 1, %s4
  %s7 = scalar_select 0, %s6, %s4
  // Predicated region
  $region2: #{run.14} parent=0 // pred_check
    _
  $region3: #{run.14} parent=0 // pred_check_branch
    %9 = sbr.rel (0) target = $region5
  $region4: #{run.14} parent=0 // pred_region
    _
  $region5: #{run.14} parent=0 // pred_fallthru
    _
  // Predicated region
  $region6: #{run.14} parent=0 // pred_check
    _
  $region7: #{run.14} parent=0 // pred_check_branch
    %11 = sbr.rel (0) target = $region9
  $region8: #{run.14} parent=0 // pred_region
    _
  $region9: #{run.14} parent=0 // pred_fallthru
    _
  // Predicated region
  $region10: #{run.14} parent=0 // pred_check
    _
  $region11: #{run.14} parent=0 // pred_check_branch
    %13 = sbr.rel (0) target = $region13
  $region12: #{run.14} parent=0 // pred_region
    _
  $region13: #{run.14} parent=0 // pred_fallthru
    _
  %p15 = scmp.eq.s32.totalorder 0, 0
  // Predicated region
  $region14: #{run.14} parent=0 // pred_check
    %p16 = pneg %p15
  $region15: #{run.14} parent=0 // pred_check_branch
    %18 = sbr.rel (%p16) target = $region17
  $region16: #{run.14} parent=0 // pred_region
    %vm19 = vcmask 523264
    %20 = vst.msk [vmem:[#allocation2] sm:$0xff] %vm19, 0.0
    %21 = vst.msk [vmem:[#allocation2 + $0x8] sm:$0xff] %vm19, 0.0
  $region17: #{run.14} parent=0 // pred_fallthru
    _
  %v22 = vld [vmem:[#allocation2] sm:$0xff]
  %v23 = vld [vmem:[#allocation2 + $0x8] sm:$0xff]
  %v24 = vld [vmem:[%s0] sm:$0xff]
  %v25 = vld [vmem:[%s0 + $0x8] sm:$0xff]
  %v26 = vpack.c.bf16 %v25, %v24
  %v27 = vld [vmem:[%s1] sm:$0xf]
  %v28 = vld [vmem:[%s1 + $0x4] sm:$0xf]
  %v29 = vld [vmem:[%s1 + $0x8] sm:$0xf]
  %v30 = vld [vmem:[%s1 + $0xc] sm:$0xf]
  %v35 = vunpack.c.l.b16 %v27
  %v36 = vunpack.c.l.b16 %v28
  %v37 = vunpack.c.l.b16 %v29
  %v38 = vunpack.c.l.b16 %v30
  %v39 = vpack.c.b16 %v36, %v35
  %v40 = vpack.c.b16 %v38, %v37
  %vm43 = vcmask 261120
  %v45 = vsel %vm43, %v26, 0
  %47 = vmatprep.subr.bf16.mxu0 0
  %48 = vmatpush1.bf16.msra.mxu0 0
  %49 = vmatprep.subr.bf16.mxu0 0
  %50 = vmatpush1.bf16.msra.mxu0 0
  %51 = vmatprep.subr.bf16.mxu0 0
  %52 = vmatpush1.bf16.msra.mxu0 0
  %53 = vmatprep.subr.bf16.mxu0 0
  %54 = vmatpush1.bf16.msra.mxu0 0
  %55 = vmatprep.subr.bf16.mxu0 0
  %56 = vmatpush1.bf16.msra.mxu0 0
  %57 = vmatprep.subr.bf16.mxu0 0
  %58 = vmatpush1.bf16.msra.mxu0 0
  %59 = vmatprep.subr.bf16.mxu0 0
  %60 = vmatpush1.bf16.msra.mxu0 %v40
  %61 = vmatprep.subr.bf16.mxu0 0
  %62 = vmatpush1.bf16.msra.mxu0 %v39
  %63 = vmatprep.subr.bf16.mxu0 0
  %64 = vmatpush2.bf16.msra.mxu0 0
  %65 = vmatprep.subr.bf16.mxu0 0
  %66 = vmatpush2.bf16.msra.mxu0 0
  %67 = vmatprep.subr.bf16.mxu0 0
  %68 = vmatpush2.bf16.msra.mxu0 0
  %69 = vmatprep.subr.bf16.mxu0 0
  %70 = vmatpush2.bf16.msra.mxu0 0
  %71 = vmatprep.subr.bf16.mxu0 0
  %72 = vmatpush2.bf16.msra.mxu0 0
  %73 = vmatprep.subr.bf16.mxu0 0
  %74 = vmatpush2.bf16.msra.mxu0 0
  %75 = vmatprep.subr.bf16.mxu0 0
  %76 = vmatpush2.bf16.msra.mxu0 0
  %77 = vmatprep.subr.bf16.mxu0 0
  %78 = vmatpush2.bf16.msra.mxu0 0
  %79 = vmatprep.mubr.bf16.mxu0 0
  %80 = vmatmul.mubr.bf16.gmra.mxu0 %v45
  %v81 = vpop.f32.mrf.mxu0
  %v82 = vadd.f32 0.0, %v81
  %v83 = vpop.f32.mrf.mxu0
  %v84 = vpop.f32.mrf.mxu0
  %v85 = vadd.f32 0.0, %v84
  %v86 = vpop.f32.mrf.mxu0
  %87 = vdwg.mxu0
  %v88 = vadd.f32 %v22, %v82
  %v89 = vadd.f32 %v23, %v85
  %vm90 = vcmask 523264
  %91 = vst.msk [vmem:[#allocation2] sm:$0xff] %vm90, %v88
  %92 = vst.msk [vmem:[#allocation2 + $0x8] sm:$0xff] %vm90, %v89
  // Predicated region
  $region18: #{run.14} parent=0 // pred_check
    %p93 = pneg %p15
  $region19: #{run.14} parent=0 // pred_check_branch
    %95 = sbr.rel (%p93) target = $region21
  $region20: #{run.14} parent=0 // pred_region
    %v96 = vld [vmem:[#allocation2] sm:$0xff]
    %v97 = vld [vmem:[#allocation2 + $0x8] sm:$0xff]
    %v98 = vld [vmem:[%s2] sm:$0x1]
    %v100 = vlaneseq
    %v101 = vshrl.u32 %v100, 7
    %v102 = vsub.s32 0, %v101
    %v103 = vrot.slane %v98, %v102
    %v105 = vadd.f32 %v96, %v103
    %v106 = vadd.f32 %v97, %v103
    %v107 = vpack.c.bf16 %v106, %v105
    %v109 = vunpack.c.l.b16 %v107
    %v110 = vunpack.c.h.b16 %v107
    %v111 = vpack.c.b16 %v109, %v109
    %v112 = vpack.c.b16 %v110, %v110
    %vm115 = vcmask 519168
    %116 = vst.msk [vmem:[%s3] sm:$0xf] %vm115, %v111
    %117 = vst.msk [vmem:[%s3 + $0x4] sm:$0xf] %vm115, %v112
  $region21: #{run.14} parent=0 // pred_fallthru
    _
  // Predicated region
  $region22: #{run.14} parent=0 // pred_check
    _
  $region23: #{run.14} parent=0 // pred_check_branch
    %119 = sbr.rel (0) target = $region25
  $region24: #{run.14} parent=0 // pred_region
    _
  $region25: #{run.14} parent=0 // pred_fallthru
    _
  // Predicated region
  $region26: #{run.14} parent=0 // pred_check
    _
  $region27: #{run.14} parent=0 // pred_check_branch
    %121 = sbr.rel (0) target = $region29
  $region28: #{run.14} parent=0 // pred_region
    _
  $region29: #{run.14} parent=0 // pred_fallthru
    _

// kernel: run.18
$region0: #{run.18}
  #allocation0 [shape = 'u32[]', space=smem, size = 0x4, offset = 0x4, fixed_abs, tag = 'smem constant byte address 0x4 - core index']
  #allocation1 [shape = 'u32[144,128]{1,0:T(1,128)}', space=vmem, size = 0x12000, scoped, tag = 'internal scratch']
  %s0 = inlined_call_operand.vmem [shape: bf16[16,64], index: 0, kind: input, shape index: {}]
  %s1 = inlined_call_operand.vmem [shape: bf16[64,32], index: 1, kind: input, shape index: {}]
  %s2 = inlined_call_operand.vmem [shape: f32[1,32], index: 2, kind: input, shape index: {}]
  %s3 = inlined_call_operand.vmem [shape: f32[16,32], index: 3, kind: input, shape index: {}]
  %s4 = inlined_call_operand.vmem [shape: f32[1,32], index: 4, kind: input, shape index: {}]
  %s5 = inlined_call_operand.vmem [shape: f32[1,32], index: 5, kind: input, shape index: {}]
  %s6 = inlined_call_operand.vmem [shape: f32[16,32], index: 6, kind: output, shape index: {}]
  %s7 = sld [smem:[#allocation0]]
  $region42: #{run.18} parent=0
    _
  %s9 = ssub.s32 1, %s7
  %s10 = scalar_select 0, %s9, %s7
  // Predicated region
  $region2: #{run.18} parent=0 // pred_check
    _
  $region3: #{run.18} parent=0 // pred_check_branch
    %12 = sbr.rel (0) target = $region5
  $region4: #{run.18} parent=0 // pred_region
    _
  $region5: #{run.18} parent=0 // pred_fallthru
    _
  // Predicated region
  $region6: #{run.18} parent=0 // pred_check
    _
  $region7: #{run.18} parent=0 // pred_check_branch
    %14 = sbr.rel (0) target = $region9
  $region8: #{run.18} parent=0 // pred_region
    _
  $region9: #{run.18} parent=0 // pred_fallthru
    _
  // Predicated region
  $region10: #{run.18} parent=0 // pred_check
    _
  $region11: #{run.18} parent=0 // pred_check_branch
    %16 = sbr.rel (0) target = $region13
  $region12: #{run.18} parent=0 // pred_region
    _
  $region13: #{run.18} parent=0 // pred_fallthru
    _
  // Predicated region
  $region14: #{run.18} parent=0 // pred_check
    _
  $region15: #{run.18} parent=0 // pred_check_branch
    %18 = sbr.rel (0) target = $region17
  $region16: #{run.18} parent=0 // pred_region
    _
  $region17: #{run.18} parent=0 // pred_fallthru
    _
  // Predicated region
  $region18: #{run.18} parent=0 // pred_check
    _
  $region19: #{run.18} parent=0 // pred_check_branch
    %20 = sbr.rel (0) target = $region21
  $region20: #{run.18} parent=0 // pred_region
    _
  $region21: #{run.18} parent=0 // pred_fallthru
    _
  // Predicated region
  $region22: #{run.18} parent=0 // pred_check
    _
  $region23: #{run.18} parent=0 // pred_check_branch
    %22 = sbr.rel (0) target = $region25
  $region24: #{run.18} parent=0 // pred_region
    _
  $region25: #{run.18} parent=0 // pred_fallthru
    _
  %p24 = scmp.eq.s32.totalorder 0, 0
  // Predicated region
  $region26: #{run.18} parent=0 // pred_check
    %p25 = pneg %p24
  $region27: #{run.18} parent=0 // pred_check_branch
    %27 = sbr.rel (%p25) target = $region29
  $region28: #{run.18} parent=0 // pred_region
    %vm28 = vcmask 261120
    %29 = vst.msk [vmem:[%s6] sm:$0xff] %vm28, 0.0
    %30 = vst.msk [vmem:[%s6 + $0x8] sm:$0xff] %vm28, 0.0
  $region29: #{run.18} parent=0 // pred_fallthru
    _
  %v31 = vld [vmem:[%s6] sm:$0xff]
  %v32 = vld [vmem:[%s6 + $0x8] sm:$0xff]
  %v33 = vld [vmem:[%s0] sm:$0xf]
  %v34 = vld [vmem:[%s0 + $0x4] sm:$0xf]
  %v35 = vld [vmem:[%s1] sm:$0xf]
  %v36 = vld [vmem:[%s1 + $0x4] sm:$0xf]
  %v37 = vld [vmem:[%s1 + $0x8] sm:$0xf]
  %v38 = vld [vmem:[%s1 + $0xc] sm:$0xf]
  %v39 = vld [vmem:[%s1 + $0x10] sm:$0xf]
  %v40 = vld [vmem:[%s1 + $0x14] sm:$0xf]
  %v41 = vld [vmem:[%s1 + $0x18] sm:$0xf]
  %v42 = vld [vmem:[%s1 + $0x1c] sm:$0xf]
  %v45 = vunpack.c.l.b16 %v33
  %v46 = vunpack.c.l.b16 %v34
  %v47 = vpack.c.b16 %v46, %v45
  %v56 = vunpack.c.l.b16 %v35
  %v57 = vunpack.c.l.b16 %v36
  %v58 = vunpack.c.l.b16 %v37
  %v59 = vunpack.c.l.b16 %v38
  %v60 = vunpack.c.l.b16 %v39
  %v61 = vunpack.c.l.b16 %v40
  %v62 = vunpack.c.l.b16 %v41
  %v63 = vunpack.c.l.b16 %v42
  %v64 = vpack.c.b16 %v57, %v56
  %v65 = vpack.c.b16 %v59, %v58
  %v66 = vpack.c.b16 %v61, %v60
  %v67 = vpack.c.b16 %v63, %v62
  %vm72 = vcmask 523264
  %v74 = vsel %vm72, %v47, 0
  %76 = vmatprep.subr.bf16.mxu0 0
  %77 = vmatpush1.bf16.msra.mxu0 0
  %78 = vmatprep.subr.bf16.mxu0 0
  %79 = vmatpush1.bf16.msra.mxu0 0
  %80 = vmatprep.subr.bf16.mxu0 0
  %81 = vmatpush1.bf16.msra.mxu0 0
  %82 = vmatprep.subr.bf16.mxu0 0
  %83 = vmatpush1.bf16.msra.mxu0 0
  %84 = vmatprep.subr.bf16.mxu0 0
  %85 = vmatpush1.bf16.msra.mxu0 %v67
  %86 = vmatprep.subr.bf16.mxu0 0
  %87 = vmatpush1.bf16.msra.mxu0 %v66
  %88 = vmatprep.subr.bf16.mxu0 0
  %89 = vmatpush1.bf16.msra.mxu0 %v65
  %90 = vmatprep.subr.bf16.mxu0 0
  %91 = vmatpush1.bf16.msra.mxu0 %v64
  %92 = vmatprep.subr.bf16.mxu0 0
  %93 = vmatpush2.bf16.msra.mxu0 0
  %94 = vmatprep.subr.bf16.mxu0 0
  %95 = vmatpush2.bf16.msra.mxu0 0
  %96 = vmatprep.subr.bf16.mxu0 0
  %97 = vmatpush2.bf16.msra.mxu0 0
  %98 = vmatprep.subr.bf16.mxu0 0
  %99 = vmatpush2.bf16.msra.mxu0 0
  %100 = vmatprep.subr.bf16.mxu0 0
  %101 = vmatpush2.bf16.msra.mxu0 0
  %102 = vmatprep.subr.bf16.mxu0 0
  %103 = vmatpush2.bf16.msra.mxu0 0
  %104 = vmatprep.subr.bf16.mxu0 0
  %105 = vmatpush2.bf16.msra.mxu0 0
  %106 = vmatprep.subr.bf16.mxu0 0
  %107 = vmatpush2.bf16.msra.mxu0 0
  %108 = vmatprep.mubr.bf16.mxu0 0
  %109 = vmatmul.mubr.bf16.gmra.mxu0 %v74
  %v110 = vpop.f32.mrf.mxu0
  %v111 = vadd.f32 0.0, %v110
  %v112 = vpop.f32.mrf.mxu0
  %v113 = vpop.f32.mrf.mxu0
  %v114 = vadd.f32 0.0, %v113
  %v115 = vpop.f32.mrf.mxu0
  %116 = vdwg.mxu0
  %v117 = vadd.f32 %v31, %v111
  %v118 = vadd.f32 %v32, %v114
  %vm119 = vcmask 261120
  %120 = vst.msk [vmem:[%s6] sm:$0xff] %vm119, %v117
  %121 = vst.msk [vmem:[%s6 + $0x8] sm:$0xff] %vm119, %v118
  // Predicated region
  $region30: #{run.18} parent=0 // pred_check
    %p122 = pneg %p24
  $region31: #{run.18} parent=0 // pred_check_branch
    %124 = sbr.rel (%p122) target = $region33
  $region32: #{run.18} parent=0 // pred_region
    %v125 = vld [vmem:[%s6] sm:$0xff]
    %v126 = vld [vmem:[%s6 + $0x8] sm:$0xff]
    %v127 = vld [vmem:[%s2] sm:$0x1]
    %v129 = vlaneseq
    %v130 = vshrl.u32 %v129, 7
    %v131 = vsub.s32 0, %v130
    %v132 = vrot.slane %v127, %v131
    %v134 = vadd.f32 %v125, %v132
    %v135 = vadd.f32 %v126, %v132
    %v136 = vld [vmem:[%s3] sm:$0xff]
    %v137 = vld [vmem:[%s3 + $0x8] sm:$0xff]
    %v138 = vadd.f32 %v134, %v136
    %v139 = vadd.f32 %v135, %v137
    %v140 = vsel %vm119, %v138, 0.0
    %141 = vadd.xlane.f32.xlu0 %v140
    %v142 = vpop.xlane.xlu0 %141
    %v143 = vsel %vm119, %v139, 0.0
    %144 = vadd.xlane.f32.xlu0 %v143
    %v145 = vpop.xlane.xlu0 %144
    %v146 = vrcp.pop 32.0
    %v147 = vmul.f32 %v142, %v146
    %v148 = vmul.f32 %v145, %v146
    %v149 = vsub.f32 %v138, %v147
    %v150 = vsub.f32 %v139, %v148
    %v151 = vmul.f32 %v149, %v149
    %v152 = vmul.f32 %v150, %v150
    %v153 = vsel %vm119, %v151, 0.0
    %154 = vadd.xlane.f32.xlu0 %v153
    %v155 = vpop.xlane.xlu0 %154
    %v156 = vsel %vm119, %v152, 0.0
    %157 = vadd.xlane.f32.xlu0 %v156
    %v158 = vpop.xlane.xlu0 %157
    %v159 = vmul.f32 %v155, %v146
    %v160 = vmul.f32 %v158, %v146
    %v161 = vadd.f32 %v159, 1e-05
    %v162 = vadd.f32 %v160, 1e-05
    %v163 = vrsqrt.pop %v161
    %v164 = vrsqrt.pop %v162
    %v165 = vmul.f32 %v149, %v163
    %v166 = vmul.f32 %v150, %v164
    %v167 = vld [vmem:[%s4] sm:$0x1]
    %v169 = vlaneseq
    %v170 = vshrl.u32 %v169, 7
    %v171 = vsub.s32 0, %v170
    %v172 = vrot.slane %v167, %v171
    %v174 = vmul.f32 %v165, %v172
    %v175 = vmul.f32 %v166, %v172
    %v176 = vld [vmem:[%s5] sm:$0x1]
    %v178 = vlaneseq
    %v179 = vshrl.u32 %v178, 7
    %v180 = vsub.s32 0, %v179
    %v181 = vrot.slane %v176, %v180
    %v183 = vadd.f32 %v174, %v181
    %v184 = vadd.f32 %v175, %v181
    %185 = vst.msk [vmem:[%s6] sm:$0xff] %vm119, %v183
    %186 = vst.msk [vmem:[%s6 + $0x8] sm:$0xff] %vm119, %v184
  $region33: #{run.18} parent=0 // pred_fallthru
    _
  // Predicated region
  $region34: #{run.18} parent=0 // pred_check
    _
  $region35: #{run.18} parent=0 // pred_check_branch
    %188 = sbr.rel (0) target = $region37
  $region36: #{run.18} parent=0 // pred_region
    _
  $region37: #{run.18} parent=0 // pred_fallthru
    _
  // Predicated region
  $region38: #{run.18} parent=0 // pred_check
    _
  $region39: #{run.18} parent=0 // pred_check_branch
    %190 = sbr.rel (0) target = $region41
  $region40: #{run.18} parent=0 // pred_region
    _
  $region41: #{run.18} parent=0 // pred_fallthru
    _

// kernel: run.19
$region0: #{run.19}
  #allocation0 [shape = 'u32[]', space=smem, size = 0x4, offset = 0x4, fixed_abs, tag = 'smem constant byte address 0x4 - core index']
  #allocation1 [shape = 'u32[144,128]{1,0:T(1,128)}', space=vmem, size = 0x12000, scoped, tag = 'internal scratch']
  %s0 = inlined_call_operand.vmem [shape: f32[16,32], index: 0, kind: input, shape index: {}]
  %s1 = inlined_call_operand.vmem [shape: bf16[32,128], index: 1, kind: input, shape index: {}]
  %s2 = inlined_call_operand.vmem [shape: f32[1,128], index: 2, kind: input, shape index: {}]
  %s3 = inlined_call_operand.hbm [shape: f32[16,128], index: 3, kind: output, shape index: {}]
  %s4 = sld [smem:[#allocation0]]
  $region30: #{run.19} parent=0
    _
  %s6 = ssub.s32 1, %s4
  %s7 = scalar_select 0, %s6, %s4
  $region1: #{run.19} parent=0
    #allocation2 [shape = 'u8[8192]{0}', space=vmem, size = 0x2000, scoped, tag = 'output window, operand 0, single buffered']
    #allocation3 [shape = 's32[1]{0}', space=sflag, size = 0x4, scoped, tag = 'scoped memory for run.19']
    %8 = vsyncpa [#allocation3], 0
    // Predicated region
    $region2: #{run.19} parent=1 // pred_check
      _
    $region3: #{run.19} parent=1 // pred_check_branch
      %10 = sbr.rel (0) target = $region5
    $region4: #{run.19} parent=1 // pred_region
      _
    $region5: #{run.19} parent=1 // pred_fallthru
      _
    // Predicated region
    $region6: #{run.19} parent=1 // pred_check
      _
    $region7: #{run.19} parent=1 // pred_check_branch
      %12 = sbr.rel (0) target = $region9
    $region8: #{run.19} parent=1 // pred_region
      _
    $region9: #{run.19} parent=1 // pred_fallthru
      _
    // Predicated region
    $region10: #{run.19} parent=1 // pred_check
      _
    $region11: #{run.19} parent=1 // pred_check_branch
      %14 = sbr.rel (0) target = $region13
    $region12: #{run.19} parent=1 // pred_region
      _
    $region13: #{run.19} parent=1 // pred_fallthru
      _
    %p16 = scmp.eq.s32.totalorder 0, 0
    // Predicated region
    $region14: #{run.19} parent=1 // pred_check
      %p17 = pneg %p16
    $region15: #{run.19} parent=1 // pred_check_branch
      %19 = sbr.rel (%p17) target = $region17
    $region16: #{run.19} parent=1 // pred_region
      %20 = vst [vmem:[#allocation2] sm:$0xff] 0.0
      %21 = vst [vmem:[#allocation2 + $0x8] sm:$0xff] 0.0
    $region17: #{run.19} parent=1 // pred_fallthru
      _
    %v22 = vld [vmem:[#allocation2] sm:$0xff]
    %v23 = vld [vmem:[#allocation2 + $0x8] sm:$0xff]
    %v24 = vld [vmem:[%s0] sm:$0xff]
    %v25 = vld [vmem:[%s0 + $0x8] sm:$0xff]
    %v26 = vpack.c.bf16 %v25, %v24
    %v27 = vld [vmem:[%s1] sm:$0xf]
    %v28 = vld [vmem:[%s1 + $0x4] sm:$0xf]
    %v29 = vld [vmem:[%s1 + $0x8] sm:$0xf]
    %v30 = vld [vmem:[%s1 + $0xc] sm:$0xf]
    %v35 = vunpack.c.l.b16 %v27
    %v36 = vunpack.c.l.b16 %v28
    %v37 = vunpack.c.l.b16 %v29
    %v38 = vunpack.c.l.b16 %v30
    %v39 = vpack.c.b16 %v36, %v35
    %v40 = vpack.c.b16 %v38, %v37
    %vm43 = vcmask 261120
    %v45 = vsel %vm43, %v26, 0
    %47 = vmatprep.subr.bf16.mxu0 0
    %48 = vmatpush1.bf16.msra.mxu0 0
    %49 = vmatprep.subr.bf16.mxu0 0
    %50 = vmatpush1.bf16.msra.mxu0 0
    %51 = vmatprep.subr.bf16.mxu0 0
    %52 = vmatpush1.bf16.msra.mxu0 0
    %53 = vmatprep.subr.bf16.mxu0 0
    %54 = vmatpush1.bf16.msra.mxu0 0
    %55 = vmatprep.subr.bf16.mxu0 0
    %56 = vmatpush1.bf16.msra.mxu0 0
    %57 = vmatprep.subr.bf16.mxu0 0
    %58 = vmatpush1.bf16.msra.mxu0 0
    %59 = vmatprep.subr.bf16.mxu0 0
    %60 = vmatpush1.bf16.msra.mxu0 %v40
    %61 = vmatprep.subr.bf16.mxu0 0
    %62 = vmatpush1.bf16.msra.mxu0 %v39
    %63 = vmatprep.subr.bf16.mxu0 0
    %64 = vmatpush2.bf16.msra.mxu0 0
    %65 = vmatprep.subr.bf16.mxu0 0
    %66 = vmatpush2.bf16.msra.mxu0 0
    %67 = vmatprep.subr.bf16.mxu0 0
    %68 = vmatpush2.bf16.msra.mxu0 0
    %69 = vmatprep.subr.bf16.mxu0 0
    %70 = vmatpush2.bf16.msra.mxu0 0
    %71 = vmatprep.subr.bf16.mxu0 0
    %72 = vmatpush2.bf16.msra.mxu0 0
    %73 = vmatprep.subr.bf16.mxu0 0
    %74 = vmatpush2.bf16.msra.mxu0 0
    %75 = vmatprep.subr.bf16.mxu0 0
    %76 = vmatpush2.bf16.msra.mxu0 0
    %77 = vmatprep.subr.bf16.mxu0 0
    %78 = vmatpush2.bf16.msra.mxu0 0
    %79 = vmatprep.mubr.bf16.mxu0 0
    %80 = vmatmul.mubr.bf16.gmra.mxu0 %v45
    %v81 = vpop.f32.mrf.mxu0
    %v82 = vadd.f32 0.0, %v81
    %v83 = vpop.f32.mrf.mxu0
    %v84 = vpop.f32.mrf.mxu0
    %v85 = vadd.f32 0.0, %v84
    %v86 = vpop.f32.mrf.mxu0
    %87 = vdwg.mxu0
    %v88 = vadd.f32 %v22, %v82
    %v89 = vadd.f32 %v23, %v85
    %90 = vst [vmem:[#allocation2] sm:$0xff] %v88
    %91 = vst [vmem:[#allocation2 + $0x8] sm:$0xff] %v89
    // Predicated region
    $region18: #{run.19} parent=1 // pred_check
      %p92 = pneg %p16
    $region19: #{run.19} parent=1 // pred_check_branch
      %94 = sbr.rel (%p92) target = $region21
    $region20: #{run.19} parent=1 // pred_region
      %v95 = vld [vmem:[#allocation2] sm:$0xff]
      %v96 = vld [vmem:[#allocation2 + $0x8] sm:$0xff]
      %v97 = vld [vmem:[%s2] sm:$0x1]
      %v99 = vlaneseq
      %v100 = vshrl.u32 %v99, 7
      %v101 = vsub.s32 0, %v100
      %v102 = vrot.slane %v97, %v101
      %v104 = vadd.f32 %v95, %v102
      %v105 = vadd.f32 %v96, %v102
      %106 = vst [vmem:[#allocation2] sm:$0xff] %v104
      %107 = vst [vmem:[#allocation2 + $0x8] sm:$0xff] %v105
    $region21: #{run.19} parent=1 // pred_fallthru
      _
    // Predicated region
    $region22: #{run.19} parent=1 // pred_check
      _
    $region23: #{run.19} parent=1 // pred_check_branch
      %109 = sbr.rel (0) target = $region25
    $region24: #{run.19} parent=1 // pred_region
      %s111 = ssub.s32 256, 256
      %112 = vsyncadd [#allocation3], %s111
      %s113 = sshll.u32 [#allocation2], 4
      %s114 = int_to_ptr.vmem [resolvable:$true] %s113
      %119 = dma.vmem_to_hbm [thread:$0]  %s114, 256, %s3, [#allocation3], 128, 128, 8
    $region25: #{run.19} parent=1 // pred_fallthru
      _
    // Predicated region
    $region26: #{run.19} parent=1 // pred_check
      _
    $region27: #{run.19} parent=1 // pred_check_branch
      %121 = sbr.rel (0) target = $region29
    $region28: #{run.19} parent=1 // pred_region
      %122 = dma.done [#allocation3], 256
    $region29: #{run.19} parent=1 // pred_fallthru
      _
    %123 = vsyncpa [#allocation3], 1

// kernel: run.17
$region0: #{run.17}
  #allocation0 [shape = 'u32[]', space=smem, size = 0x4, offset = 0x4, fixed_abs, tag = 'smem constant byte address 0x4 - core index']
  #allocation1 [shape = 'u32[144,128]{1,0:T(1,128)}', space=vmem, size = 0x12000, scoped, tag = 'internal scratch']
  #allocation2 [shape = 'f32[16,64]{1,0:T(8,128)}', space=vmem, size = 0x2000, scoped, tag = 'scratch operand']
  %s0 = inlined_call_operand.vmem [shape: f32[16,32], index: 0, kind: input, shape index: {}]
  %s1 = inlined_call_operand.vmem [shape: bf16[32,64], index: 1, kind: input, shape index: {}]
  %s2 = inlined_call_operand.vmem [shape: f32[1,64], index: 2, kind: input, shape index: {}]
  %s3 = inlined_call_operand.vmem [shape: bf16[16,64], index: 3, kind: output, shape index: {}]
  %s4 = sld [smem:[#allocation0]]
  $region30: #{run.17} parent=0
    _
  %s6 = ssub.s32 1, %s4
  %s7 = scalar_select 0, %s6, %s4
  // Predicated region
  $region2: #{run.17} parent=0 // pred_check
    _
  $region3: #{run.17} parent=0 // pred_check_branch
    %9 = sbr.rel (0) target = $region5
  $region4: #{run.17} parent=0 // pred_region
    _
  $region5: #{run.17} parent=0 // pred_fallthru
    _
  // Predicated region
  $region6: #{run.17} parent=0 // pred_check
    _
  $region7: #{run.17} parent=0 // pred_check_branch
    %11 = sbr.rel (0) target = $region9
  $region8: #{run.17} parent=0 // pred_region
    _
  $region9: #{run.17} parent=0 // pred_fallthru
    _
  // Predicated region
  $region10: #{run.17} parent=0 // pred_check
    _
  $region11: #{run.17} parent=0 // pred_check_branch
    %13 = sbr.rel (0) target = $region13
  $region12: #{run.17} parent=0 // pred_region
    _
  $region13: #{run.17} parent=0 // pred_fallthru
    _
  %p15 = scmp.eq.s32.totalorder 0, 0
  // Predicated region
  $region14: #{run.17} parent=0 // pred_check
    %p16 = pneg %p15
  $region15: #{run.17} parent=0 // pred_check_branch
    %18 = sbr.rel (%p16) target = $region17
  $region16: #{run.17} parent=0 // pred_region
    %vm19 = vcmask 523264
    %20 = vst.msk [vmem:[#allocation2] sm:$0xff] %vm19, 0.0
    %21 = vst.msk [vmem:[#allocation2 + $0x8] sm:$0xff] %vm19, 0.0
  $region17: #{run.17} parent=0 // pred_fallthru
    _
  %v22 = vld [vmem:[#allocation2] sm:$0xff]
  %v23 = vld [vmem:[#allocation2 + $0x8] sm:$0xff]
  %v24 = vld [vmem:[%s0] sm:$0xff]
  %v25 = vld [vmem:[%s0 + $0x8] sm:$0xff]
  %v26 = vpack.c.bf16 %v25, %v24
  %v27 = vld [vmem:[%s1] sm:$0xf]
  %v28 = vld [vmem:[%s1 + $0x4] sm:$0xf]
  %v29 = vld [vmem:[%s1 + $0x8] sm:$0xf]
  %v30 = vld [vmem:[%s1 + $0xc] sm:$0xf]
  %v35 = vunpack.c.l.b16 %v27
  %v36 = vunpack.c.l.b16 %v28
  %v37 = vunpack.c.l.b16 %v29
  %v38 = vunpack.c.l.b16 %v30
  %v39 = vpack.c.b16 %v36, %v35
  %v40 = vpack.c.b16 %v38, %v37
  %vm43 = vcmask 261120
  %v45 = vsel %vm43, %v26, 0
  %47 = vmatprep.subr.bf16.mxu0 0
  %48 = vmatpush1.bf16.msra.mxu0 0
  %49 = vmatprep.subr.bf16.mxu0 0
  %50 = vmatpush1.bf16.msra.mxu0 0
  %51 = vmatprep.subr.bf16.mxu0 0
  %52 = vmatpush1.bf16.msra.mxu0 0
  %53 = vmatprep.subr.bf16.mxu0 0
  %54 = vmatpush1.bf16.msra.mxu0 0
  %55 = vmatprep.subr.bf16.mxu0 0
  %56 = vmatpush1.bf16.msra.mxu0 0
  %57 = vmatprep.subr.bf16.mxu0 0
  %58 = vmatpush1.bf16.msra.mxu0 0
  %59 = vmatprep.subr.bf16.mxu0 0
  %60 = vmatpush1.bf16.msra.mxu0 %v40
  %61 = vmatprep.subr.bf16.mxu0 0
  %62 = vmatpush1.bf16.msra.mxu0 %v39
  %63 = vmatprep.subr.bf16.mxu0 0
  %64 = vmatpush2.bf16.msra.mxu0 0
  %65 = vmatprep.subr.bf16.mxu0 0
  %66 = vmatpush2.bf16.msra.mxu0 0
  %67 = vmatprep.subr.bf16.mxu0 0
  %68 = vmatpush2.bf16.msra.mxu0 0
  %69 = vmatprep.subr.bf16.mxu0 0
  %70 = vmatpush2.bf16.msra.mxu0 0
  %71 = vmatprep.subr.bf16.mxu0 0
  %72 = vmatpush2.bf16.msra.mxu0 0
  %73 = vmatprep.subr.bf16.mxu0 0
  %74 = vmatpush2.bf16.msra.mxu0 0
  %75 = vmatprep.subr.bf16.mxu0 0
  %76 = vmatpush2.bf16.msra.mxu0 0
  %77 = vmatprep.subr.bf16.mxu0 0
  %78 = vmatpush2.bf16.msra.mxu0 0
  %79 = vmatprep.mubr.bf16.mxu0 0
  %80 = vmatmul.mubr.bf16.gmra.mxu0 %v45
  %v81 = vpop.f32.mrf.mxu0
  %v82 = vadd.f32 0.0, %v81
  %v83 = vpop.f32.mrf.mxu0
  %v84 = vpop.f32.mrf.mxu0
  %v85 = vadd.f32 0.0, %v84
  %v86 = vpop.f32.mrf.mxu0
  %87 = vdwg.mxu0
  %v88 = vadd.f32 %v22, %v82
  %v89 = vadd.f32 %v23, %v85
  %vm90 = vcmask 523264
  %91 = vst.msk [vmem:[#allocation2] sm:$0xff] %vm90, %v88
  %92 = vst.msk [vmem:[#allocation2 + $0x8] sm:$0xff] %vm90, %v89
  // Predicated region
  $region18: #{run.17} parent=0 // pred_check
    %p93 = pneg %p15
  $region19: #{run.17} parent=0 // pred_check_branch
    %95 = sbr.rel (%p93) target = $region21
  $region20: #{run.17} parent=0 // pred_region
    %v96 = vld [vmem:[#allocation2] sm:$0xff]
    %v97 = vld [vmem:[#allocation2 + $0x8] sm:$0xff]
    %v98 = vld [vmem:[%s2] sm:$0x1]
    %v100 = vlaneseq
    %v101 = vshrl.u32 %v100, 7
    %v102 = vsub.s32 0, %v101
    %v103 = vrot.slane %v98, %v102
    %v105 = vadd.f32 %v96, %v103
    %v106 = vadd.f32 %v97, %v103
    %v107 = vmul.f32 %v105, 0.5
    %v108 = vmul.f32 %v106, 0.5
    %v109 = vmul.f32 %v105, 0.70710677
    %v110 = vmul.f32 %v106, 0.70710677
    %v111 = verf.f32.pop %v109
    %v112 = verf.f32.pop %v110
    %v113 = vadd.f32 %v111, 1.0
    %v114 = vadd.f32 %v112, 1.0
    %v115 = vmul.f32 %v107, %v113
    %v116 = vmul.f32 %v108, %v114
    %v117 = vpack.c.bf16 %v116, %v115
    %v119 = vunpack.c.l.b16 %v117
    %v120 = vunpack.c.h.b16 %v117
    %v121 = vpack.c.b16 %v119, %v119
    %v122 = vpack.c.b16 %v120, %v120
    %vm125 = vcmask 519168
    %126 = vst.msk [vmem:[%s3] sm:$0xf] %vm125, %v121
    %127 = vst.msk [vmem:[%s3 + $0x4] sm:$0xf] %vm125, %v122
  $region21: #{run.17} parent=0 // pred_fallthru
    _
  // Predicated region
  $region22: #{run.17} parent=0 // pred_check
    _
  $region23: #{run.17} parent=0 // pred_check_branch
    %129 = sbr.rel (0) target = $region25
  $region24: #{run.17} parent=0 // pred_region
    _
  $region25: #{run.17} parent=0 // pred_fallthru
    _
  // Predicated region
  $region26: #{run.17} parent=0 // pred_check
    _
  $region27: #{run.17} parent=0 // pred_check_branch
    %131 = sbr.rel (0) target = $region29
  $region28: #{run.17} parent=0 // pred_region
    _
  $region29: #{run.17} parent=0 // pred_fallthru
    _

</llo_original>
